<compile_context>
chip_gen: v7x
topology: tpu7x:2x2x1
jax: 0.10.0
libtpu: 0.0.40
codegen_flags: <defaults>
</compile_context>

<pallas_src>
import jax
import jax.numpy as jnp
from jax.experimental import pallas as pl
from jax.experimental.pallas import tpu as pltpu
import numpy as np

C_PAD = 128         # lane-dense logits width (true num_classes sliced in wrapper)
_MAX_B_TILE = 256   # MXU-native LHS row count on v6e/v7x


def _batch_tiling(B):
    """Returns (b_pad, b_tile, n_tiles). Batch padded to a multiple of 16 so a
    bf16-cast LHS vreg (16,128) is fully used."""
    b_pad = ((max(B, 1) + 15) // 16) * 16
    if b_pad <= 32:
        return b_pad, b_pad, 1                      # tiny batch: one grid step
    if b_pad <= 2 * _MAX_B_TILE:
        tile = (((b_pad + 31) // 32) * 32) // 2     # two tiles -> 2 TCs on v7x
        return 2 * tile, tile, 2
    tile = _MAX_B_TILE
    b_pad = ((b_pad + tile - 1) // tile) * tile
    return b_pad, tile, b_pad // tile


def _reorder_ifog(w):
    """Gate columns [i | f | g | o] -> [i | f | o | g] (sigmoid gates contiguous)."""
    H = w.shape[-1] // 4
    return jnp.concatenate(
        [w[..., : 2 * H], w[..., 3 * H:], w[..., 2 * H: 3 * H]], axis=-1)


def _take_iog(w):
    """Gate columns [i | f | g | o] -> [i | o | g] (forget gate provably dead)."""
    H = w.shape[-1] // 4
    return jnp.concatenate(
        [w[..., :H], w[..., 3 * H:], w[..., 2 * H: 3 * H]], axis=-1)


def _audio_classifier_kernel(
    x_ref,       # (T, Bt, D)   f32 time-major input tile
    w_in_ref,    # (D, 7H)      fused [W_ih_fwd (i,f,o,g) | W_ih_bwd (i,o,g)]
    b_in_ref,    # (1, 7H)      fused biases, f32
    whh_f_ref,   # (H, 4H)      forward hidden->gates, [i,f,o,g]
    w1_f_ref,    # (H, 64)      fc1 rows for h_fwd
    w1_b_ref,    # (H, 64)      fc1 rows for h_bwd
    b1_ref,      # (1, 64)
    w2_ref,      # (64, C_PAD)  fc2 weight, zero-padded to 128 lanes
    b2_ref,      # (1, C_PAD)
    out_ref,     # (Bt, C_PAD)  logits (padded lanes are zero columns)
    gx_ref,      # VMEM scratch (T, Bt, 7H) f32: hoisted gate pre-activations
):
    T, Bt, D = x_ref.shape
    H = whh_f_ref.shape[0]
    wd = whh_f_ref.dtype            # MXU operand dtype (bf16 by default)

    # ---- Hoisted input projection, both directions: one (T*Bt, D)x(D, 7H) ---
    x_flat = x_ref[...].reshape(T * Bt, D).astype(wd)
    g_all = jnp.dot(x_flat, w_in_ref[...], preferred_element_type=jnp.float32)
    gx_ref[...] = (g_all + b_in_ref[...]).reshape(T, Bt, 7 * H)

    # ---- Forward recurrence -------------------------------------------------
    # t = 0: h = c = 0  =>  the h @ W_hh matmul and f * c are exactly zero.
    g0 = gx_ref[0, :, : 4 * H]
    s0 = jax.nn.sigmoid(g0[:, : 3 * H])                 # [i, f, o]
    c = s0[:, :H] * jnp.tanh(g0[:, 3 * H:])
    h = s0[:, 2 * H: 3 * H] * jnp.tanh(c)

    # t = 1 .. T-1: fully unrolled; only h @ W_hh + gate math on the critical
    # path.  W_hh is re-read from VMEM per step (no 64-vreg live range).
    for t in range(1, T):
        gates = gx_ref[t, :, : 4 * H] + jnp.dot(
            h.astype(wd), whh_f_ref[...], preferred_element_type=jnp.float32)
        s = jax.nn.sigmoid(gates[:, : 3 * H])           # i, f, o in one pass
        g_g = jnp.tanh(gates[:, 3 * H:])
        c = s[:, H: 2 * H] * c + s[:, :H] * g_g
        h = s[:, 2 * H: 3 * H] * jnp.tanh(c)
    h_fwd = h

    # ---- Reverse direction: single step on x[:, -1, :] from zero state ------
    gb = gx_ref[T - 1, :, 4 * H:]                       # (Bt, 3H) = [i, o, g]
    sb = jax.nn.sigmoid(gb[:, : 2 * H])
    c_b = sb[:, :H] * jnp.tanh(gb[:, 2 * H:])
    h_bwd = sb[:, H: 2 * H] * jnp.tanh(c_b)

    # ---- Head: fc1 -> ReLU -> (dropout = identity in eval) -> fc2 -----------
    z1 = (jnp.dot(h_fwd, w1_f_ref[...], preferred_element_type=jnp.float32)
          + jnp.dot(h_bwd, w1_b_ref[...], preferred_element_type=jnp.float32)
          + b1_ref[...])
    z1 = jnp.maximum(z1, 0.0)
    logits = jnp.dot(z1, w2_ref[...], preferred_element_type=jnp.float32) + b2_ref[...]
    out_ref[...] = logits.astype(out_ref.dtype)


def audio_classifier_forward(x, params, *, lstm_weight_dtype=jnp.bfloat16):
    """x: (B, T, D) float32, batch_first like the PyTorch module.

    lstm_weight_dtype defaults to bfloat16 (MXU-native on v5e/v6e/v7x); f32
    accumulation is preserved via preferred_element_type.  Pass jnp.float32 for
    bit-accurate comparison against the f32 reference.
    """
    B, T, D = x.shape
    H = params["whh_f"].shape[0]
    C = params["w2"].shape[1]

    b_pad, b_tile, n_b = _batch_tiling(B)

    # Time-major + batch padded; tiny glue next to the recurrence at these sizes.
    x_tm = jnp.transpose(x, (1, 0, 2))                  # (T, B, D)
    if b_pad != B:
        x_tm = jnp.pad(x_tm, ((0, 0), (0, b_pad - B), (0, 0)))

    wd = lstm_weight_dtype
    # Gate reorder [i,f,g,o] -> [i,f,o,g]; fuse reverse projection (drop dead f).
    wih_f = _reorder_ifog(params["wih_f"])
    whh_f = _reorder_ifog(params["whh_f"]).astype(wd)
    b_f = _reorder_ifog(params["b_f"])
    w_in = jnp.concatenate([wih_f, _take_iog(params["wih_b"])], axis=1).astype(wd)
    b_in = jnp.concatenate([b_f, _take_iog(params["b_b"])], axis=1)   # f32

    # fc1 split into forward/backward halves; fc2 padded to lane-dense width.
    w1_f = params["w1"][:H, :]
    w1_b = params["w1"][H:, :]
    w2_p = jnp.pad(params["w2"], ((0, 0), (0, C_PAD - C)))
    b2_p = jnp.pad(params["b2"], ((0, 0), (0, C_PAD - C)))

    def full_spec(a):
        zeros = (0,) * a.ndim
        return pl.BlockSpec(a.shape, lambda b: zeros)

    in_specs = [
        pl.BlockSpec((T, b_tile, D), lambda b: (0, b, 0)),   # x, tiled over batch
        full_spec(w_in), full_spec(b_in), full_spec(whh_f),
        full_spec(w1_f), full_spec(w1_b), full_spec(params["b1"]),
        full_spec(w2_p), full_spec(b2_p),
    ]
    out_spec = pl.BlockSpec((b_tile, C_PAD), lambda b: (b, 0))

    out = pl.pallas_call(
        _audio_classifier_kernel,
        out_shape=jax.ShapeDtypeStruct((b_pad, C_PAD), jnp.float32),
        grid=(n_b,),
        in_specs=in_specs,
        out_specs=out_spec,
        scratch_shapes=[pltpu.VMEM((T, b_tile, 7 * H), jnp.float32)],
        compiler_params=pltpu.CompilerParams(
            dimension_semantics=("parallel",)),   # batch tiles across TCs (v7x)
    )(x_tm, w_in, b_in, whh_f, w1_f, w1_b, params["b1"], w2_p, b2_p)

    return out[:B, :C]


def _reference_forward(x, params):
    """Pure-JAX reference with the full (un-shortcut) math, f32 weights,
    canonical [i, f, g, o] gate layout."""
    H = params["whh_f"].shape[0]

    def step(x_t, h, c, wih, whh, b):
        g = x_t @ wih + h @ whh + b
        i = jax.nn.sigmoid(g[:, :H])
        f = jax.nn.sigmoid(g[:, H:2 * H])
        gg = jnp.tanh(g[:, 2 * H:3 * H])
        o = jax.nn.sigmoid(g[:, 3 * H:])
        c = f * c + i * gg
        return o * jnp.tanh(c), c

    B, T, D = x.shape
    h = jnp.zeros((B, H), jnp.float32)
    c = jnp.zeros((B, H), jnp.float32)
    for t in range(T):
        h, c = step(x[:, t, :], h, c, params["wih_f"], params["whh_f"], params["b_f"])
    h0 = jnp.zeros((B, H), jnp.float32)
    hb, _ = step(x[:, -1, :], h0, h0, params["wih_b"], params["whh_b"], params["b_b"])
    feats = jnp.concatenate([h, hb], axis=-1)
    z1 = jnp.maximum(feats @ params["w1"] + params["b1"], 0.0)
    return z1 @ params["w2"] + params["b2"]


def init_params(key, input_size=40, hidden_size=128, num_classes=8):
    """Deterministic init mirroring the PyTorch shapes (weights pre-transposed,
    canonical [i, f, g, o] gate column order, b = b_ih + b_hh fused)."""
    H, D, C = hidden_size, input_size, num_classes
    keys = jax.random.split(key, 13)
    k_lstm = 1.0 / np.sqrt(H)

    def unif(k, shape, bound):
        return jax.random.uniform(k, shape, jnp.float32, -bound, bound)

    return {
        # forward direction
        "wih_f": unif(keys[0], (D, 4 * H), k_lstm),
        "whh_f": unif(keys[1], (H, 4 * H), k_lstm),
        "b_f":   unif(keys[2], (1, 4 * H), k_lstm) + unif(keys[3], (1, 4 * H), k_lstm),
        # reverse direction
        "wih_b": unif(keys[4], (D, 4 * H), k_lstm),
        "whh_b": unif(keys[5], (H, 4 * H), k_lstm),   # unused by kernel (zero state)
        "b_b":   unif(keys[6], (1, 4 * H), k_lstm) + unif(keys[7], (1, 4 * H), k_lstm),
        # fc1: (2H -> 64)
        "w1": unif(keys[8], (2 * H, 64), 1.0 / np.sqrt(2 * H)),
        "b1": unif(keys[9], (1, 64), 1.0 / np.sqrt(2 * H)),
        # fc2: (64 -> C)
        "w2": unif(keys[10], (64, C), 1.0 / np.sqrt(64)),
        "b2": unif(keys[11], (1, C), 1.0 / np.sqrt(64)),
    }


if __name__ == "__main__":
    key = jax.random.PRNGKey(0)
    k_param, k_x = jax.random.split(key)

    B, T, D, H, C = 2, 8, 40, 128, 8
    params = init_params(k_param, input_size=D, hidden_size=H, num_classes=C)
    x = jax.random.normal(k_x, (B, T, D), dtype=jnp.float32)

    ref = _reference_forward(x, params)

    # f32 weight path: near-exact semantics check against the full reference.
    out_f32 = jax.block_until_ready(
        audio_classifier_forward(x, params, lstm_weight_dtype=jnp.float32))
    assert out_f32.shape == (B, C)
    np.testing.assert_allclose(np.asarray(out_f32), np.asarray(ref),
                               rtol=1e-4, atol=1e-4)

    # Default path (bf16 LSTM weights, f32 accumulation): looser tolerance.
    out_bf16 = jax.block_until_ready(audio_classifier_forward(x, params))
    assert out_bf16.shape == (B, C)
    assert bool(jnp.all(jnp.isfinite(out_bf16)))
    np.testing.assert_allclose(np.asarray(out_bf16), np.asarray(ref),
                               rtol=5e-2, atol=5e-2)

    print("KERNEL_OK")
</pallas_src>

<mosaic_0001>
module attributes {stable_mosaic.version = 11 : i64} {
  func.func @_audio_classifier_kernel(%arg0: i32, %arg1: memref<8x16x40xf32, #tpu.memory_space<vmem>>, %arg2: memref<40x896xf32, #tpu.memory_space<vmem>>, %arg3: memref<1x896xf32, #tpu.memory_space<vmem>>, %arg4: memref<128x512xf32, #tpu.memory_space<vmem>>, %arg5: memref<128x64xf32, #tpu.memory_space<vmem>>, %arg6: memref<128x64xf32, #tpu.memory_space<vmem>>, %arg7: memref<1x64xf32, #tpu.memory_space<vmem>>, %arg8: memref<64x128xf32, #tpu.memory_space<vmem>>, %arg9: memref<1x128xf32, #tpu.memory_space<vmem>>, %arg10: memref<16x128xf32, #tpu.memory_space<vmem>>, %arg11: memref<8x16x896xf32, #tpu.memory_space<vmem>>) attributes {dimension_semantics = [#tpu.dimension_semantics<parallel>], iteration_bounds = array<i64: 1>, scalar_prefetch = 0 : i64, scratch_operands = 1 : i64, tpu.core_type = #tpu.core_type<tc>, window_params = [{transform_indices = @transform_0, window_bounds = array<i64: 8, 16, 40>}, {pipeline_mode = #tpu.pipeline_mode<synchronous>, transform_indices = @transform_1, window_bounds = array<i64: 40, 896>}, {pipeline_mode = #tpu.pipeline_mode<synchronous>, transform_indices = @transform_2, window_bounds = array<i64: 1, 896>}, {pipeline_mode = #tpu.pipeline_mode<synchronous>, transform_indices = @transform_3, window_bounds = array<i64: 128, 512>}, {pipeline_mode = #tpu.pipeline_mode<synchronous>, transform_indices = @transform_4, window_bounds = array<i64: 128, 64>}, {pipeline_mode = #tpu.pipeline_mode<synchronous>, transform_indices = @transform_5, window_bounds = array<i64: 128, 64>}, {pipeline_mode = #tpu.pipeline_mode<synchronous>, transform_indices = @transform_6, window_bounds = array<i64: 1, 64>}, {pipeline_mode = #tpu.pipeline_mode<synchronous>, transform_indices = @transform_7, window_bounds = array<i64: 64, 128>}, {pipeline_mode = #tpu.pipeline_mode<synchronous>, transform_indices = @transform_8, window_bounds = array<i64: 1, 128>}, {transform_indices = @transform_9, window_bounds = array<i64: 16, 128>}]} {
    %c0 = arith.constant 0 : index
    %c0_0 = arith.constant 0 : index
    %c0_1 = arith.constant 0 : index
    %0 = vector.load %arg1[%c0, %c0_0, %c0_1] : memref<8x16x40xf32, #tpu.memory_space<vmem>>, vector<8x16x40xf32>
    %1 = vector.shape_cast %0 : vector<8x16x40xf32> to vector<128x40xf32>
    %c0_2 = arith.constant 0 : index
    %c0_3 = arith.constant 0 : index
    %2 = vector.load %arg2[%c0_2, %c0_3] : memref<40x896xf32, #tpu.memory_space<vmem>>, vector<40x896xf32>
    %cst = arith.constant dense<0.000000e+00> : vector<128x896xf32>
    %3 = tpu.matmul %1, %2, %cst {dimension_numbers = #tpu.dot_dimension_numbers<[1], [0], [0], [1], [0, 0, 1, 1], [], []>} : vector<128x40xf32>, vector<40x896xf32>, vector<128x896xf32> -> vector<128x896xf32>
    %c0_4 = arith.constant 0 : index
    %c0_5 = arith.constant 0 : index
    %4 = vector.load %arg3[%c0_4, %c0_5] : memref<1x896xf32, #tpu.memory_space<vmem>>, vector<1x896xf32>
    %5 = vector.broadcast %4 : vector<1x896xf32> to vector<128x896xf32>
    %6 = arith.addf %3, %5 : vector<128x896xf32>
    %7 = vector.shape_cast %6 : vector<128x896xf32> to vector<8x16x896xf32>
    %c0_6 = arith.constant 0 : index
    %c0_7 = arith.constant 0 : index
    %c0_8 = arith.constant 0 : index
    %8 = vector.load %arg11[%c0_6, %c0_7, %c0_8] : memref<8x16x896xf32, #tpu.memory_space<vmem>>, vector<8x16x896xf32>
    tpu.vector_store %arg11[%c0_6, %c0_7, %c0_8], %7 {strides = array<i32>} : memref<8x16x896xf32, #tpu.memory_space<vmem>>, vector<8x16x896xf32>,
    %c0_9 = arith.constant 0 : index
    %c0_10 = arith.constant 0 : index
    %c0_11 = arith.constant 0 : index
    %9 = vector.load %arg11[%c0_9, %c0_10, %c0_11] : memref<8x16x896xf32, #tpu.memory_space<vmem>>, vector<1x16x512xf32>
    %10 = vector.shape_cast %9 : vector<1x16x512xf32> to vector<16x512xf32>
    %11 = vector.extract_strided_slice %10 {offsets = [0, 0], sizes = [16, 384], strides = [1, 1]} : vector<16x512xf32> to vector<16x384xf32>
    %12 = arith.negf %11 : vector<16x384xf32>
    %13 = math.exp %12 : vector<16x384xf32>
    %cst_12 = arith.constant 1.000000e+00 : f32
    %14 = vector.broadcast %cst_12 : f32 to vector<16x384xf32>
    %15 = arith.addf %14, %13 : vector<16x384xf32>
    %16 = arith.divf %14, %15 : vector<16x384xf32>
    %17 = vector.extract_strided_slice %16 {offsets = [0, 0], sizes = [16, 128], strides = [1, 1]} : vector<16x384xf32> to vector<16x128xf32>
    %18 = vector.extract_strided_slice %10 {offsets = [0, 384], sizes = [16, 128], strides = [1, 1]} : vector<16x512xf32> to vector<16x128xf32>
    %19 = math.tanh %18 : vector<16x128xf32>
    %20 = arith.mulf %17, %19 : vector<16x128xf32>
    %21 = vector.extract_strided_slice %16 {offsets = [0, 256], sizes = [16, 128], strides = [1, 1]} : vector<16x384xf32> to vector<16x128xf32>
    %22 = math.tanh %20 : vector<16x128xf32>
    %23 = arith.mulf %21, %22 : vector<16x128xf32>
    %c1 = arith.constant 1 : index
    %c0_13 = arith.constant 0 : index
    %c0_14 = arith.constant 0 : index
    %24 = vector.load %arg11[%c1, %c0_13, %c0_14] : memref<8x16x896xf32, #tpu.memory_space<vmem>>, vector<1x16x512xf32>
    %25 = vector.shape_cast %24 : vector<1x16x512xf32> to vector<16x512xf32>
    %c0_15 = arith.constant 0 : index
    %c0_16 = arith.constant 0 : index
    %26 = vector.load %arg4[%c0_15, %c0_16] : memref<128x512xf32, #tpu.memory_space<vmem>>, vector<128x512xf32>
    %cst_17 = arith.constant dense<0.000000e+00> : vector<16x512xf32>
    %27 = tpu.matmul %23, %26, %cst_17 {dimension_numbers = #tpu.dot_dimension_numbers<[1], [0], [0], [1], [0, 0, 1, 1], [], []>} : vector<16x128xf32>, vector<128x512xf32>, vector<16x512xf32> -> vector<16x512xf32>
    %28 = arith.addf %25, %27 : vector<16x512xf32>
    %29 = vector.extract_strided_slice %28 {offsets = [0, 0], sizes = [16, 384], strides = [1, 1]} : vector<16x512xf32> to vector<16x384xf32>
    %30 = arith.negf %29 : vector<16x384xf32>
    %31 = math.exp %30 : vector<16x384xf32>
    %cst_18 = arith.constant 1.000000e+00 : f32
    %32 = vector.broadcast %cst_18 : f32 to vector<16x384xf32>
    %33 = arith.addf %32, %31 : vector<16x384xf32>
    %34 = arith.divf %32, %33 : vector<16x384xf32>
    %35 = vector.extract_strided_slice %28 {offsets = [0, 384], sizes = [16, 128], strides = [1, 1]} : vector<16x512xf32> to vector<16x128xf32>
    %36 = math.tanh %35 : vector<16x128xf32>
    %37 = vector.extract_strided_slice %34 {offsets = [0, 128], sizes = [16, 128], strides = [1, 1]} : vector<16x384xf32> to vector<16x128xf32>
    %38 = arith.mulf %37, %20 : vector<16x128xf32>
    %39 = vector.extract_strided_slice %34 {offsets = [0, 0], sizes = [16, 128], strides = [1, 1]} : vector<16x384xf32> to vector<16x128xf32>
    %40 = arith.mulf %39, %36 : vector<16x128xf32>
    %41 = arith.addf %38, %40 : vector<16x128xf32>
    %42 = vector.extract_strided_slice %34 {offsets = [0, 256], sizes = [16, 128], strides = [1, 1]} : vector<16x384xf32> to vector<16x128xf32>
    %43 = math.tanh %41 : vector<16x128xf32>
    %44 = arith.mulf %42, %43 : vector<16x128xf32>
    %c2 = arith.constant 2 : index
    %c0_19 = arith.constant 0 : index
    %c0_20 = arith.constant 0 : index
    %45 = vector.load %arg11[%c2, %c0_19, %c0_20] : memref<8x16x896xf32, #tpu.memory_space<vmem>>, vector<1x16x512xf32>
    %46 = vector.shape_cast %45 : vector<1x16x512xf32> to vector<16x512xf32>
    %c0_21 = arith.constant 0 : index
    %c0_22 = arith.constant 0 : index
    %47 = vector.load %arg4[%c0_21, %c0_22] : memref<128x512xf32, #tpu.memory_space<vmem>>, vector<128x512xf32>
    %cst_23 = arith.constant dense<0.000000e+00> : vector<16x512xf32>
    %48 = tpu.matmul %44, %47, %cst_23 {dimension_numbers = #tpu.dot_dimension_numbers<[1], [0], [0], [1], [0, 0, 1, 1], [], []>} : vector<16x128xf32>, vector<128x512xf32>, vector<16x512xf32> -> vector<16x512xf32>
    %49 = arith.addf %46, %48 : vector<16x512xf32>
    %50 = vector.extract_strided_slice %49 {offsets = [0, 0], sizes = [16, 384], strides = [1, 1]} : vector<16x512xf32> to vector<16x384xf32>
    %51 = arith.negf %50 : vector<16x384xf32>
    %52 = math.exp %51 : vector<16x384xf32>
    %cst_24 = arith.constant 1.000000e+00 : f32
    %53 = vector.broadcast %cst_24 : f32 to vector<16x384xf32>
    %54 = arith.addf %53, %52 : vector<16x384xf32>
    %55 = arith.divf %53, %54 : vector<16x384xf32>
    %56 = vector.extract_strided_slice %49 {offsets = [0, 384], sizes = [16, 128], strides = [1, 1]} : vector<16x512xf32> to vector<16x128xf32>
    %57 = math.tanh %56 : vector<16x128xf32>
    %58 = vector.extract_strided_slice %55 {offsets = [0, 128], sizes = [16, 128], strides = [1, 1]} : vector<16x384xf32> to vector<16x128xf32>
    %59 = arith.mulf %58, %41 : vector<16x128xf32>
    %60 = vector.extract_strided_slice %55 {offsets = [0, 0], sizes = [16, 128], strides = [1, 1]} : vector<16x384xf32> to vector<16x128xf32>
    %61 = arith.mulf %60, %57 : vector<16x128xf32>
    %62 = arith.addf %59, %61 : vector<16x128xf32>
    %63 = vector.extract_strided_slice %55 {offsets = [0, 256], sizes = [16, 128], strides = [1, 1]} : vector<16x384xf32> to vector<16x128xf32>
    %64 = math.tanh %62 : vector<16x128xf32>
    %65 = arith.mulf %63, %64 : vector<16x128xf32>
    %c3 = arith.constant 3 : index
    %c0_25 = arith.constant 0 : index
    %c0_26 = arith.constant 0 : index
    %66 = vector.load %arg11[%c3, %c0_25, %c0_26] : memref<8x16x896xf32, #tpu.memory_space<vmem>>, vector<1x16x512xf32>
    %67 = vector.shape_cast %66 : vector<1x16x512xf32> to vector<16x512xf32>
    %c0_27 = arith.constant 0 : index
    %c0_28 = arith.constant 0 : index
    %68 = vector.load %arg4[%c0_27, %c0_28] : memref<128x512xf32, #tpu.memory_space<vmem>>, vector<128x512xf32>
    %cst_29 = arith.constant dense<0.000000e+00> : vector<16x512xf32>
    %69 = tpu.matmul %65, %68, %cst_29 {dimension_numbers = #tpu.dot_dimension_numbers<[1], [0], [0], [1], [0, 0, 1, 1], [], []>} : vector<16x128xf32>, vector<128x512xf32>, vector<16x512xf32> -> vector<16x512xf32>
    %70 = arith.addf %67, %69 : vector<16x512xf32>
    %71 = vector.extract_strided_slice %70 {offsets = [0, 0], sizes = [16, 384], strides = [1, 1]} : vector<16x512xf32> to vector<16x384xf32>
    %72 = arith.negf %71 : vector<16x384xf32>
    %73 = math.exp %72 : vector<16x384xf32>
    %cst_30 = arith.constant 1.000000e+00 : f32
    %74 = vector.broadcast %cst_30 : f32 to vector<16x384xf32>
    %75 = arith.addf %74, %73 : vector<16x384xf32>
    %76 = arith.divf %74, %75 : vector<16x384xf32>
    %77 = vector.extract_strided_slice %70 {offsets = [0, 384], sizes = [16, 128], strides = [1, 1]} : vector<16x512xf32> to vector<16x128xf32>
    %78 = math.tanh %77 : vector<16x128xf32>
    %79 = vector.extract_strided_slice %76 {offsets = [0, 128], sizes = [16, 128], strides = [1, 1]} : vector<16x384xf32> to vector<16x128xf32>
    %80 = arith.mulf %79, %62 : vector<16x128xf32>
    %81 = vector.extract_strided_slice %76 {offsets = [0, 0], sizes = [16, 128], strides = [1, 1]} : vector<16x384xf32> to vector<16x128xf32>
    %82 = arith.mulf %81, %78 : vector<16x128xf32>
    %83 = arith.addf %80, %82 : vector<16x128xf32>
    %84 = vector.extract_strided_slice %76 {offsets = [0, 256], sizes = [16, 128], strides = [1, 1]} : vector<16x384xf32> to vector<16x128xf32>
    %85 = math.tanh %83 : vector<16x128xf32>
    %86 = arith.mulf %84, %85 : vector<16x128xf32>
    %c4 = arith.constant 4 : index
    %c0_31 = arith.constant 0 : index
    %c0_32 = arith.constant 0 : index
    %87 = vector.load %arg11[%c4, %c0_31, %c0_32] : memref<8x16x896xf32, #tpu.memory_space<vmem>>, vector<1x16x512xf32>
    %88 = vector.shape_cast %87 : vector<1x16x512xf32> to vector<16x512xf32>
    %c0_33 = arith.constant 0 : index
    %c0_34 = arith.constant 0 : index
    %89 = vector.load %arg4[%c0_33, %c0_34] : memref<128x512xf32, #tpu.memory_space<vmem>>, vector<128x512xf32>
    %cst_35 = arith.constant dense<0.000000e+00> : vector<16x512xf32>
    %90 = tpu.matmul %86, %89, %cst_35 {dimension_numbers = #tpu.dot_dimension_numbers<[1], [0], [0], [1], [0, 0, 1, 1], [], []>} : vector<16x128xf32>, vector<128x512xf32>, vector<16x512xf32> -> vector<16x512xf32>
    %91 = arith.addf %88, %90 : vector<16x512xf32>
    %92 = vector.extract_strided_slice %91 {offsets = [0, 0], sizes = [16, 384], strides = [1, 1]} : vector<16x512xf32> to vector<16x384xf32>
    %93 = arith.negf %92 : vector<16x384xf32>
    %94 = math.exp %93 : vector<16x384xf32>
    %cst_36 = arith.constant 1.000000e+00 : f32
    %95 = vector.broadcast %cst_36 : f32 to vector<16x384xf32>
    %96 = arith.addf %95, %94 : vector<16x384xf32>
    %97 = arith.divf %95, %96 : vector<16x384xf32>
    %98 = vector.extract_strided_slice %91 {offsets = [0, 384], sizes = [16, 128], strides = [1, 1]} : vector<16x512xf32> to vector<16x128xf32>
    %99 = math.tanh %98 : vector<16x128xf32>
    %100 = vector.extract_strided_slice %97 {offsets = [0, 128], sizes = [16, 128], strides = [1, 1]} : vector<16x384xf32> to vector<16x128xf32>
    %101 = arith.mulf %100, %83 : vector<16x128xf32>
    %102 = vector.extract_strided_slice %97 {offsets = [0, 0], sizes = [16, 128], strides = [1, 1]} : vector<16x384xf32> to vector<16x128xf32>
    %103 = arith.mulf %102, %99 : vector<16x128xf32>
    %104 = arith.addf %101, %103 : vector<16x128xf32>
    %105 = vector.extract_strided_slice %97 {offsets = [0, 256], sizes = [16, 128], strides = [1, 1]} : vector<16x384xf32> to vector<16x128xf32>
    %106 = math.tanh %104 : vector<16x128xf32>
    %107 = arith.mulf %105, %106 : vector<16x128xf32>
    %c5 = arith.constant 5 : index
    %c0_37 = arith.constant 0 : index
    %c0_38 = arith.constant 0 : index
    %108 = vector.load %arg11[%c5, %c0_37, %c0_38] : memref<8x16x896xf32, #tpu.memory_space<vmem>>, vector<1x16x512xf32>
    %109 = vector.shape_cast %108 : vector<1x16x512xf32> to vector<16x512xf32>
    %c0_39 = arith.constant 0 : index
    %c0_40 = arith.constant 0 : index
    %110 = vector.load %arg4[%c0_39, %c0_40] : memref<128x512xf32, #tpu.memory_space<vmem>>, vector<128x512xf32>
    %cst_41 = arith.constant dense<0.000000e+00> : vector<16x512xf32>
    %111 = tpu.matmul %107, %110, %cst_41 {dimension_numbers = #tpu.dot_dimension_numbers<[1], [0], [0], [1], [0, 0, 1, 1], [], []>} : vector<16x128xf32>, vector<128x512xf32>, vector<16x512xf32> -> vector<16x512xf32>
    %112 = arith.addf %109, %111 : vector<16x512xf32>
    %113 = vector.extract_strided_slice %112 {offsets = [0, 0], sizes = [16, 384], strides = [1, 1]} : vector<16x512xf32> to vector<16x384xf32>
    %114 = arith.negf %113 : vector<16x384xf32>
    %115 = math.exp %114 : vector<16x384xf32>
    %cst_42 = arith.constant 1.000000e+00 : f32
    %116 = vector.broadcast %cst_42 : f32 to vector<16x384xf32>
    %117 = arith.addf %116, %115 : vector<16x384xf32>
    %118 = arith.divf %116, %117 : vector<16x384xf32>
    %119 = vector.extract_strided_slice %112 {offsets = [0, 384], sizes = [16, 128], strides = [1, 1]} : vector<16x512xf32> to vector<16x128xf32>
    %120 = math.tanh %119 : vector<16x128xf32>
    %121 = vector.extract_strided_slice %118 {offsets = [0, 128], sizes = [16, 128], strides = [1, 1]} : vector<16x384xf32> to vector<16x128xf32>
    %122 = arith.mulf %121, %104 : vector<16x128xf32>
    %123 = vector.extract_strided_slice %118 {offsets = [0, 0], sizes = [16, 128], strides = [1, 1]} : vector<16x384xf32> to vector<16x128xf32>
    %124 = arith.mulf %123, %120 : vector<16x128xf32>
    %125 = arith.addf %122, %124 : vector<16x128xf32>
    %126 = vector.extract_strided_slice %118 {offsets = [0, 256], sizes = [16, 128], strides = [1, 1]} : vector<16x384xf32> to vector<16x128xf32>
    %127 = math.tanh %125 : vector<16x128xf32>
    %128 = arith.mulf %126, %127 : vector<16x128xf32>
    %c6 = arith.constant 6 : index
    %c0_43 = arith.constant 0 : index
    %c0_44 = arith.constant 0 : index
    %129 = vector.load %arg11[%c6, %c0_43, %c0_44] : memref<8x16x896xf32, #tpu.memory_space<vmem>>, vector<1x16x512xf32>
    %130 = vector.shape_cast %129 : vector<1x16x512xf32> to vector<16x512xf32>
    %c0_45 = arith.constant 0 : index
    %c0_46 = arith.constant 0 : index
    %131 = vector.load %arg4[%c0_45, %c0_46] : memref<128x512xf32, #tpu.memory_space<vmem>>, vector<128x512xf32>
    %cst_47 = arith.constant dense<0.000000e+00> : vector<16x512xf32>
    %132 = tpu.matmul %128, %131, %cst_47 {dimension_numbers = #tpu.dot_dimension_numbers<[1], [0], [0], [1], [0, 0, 1, 1], [], []>} : vector<16x128xf32>, vector<128x512xf32>, vector<16x512xf32> -> vector<16x512xf32>
    %133 = arith.addf %130, %132 : vector<16x512xf32>
    %134 = vector.extract_strided_slice %133 {offsets = [0, 0], sizes = [16, 384], strides = [1, 1]} : vector<16x512xf32> to vector<16x384xf32>
    %135 = arith.negf %134 : vector<16x384xf32>
    %136 = math.exp %135 : vector<16x384xf32>
    %cst_48 = arith.constant 1.000000e+00 : f32
    %137 = vector.broadcast %cst_48 : f32 to vector<16x384xf32>
    %138 = arith.addf %137, %136 : vector<16x384xf32>
    %139 = arith.divf %137, %138 : vector<16x384xf32>
    %140 = vector.extract_strided_slice %133 {offsets = [0, 384], sizes = [16, 128], strides = [1, 1]} : vector<16x512xf32> to vector<16x128xf32>
    %141 = math.tanh %140 : vector<16x128xf32>
    %142 = vector.extract_strided_slice %139 {offsets = [0, 128], sizes = [16, 128], strides = [1, 1]} : vector<16x384xf32> to vector<16x128xf32>
    %143 = arith.mulf %142, %125 : vector<16x128xf32>
    %144 = vector.extract_strided_slice %139 {offsets = [0, 0], sizes = [16, 128], strides = [1, 1]} : vector<16x384xf32> to vector<16x128xf32>
    %145 = arith.mulf %144, %141 : vector<16x128xf32>
    %146 = arith.addf %143, %145 : vector<16x128xf32>
    %147 = vector.extract_strided_slice %139 {offsets = [0, 256], sizes = [16, 128], strides = [1, 1]} : vector<16x384xf32> to vector<16x128xf32>
    %148 = math.tanh %146 : vector<16x128xf32>
    %149 = arith.mulf %147, %148 : vector<16x128xf32>
    %c7 = arith.constant 7 : index
    %c0_49 = arith.constant 0 : index
    %c0_50 = arith.constant 0 : index
    %150 = vector.load %arg11[%c7, %c0_49, %c0_50] : memref<8x16x896xf32, #tpu.memory_space<vmem>>, vector<1x16x512xf32>
    %151 = vector.shape_cast %150 : vector<1x16x512xf32> to vector<16x512xf32>
    %c0_51 = arith.constant 0 : index
    %c0_52 = arith.constant 0 : index
    %152 = vector.load %arg4[%c0_51, %c0_52] : memref<128x512xf32, #tpu.memory_space<vmem>>, vector<128x512xf32>
    %cst_53 = arith.constant dense<0.000000e+00> : vector<16x512xf32>
    %153 = tpu.matmul %149, %152, %cst_53 {dimension_numbers = #tpu.dot_dimension_numbers<[1], [0], [0], [1], [0, 0, 1, 1], [], []>} : vector<16x128xf32>, vector<128x512xf32>, vector<16x512xf32> -> vector<16x512xf32>
    %154 = arith.addf %151, %153 : vector<16x512xf32>
    %155 = vector.extract_strided_slice %154 {offsets = [0, 0], sizes = [16, 384], strides = [1, 1]} : vector<16x512xf32> to vector<16x384xf32>
    %156 = arith.negf %155 : vector<16x384xf32>
    %157 = math.exp %156 : vector<16x384xf32>
    %cst_54 = arith.constant 1.000000e+00 : f32
    %158 = vector.broadcast %cst_54 : f32 to vector<16x384xf32>
    %159 = arith.addf %158, %157 : vector<16x384xf32>
    %160 = arith.divf %158, %159 : vector<16x384xf32>
    %161 = vector.extract_strided_slice %154 {offsets = [0, 384], sizes = [16, 128], strides = [1, 1]} : vector<16x512xf32> to vector<16x128xf32>
    %162 = math.tanh %161 : vector<16x128xf32>
    %163 = vector.extract_strided_slice %160 {offsets = [0, 128], sizes = [16, 128], strides = [1, 1]} : vector<16x384xf32> to vector<16x128xf32>
    %164 = arith.mulf %163, %146 : vector<16x128xf32>
    %165 = vector.extract_strided_slice %160 {offsets = [0, 0], sizes = [16, 128], strides = [1, 1]} : vector<16x384xf32> to vector<16x128xf32>
    %166 = arith.mulf %165, %162 : vector<16x128xf32>
    %167 = arith.addf %164, %166 : vector<16x128xf32>
    %168 = vector.extract_strided_slice %160 {offsets = [0, 256], sizes = [16, 128], strides = [1, 1]} : vector<16x384xf32> to vector<16x128xf32>
    %169 = math.tanh %167 : vector<16x128xf32>
    %170 = arith.mulf %168, %169 : vector<16x128xf32>
    %c7_55 = arith.constant 7 : index
    %c0_56 = arith.constant 0 : index
    %c512 = arith.constant 512 : index
    %171 = vector.load %arg11[%c7_55, %c0_56, %c512] : memref<8x16x896xf32, #tpu.memory_space<vmem>>, vector<1x16x384xf32>
    %172 = vector.shape_cast %171 : vector<1x16x384xf32> to vector<16x384xf32>
    %173 = vector.extract_strided_slice %172 {offsets = [0, 0], sizes = [16, 256], strides = [1, 1]} : vector<16x384xf32> to vector<16x256xf32>
    %174 = arith.negf %173 : vector<16x256xf32>
    %175 = math.exp %174 : vector<16x256xf32>
    %cst_57 = arith.constant 1.000000e+00 : f32
    %176 = vector.broadcast %cst_57 : f32 to vector<16x256xf32>
    %177 = arith.addf %176, %175 : vector<16x256xf32>
    %178 = arith.divf %176, %177 : vector<16x256xf32>
    %179 = vector.extract_strided_slice %178 {offsets = [0, 0], sizes = [16, 128], strides = [1, 1]} : vector<16x256xf32> to vector<16x128xf32>
    %180 = vector.extract_strided_slice %172 {offsets = [0, 256], sizes = [16, 128], strides = [1, 1]} : vector<16x384xf32> to vector<16x128xf32>
    %181 = math.tanh %180 : vector<16x128xf32>
    %182 = arith.mulf %179, %181 : vector<16x128xf32>
    %183 = vector.extract_strided_slice %178 {offsets = [0, 128], sizes = [16, 128], strides = [1, 1]} : vector<16x256xf32> to vector<16x128xf32>
    %184 = math.tanh %182 : vector<16x128xf32>
    %185 = arith.mulf %183, %184 : vector<16x128xf32>
    %c0_58 = arith.constant 0 : index
    %c0_59 = arith.constant 0 : index
    %186 = vector.load %arg5[%c0_58, %c0_59] : memref<128x64xf32, #tpu.memory_space<vmem>>, vector<128x64xf32>
    %cst_60 = arith.constant dense<0.000000e+00> : vector<16x64xf32>
    %187 = tpu.matmul %170, %186, %cst_60 {dimension_numbers = #tpu.dot_dimension_numbers<[1], [0], [0], [1], [0, 0, 1, 1], [], []>} : vector<16x128xf32>, vector<128x64xf32>, vector<16x64xf32> -> vector<16x64xf32>
    %c0_61 = arith.constant 0 : index
    %c0_62 = arith.constant 0 : index
    %188 = vector.load %arg6[%c0_61, %c0_62] : memref<128x64xf32, #tpu.memory_space<vmem>>, vector<128x64xf32>
    %cst_63 = arith.constant dense<0.000000e+00> : vector<16x64xf32>
    %189 = tpu.matmul %185, %188, %cst_63 {dimension_numbers = #tpu.dot_dimension_numbers<[1], [0], [0], [1], [0, 0, 1, 1], [], []>} : vector<16x128xf32>, vector<128x64xf32>, vector<16x64xf32> -> vector<16x64xf32>
    %190 = arith.addf %187, %189 : vector<16x64xf32>
    %c0_64 = arith.constant 0 : index
    %c0_65 = arith.constant 0 : index
    %191 = vector.load %arg7[%c0_64, %c0_65] : memref<1x64xf32, #tpu.memory_space<vmem>>, vector<1x64xf32>
    %192 = vector.broadcast %191 : vector<1x64xf32> to vector<16x64xf32>
    %193 = arith.addf %190, %192 : vector<16x64xf32>
    %cst_66 = arith.constant 0.000000e+00 : f32
    %194 = vector.broadcast %cst_66 : f32 to vector<16x64xf32>
    %195 = arith.maximumf %193, %194 : vector<16x64xf32>
    %c0_67 = arith.constant 0 : index
    %c0_68 = arith.constant 0 : index
    %196 = vector.load %arg8[%c0_67, %c0_68] : memref<64x128xf32, #tpu.memory_space<vmem>>, vector<64x128xf32>
    %cst_69 = arith.constant dense<0.000000e+00> : vector<16x128xf32>
    %197 = tpu.matmul %195, %196, %cst_69 {dimension_numbers = #tpu.dot_dimension_numbers<[1], [0], [0], [1], [0, 0, 1, 1], [], []>} : vector<16x64xf32>, vector<64x128xf32>, vector<16x128xf32> -> vector<16x128xf32>
    %c0_70 = arith.constant 0 : index
    %c0_71 = arith.constant 0 : index
    %198 = vector.load %arg9[%c0_70, %c0_71] : memref<1x128xf32, #tpu.memory_space<vmem>>, vector<1x128xf32>
    %199 = vector.broadcast %198 : vector<1x128xf32> to vector<16x128xf32>
    %200 = arith.addf %197, %199 : vector<16x128xf32>
    %c0_72 = arith.constant 0 : index
    %c0_73 = arith.constant 0 : index
    %201 = vector.load %arg10[%c0_72, %c0_73] : memref<16x128xf32, #tpu.memory_space<vmem>>, vector<16x128xf32>
    tpu.vector_store %arg10[%c0_72, %c0_73], %200 {strides = array<i32>} : memref<16x128xf32, #tpu.memory_space<vmem>>, vector<16x128xf32>,
    return
  }
  func.func @transform_0(%arg0: i32) -> (i32, i32, i32) {
    %c0_i32 = arith.constant 0 : i32
    %c0_i32_0 = arith.constant 0 : i32
    %c0_i32_1 = arith.constant 0 : i32
    return %c0_i32, %arg0, %c0_i32_0 : i32, i32, i32
  }
  func.func @transform_1(%arg0: i32) -> (i32, i32) {
    %c0_i32 = arith.constant 0 : i32
    %c0_i32_0 = arith.constant 0 : i32
    %c0_i32_1 = arith.constant 0 : i32
    return %c0_i32, %c0_i32_0 : i32, i32
  }
  func.func @transform_2(%arg0: i32) -> (i32, i32) {
    %c0_i32 = arith.constant 0 : i32
    %c0_i32_0 = arith.constant 0 : i32
    %c0_i32_1 = arith.constant 0 : i32
    return %c0_i32, %c0_i32_0 : i32, i32
  }
  func.func @transform_3(%arg0: i32) -> (i32, i32) {
    %c0_i32 = arith.constant 0 : i32
    %c0_i32_0 = arith.constant 0 : i32
    %c0_i32_1 = arith.constant 0 : i32
    return %c0_i32, %c0_i32_0 : i32, i32
  }
  func.func @transform_4(%arg0: i32) -> (i32, i32) {
    %c0_i32 = arith.constant 0 : i32
    %c0_i32_0 = arith.constant 0 : i32
    %c0_i32_1 = arith.constant 0 : i32
    return %c0_i32, %c0_i32_0 : i32, i32
  }
  func.func @transform_5(%arg0: i32) -> (i32, i32) {
    %c0_i32 = arith.constant 0 : i32
    %c0_i32_0 = arith.constant 0 : i32
    %c0_i32_1 = arith.constant 0 : i32
    return %c0_i32, %c0_i32_0 : i32, i32
  }
  func.func @transform_6(%arg0: i32) -> (i32, i32) {
    %c0_i32 = arith.constant 0 : i32
    %c0_i32_0 = arith.constant 0 : i32
    %c0_i32_1 = arith.constant 0 : i32
    return %c0_i32, %c0_i32_0 : i32, i32
  }
  func.func @transform_7(%arg0: i32) -> (i32, i32) {
    %c0_i32 = arith.constant 0 : i32
    %c0_i32_0 = arith.constant 0 : i32
    %c0_i32_1 = arith.constant 0 : i32
    return %c0_i32, %c0_i32_0 : i32, i32
  }
  func.func @transform_8(%arg0: i32) -> (i32, i32) {
    %c0_i32 = arith.constant 0 : i32
    %c0_i32_0 = arith.constant 0 : i32
    %c0_i32_1 = arith.constant 0 : i32
    return %c0_i32, %c0_i32_0 : i32, i32
  }
  func.func @transform_9(%arg0: i32) -> (i32, i32) {
    %c0_i32 = arith.constant 0 : i32
    %c0_i32_0 = arith.constant 0 : i32
    return %arg0, %c0_i32 : i32, i32
  }
}

</mosaic_0001>

<llo_original>
// kernel: tpu_custom_call.1
$region0: #{tpu_custom_call.1}
  #allocation0 [shape = 'u32[]', space=smem, size = 0x4, offset = 0x4, fixed_abs, tag = 'smem constant byte address 0x4 - core index']
  #allocation1 [shape = 'u32[144,128]{1,0:T(1,128)}', space=vmem, size = 0x12000, scoped, tag = 'internal scratch']
  #allocation2 [shape = 'f32[8,16,896]{2,1,0:T(8,128)}', space=vmem, size = 0x70000, scoped, tag = 'scratch operand']
  %s0 = inlined_call_operand.hbm [shape: f32[8,16,40], index: 0, kind: input, shape index: {}]
  %s1 = inlined_call_operand.vmem [shape: f32[40,896], index: 1, kind: input, shape index: {}]
  %s2 = inlined_call_operand.vmem [shape: f32[1,896], index: 2, kind: input, shape index: {}]
  %s3 = inlined_call_operand.hbm [shape: f32[128,512], index: 3, kind: input, shape index: {}]
  %s4 = inlined_call_operand.vmem [shape: f32[128,64], index: 4, kind: input, shape index: {}]
  %s5 = inlined_call_operand.vmem [shape: f32[128,64], index: 5, kind: input, shape index: {}]
  %s6 = inlined_call_operand.vmem [shape: f32[1,64], index: 6, kind: input, shape index: {}]
  %s7 = inlined_call_operand.hbm [shape: f32[64,128], index: 7, kind: input, shape index: {}]
  %s8 = inlined_call_operand.vmem [shape: f32[1,128], index: 8, kind: input, shape index: {}]
  %s9 = inlined_call_operand.hbm [shape: f32[16,128], index: 9, kind: output, shape index: {}]
  %s10 = sld [smem:[#allocation0]]
  $region58: #{tpu_custom_call.1} parent=0
    _
  %s12 = ssub.s32 1, %s10
  %s13 = scalar_select 0, %s12, %s10
  $region1: #{tpu_custom_call.1} parent=0
    #allocation3 [shape = 'u8[65536]{0}', space=vmem, size = 0x10000, scoped, tag = 'input window, operand 0, single buffered']
    #allocation4 [shape = 's32[1]{0}', space=sflag, size = 0x4, scoped, tag = 'scoped memory for tpu_custom_call.1']
    #allocation5 [shape = 's32[1]{0}', space=sflag, size = 0x4, scoped, tag = 'scoped memory for tpu_custom_call.1']
    #allocation6 [shape = 'u8[262144]{0}', space=vmem, size = 0x40000, scoped, tag = 'input window, operand 3, single buffered']
    #allocation7 [shape = 's32[1]{0}', space=sflag, size = 0x4, scoped, tag = 'scoped memory for tpu_custom_call.1']
    #allocation8 [shape = 'u8[32768]{0}', space=vmem, size = 0x8000, scoped, tag = 'input window, operand 7, single buffered']
    #allocation9 [shape = 'u8[8192]{0}', space=vmem, size = 0x2000, scoped, tag = 'output window, operand 0, single buffered']
    %14 = vsyncpa [#allocation4], 0
    %15 = vsyncpa [#allocation7], 0
    %16 = vsyncpa [#allocation5], 0
    // Predicated region
    $region2: #{tpu_custom_call.1} parent=1 // pred_check
      _
    $region3: #{tpu_custom_call.1} parent=1 // pred_check_branch
      %18 = sbr.rel (0) target = $region5
    $region4: #{tpu_custom_call.1} parent=1 // pred_region
      %s20 = ssub.s32 2048, 2048
      %21 = vsyncadd [#allocation4], %s20
      %s22 = sshll.u32 [#allocation3], 4
      %s23 = int_to_ptr.vmem [resolvable:$true] %s22
      %28 = dma.hbm_to_vmem [thread:$0]  %s0, 2048, %s23, [#allocation4], 128, 128, 8
    $region5: #{tpu_custom_call.1} parent=1 // pred_fallthru
      _
    // Predicated region
    $region6: #{tpu_custom_call.1} parent=1 // pred_check
      _
    $region7: #{tpu_custom_call.1} parent=1 // pred_check_branch
      %30 = sbr.rel (0) target = $region9
    $region8: #{tpu_custom_call.1} parent=1 // pred_region
      _
    $region9: #{tpu_custom_call.1} parent=1 // pred_fallthru
      _
    // Predicated region
    $region10: #{tpu_custom_call.1} parent=1 // pred_check
      _
    $region11: #{tpu_custom_call.1} parent=1 // pred_check_branch
      %32 = sbr.rel (0) target = $region13
    $region12: #{tpu_custom_call.1} parent=1 // pred_region
      _
    $region13: #{tpu_custom_call.1} parent=1 // pred_fallthru
      _
    // Predicated region
    $region14: #{tpu_custom_call.1} parent=1 // pred_check
      _
    $region15: #{tpu_custom_call.1} parent=1 // pred_check_branch
      %34 = sbr.rel (0) target = $region17
    $region16: #{tpu_custom_call.1} parent=1 // pred_region
      %s36 = ssub.s32 8192, 8192
      %37 = vsyncadd [#allocation7], %s36
      %s38 = sshll.u32 [#allocation6], 4
      %s39 = int_to_ptr.vmem [resolvable:$true] %s38
      %44 = dma.hbm_to_vmem [thread:$0]  %s3, 8192, %s39, [#allocation7], 512, 512, 32
    $region17: #{tpu_custom_call.1} parent=1 // pred_fallthru
      _
    // Predicated region
    $region18: #{tpu_custom_call.1} parent=1 // pred_check
      _
    $region19: #{tpu_custom_call.1} parent=1 // pred_check_branch
      %46 = sbr.rel (0) target = $region21
    $region20: #{tpu_custom_call.1} parent=1 // pred_region
      _
    $region21: #{tpu_custom_call.1} parent=1 // pred_fallthru
      _
    // Predicated region
    $region22: #{tpu_custom_call.1} parent=1 // pred_check
      _
    $region23: #{tpu_custom_call.1} parent=1 // pred_check_branch
      %48 = sbr.rel (0) target = $region25
    $region24: #{tpu_custom_call.1} parent=1 // pred_region
      _
    $region25: #{tpu_custom_call.1} parent=1 // pred_fallthru
      _
    // Predicated region
    $region26: #{tpu_custom_call.1} parent=1 // pred_check
      _
    $region27: #{tpu_custom_call.1} parent=1 // pred_check_branch
      %50 = sbr.rel (0) target = $region29
    $region28: #{tpu_custom_call.1} parent=1 // pred_region
      _
    $region29: #{tpu_custom_call.1} parent=1 // pred_fallthru
      _
    // Predicated region
    $region30: #{tpu_custom_call.1} parent=1 // pred_check
      _
    $region31: #{tpu_custom_call.1} parent=1 // pred_check_branch
      %52 = sbr.rel (0) target = $region33
    $region32: #{tpu_custom_call.1} parent=1 // pred_region
      %s54 = ssub.s32 1024, 1024
      %55 = vsyncadd [#allocation7], %s54
      %s56 = sshll.u32 [#allocation8], 4
      %s57 = int_to_ptr.vmem [resolvable:$true] %s56
      %62 = dma.hbm_to_vmem [thread:$0]  %s7, 1024, %s57, [#allocation7], 128, 128, 8
    $region33: #{tpu_custom_call.1} parent=1 // pred_fallthru
      _
    // Predicated region
    $region34: #{tpu_custom_call.1} parent=1 // pred_check
      _
    $region35: #{tpu_custom_call.1} parent=1 // pred_check_branch
      %64 = sbr.rel (0) target = $region37
    $region36: #{tpu_custom_call.1} parent=1 // pred_region
      _
    $region37: #{tpu_custom_call.1} parent=1 // pred_fallthru
      _
    // Predicated region
    $region38: #{tpu_custom_call.1} parent=1 // pred_check
      _
    $region39: #{tpu_custom_call.1} parent=1 // pred_check_branch
      %66 = sbr.rel (0) target = $region41
    $region40: #{tpu_custom_call.1} parent=1 // pred_region
      %67 = dma.done [#allocation4], 2048
    $region41: #{tpu_custom_call.1} parent=1 // pred_fallthru
      _
    // Predicated region
    $region42: #{tpu_custom_call.1} parent=1 // pred_check
      _
    $region43: #{tpu_custom_call.1} parent=1 // pred_check_branch
      %69 = sbr.rel (0) target = $region45
    $region44: #{tpu_custom_call.1} parent=1 // pred_region
      %70 = dma.done [#allocation7], 8192
    $region45: #{tpu_custom_call.1} parent=1 // pred_fallthru
      _
    // Predicated region
    $region46: #{tpu_custom_call.1} parent=1 // pred_check
      _
    $region47: #{tpu_custom_call.1} parent=1 // pred_check_branch
      %72 = sbr.rel (0) target = $region49
    $region48: #{tpu_custom_call.1} parent=1 // pred_region
      %73 = dma.done [#allocation7], 1024
    $region49: #{tpu_custom_call.1} parent=1 // pred_fallthru
      _
    %v74 = vld [vmem:[#allocation3] sm:$0xff]
    %v75 = vld [vmem:[#allocation3 + $0x8] sm:$0xff]
    %v76 = vld [vmem:[#allocation3 + $0x10] sm:$0xff]
    %v77 = vld [vmem:[#allocation3 + $0x18] sm:$0xff]
    %v78 = vld [vmem:[#allocation3 + $0x20] sm:$0xff]
    %v79 = vld [vmem:[#allocation3 + $0x28] sm:$0xff]
    %v80 = vld [vmem:[#allocation3 + $0x30] sm:$0xff]
    %v81 = vld [vmem:[#allocation3 + $0x38] sm:$0xff]
    %v82 = vld [vmem:[#allocation3 + $0x40] sm:$0xff]
    %v83 = vld [vmem:[#allocation3 + $0x48] sm:$0xff]
    %v84 = vld [vmem:[#allocation3 + $0x50] sm:$0xff]
    %v85 = vld [vmem:[#allocation3 + $0x58] sm:$0xff]
    %v86 = vld [vmem:[#allocation3 + $0x60] sm:$0xff]
    %v87 = vld [vmem:[#allocation3 + $0x68] sm:$0xff]
    %v88 = vld [vmem:[#allocation3 + $0x70] sm:$0xff]
    %v89 = vld [vmem:[#allocation3 + $0x78] sm:$0xff]
    %v90 = vld [vmem:[%s1] sm:$0xff]
    %v91 = vld [vmem:[%s1 + $0x8] sm:$0xff]
    %v92 = vld [vmem:[%s1 + $0x10] sm:$0xff]
    %v93 = vld [vmem:[%s1 + $0x18] sm:$0xff]
    %v94 = vld [vmem:[%s1 + $0x20] sm:$0xff]
    %v95 = vld [vmem:[%s1 + $0x28] sm:$0xff]
    %v96 = vld [vmem:[%s1 + $0x30] sm:$0xff]
    %v97 = vld [vmem:[%s1 + $0x38] sm:$0xff]
    %v98 = vld [vmem:[%s1 + $0x40] sm:$0xff]
    %v99 = vld [vmem:[%s1 + $0x48] sm:$0xff]
    %v100 = vld [vmem:[%s1 + $0x50] sm:$0xff]
    %v101 = vld [vmem:[%s1 + $0x58] sm:$0xff]
    %v102 = vld [vmem:[%s1 + $0x60] sm:$0xff]
    %v103 = vld [vmem:[%s1 + $0x68] sm:$0xff]
    %v104 = vld [vmem:[%s1 + $0x70] sm:$0xff]
    %v105 = vld [vmem:[%s1 + $0x78] sm:$0xff]
    %v106 = vld [vmem:[%s1 + $0x80] sm:$0xff]
    %v107 = vld [vmem:[%s1 + $0x88] sm:$0xff]
    %v108 = vld [vmem:[%s1 + $0x90] sm:$0xff]
    %v109 = vld [vmem:[%s1 + $0x98] sm:$0xff]
    %v110 = vld [vmem:[%s1 + $0xa0] sm:$0xff]
    %v111 = vld [vmem:[%s1 + $0xa8] sm:$0xff]
    %v112 = vld [vmem:[%s1 + $0xb0] sm:$0xff]
    %v113 = vld [vmem:[%s1 + $0xb8] sm:$0xff]
    %v114 = vld [vmem:[%s1 + $0xc0] sm:$0xff]
    %v115 = vld [vmem:[%s1 + $0xc8] sm:$0xff]
    %v116 = vld [vmem:[%s1 + $0xd0] sm:$0xff]
    %v117 = vld [vmem:[%s1 + $0xd8] sm:$0xff]
    %v118 = vld [vmem:[%s1 + $0xe0] sm:$0xff]
    %v119 = vld [vmem:[%s1 + $0xe8] sm:$0xff]
    %v120 = vld [vmem:[%s1 + $0xf0] sm:$0xff]
    %v121 = vld [vmem:[%s1 + $0xf8] sm:$0xff]
    %v122 = vld [vmem:[%s1 + $0x100] sm:$0xff]
    %v123 = vld [vmem:[%s1 + $0x108] sm:$0xff]
    %v124 = vld [vmem:[%s1 + $0x110] sm:$0xff]
    %v125 = vld [vmem:[%s2] sm:$0xff]
    %v127 = vlaneseq
    %v128 = vshrl.u32 %v127, 7
    %v129 = vsub.s32 0, %v128
    %v130 = vrot.slane %v125, %v129
    %v131 = vlaneseq
    %v132 = vshrl.u32 %v131, 7
    %v133 = vsub.s32 1, %v132
    %v134 = vrot.slane %v125, %v133
    %v135 = vlaneseq
    %v136 = vshrl.u32 %v135, 7
    %v137 = vsub.s32 2, %v136
    %v138 = vrot.slane %v125, %v137
    %v139 = vlaneseq
    %v140 = vshrl.u32 %v139, 7
    %v141 = vsub.s32 3, %v140
    %v142 = vrot.slane %v125, %v141
    %v143 = vlaneseq
    %v144 = vshrl.u32 %v143, 7
    %v145 = vsub.s32 4, %v144
    %v146 = vrot.slane %v125, %v145
    %v147 = vlaneseq
    %v148 = vshrl.u32 %v147, 7
    %v149 = vsub.s32 5, %v148
    %v150 = vrot.slane %v125, %v149
    %v151 = vlaneseq
    %v152 = vshrl.u32 %v151, 7
    %v153 = vsub.s32 6, %v152
    %v154 = vrot.slane %v125, %v153
    %vm162 = vcmask 326656
    %v164 = vsel %vm162, %v74, 0
    %v167 = vsel %vm162, %v75, 0
    %v170 = vsel %vm162, %v76, 0
    %v173 = vsel %vm162, %v77, 0
    %v176 = vsel %vm162, %v78, 0
    %v179 = vsel %vm162, %v79, 0
    %v182 = vsel %vm162, %v80, 0
    %v185 = vsel %vm162, %v81, 0
    %v188 = vsel %vm162, %v82, 0
    %v191 = vsel %vm162, %v83, 0
    %v194 = vsel %vm162, %v84, 0
    %v197 = vsel %vm162, %v85, 0
    %v200 = vsel %vm162, %v86, 0
    %v203 = vsel %vm162, %v87, 0
    %v206 = vsel %vm162, %v88, 0
    %v209 = vsel %vm162, %v89, 0
    %211 = vmatprep.subr.mxu0 %v91
    %212 = vmatpush1.msra.mxu0 %v90
    %213 = vmatprep.subr.mxu0 %v98
    %214 = vmatpush1.msra.mxu0 %v97
    %215 = vmatprep.subr.mxu0 %v105
    %216 = vmatpush1.msra.mxu0 %v104
    %217 = vmatprep.subr.mxu0 %v112
    %218 = vmatpush1.msra.mxu0 %v111
    %219 = vmatprep.subr.mxu0 %v119
    %220 = vmatpush1.msra.mxu0 %v118
    %221 = vmatprep.subr.mxu0 0.0
    %222 = vmatpush1.msra.mxu0 0.0
    %223 = vmatprep.subr.mxu0 0.0
    %224 = vmatpush1.msra.mxu0 0.0
    %225 = vmatprep.subr.mxu0 0.0
    %226 = vmatpush1.msra.mxu0 0.0
    %227 = vmatprep.subr.mxu0 0.0
    %228 = vmatpush1.msra.mxu0 0.0
    %229 = vmatprep.subr.mxu0 0.0
    %230 = vmatpush1.msra.mxu0 0.0
    %231 = vmatprep.subr.mxu0 0.0
    %232 = vmatpush1.msra.mxu0 0.0
    %233 = vmatprep.subr.mxu0 0.0
    %234 = vmatpush1.msra.mxu0 0.0
    %235 = vmatprep.subr.mxu0 0.0
    %236 = vmatpush1.msra.mxu0 0.0
    %237 = vmatprep.subr.mxu0 0.0
    %238 = vmatpush1.msra.mxu0 0.0
    %239 = vmatprep.subr.mxu0 0.0
    %240 = vmatpush1.msra.mxu0 0.0
    %241 = vmatprep.subr.mxu0 0.0
    %242 = vmatpush1.msra.mxu0 0.0
    %243 = vmatprep.subr.mxu0 0.0
    %244 = vmatpush1.msra.mxu0 0.0
    %245 = vmatprep.subr.mxu0 0.0
    %246 = vmatpush1.msra.mxu0 0.0
    %247 = vmatprep.subr.mxu0 0.0
    %248 = vmatpush1.msra.mxu0 0.0
    %249 = vmatprep.subr.mxu0 0.0
    %250 = vmatpush1.msra.mxu0 0.0
    %251 = vmatprep.subr.mxu0 0.0
    %252 = vmatpush1.msra.mxu0 0.0
    %253 = vmatprep.subr.mxu0 0.0
    %254 = vmatpush1.msra.mxu0 0.0
    %255 = vmatprep.subr.mxu0 0.0
    %256 = vmatpush1.msra.mxu0 0.0
    %257 = vmatprep.subr.mxu0 0.0
    %258 = vmatpush1.msra.mxu0 0.0
    %259 = vmatprep.subr.mxu0 0.0
    %260 = vmatpush1.msra.mxu0 0.0
    %261 = vmatprep.subr.mxu0 0.0
    %262 = vmatpush1.msra.mxu0 0.0
    %263 = vmatprep.subr.mxu0 0.0
    %264 = vmatpush1.msra.mxu0 0.0
    %265 = vmatprep.subr.mxu0 0.0
    %266 = vmatpush1.msra.mxu0 0.0
    %267 = vmatprep.subr.mxu0 0.0
    %268 = vmatpush1.msra.mxu0 0.0
    %269 = vmatprep.subr.mxu0 0.0
    %270 = vmatpush1.msra.mxu0 0.0
    %271 = vmatprep.subr.mxu0 0.0
    %272 = vmatpush1.msra.mxu0 0.0
    %273 = vmatprep.subr.mxu0 0.0
    %274 = vmatpush1.msra.mxu0 0.0
    %275 = vmatprep.mubr.f32.mxu0 0.0
    %276 = vmatmul.mubr.f32.gmra.mrb[0].mxu0 %v164
    %v277 = vpop.f32.mrb[0].mxu0
    %v278 = vadd.f32 %v130, %v277
    %v279 = vpop.f32.mrb[0].mxu0
    %v280 = vadd.f32 %v134, %v279
    %281 = vmatprep.mubr.f32.mxu0 0.0
    %282 = vmatmul.mubr.f32.gmra.mrb[0].mxu0 %v167
    %v283 = vpop.f32.mrb[0].mxu0
    %v284 = vadd.f32 %v130, %v283
    %v285 = vpop.f32.mrb[0].mxu0
    %v286 = vadd.f32 %v134, %v285
    %287 = vmatprep.mubr.f32.mxu0 0.0
    %288 = vmatmul.mubr.f32.gmra.mrb[0].mxu0 %v170
    %v289 = vpop.f32.mrb[0].mxu0
    %v290 = vadd.f32 %v130, %v289
    %v291 = vpop.f32.mrb[0].mxu0
    %v292 = vadd.f32 %v134, %v291
    %293 = vmatprep.mubr.f32.mxu0 0.0
    %294 = vmatmul.mubr.f32.gmra.mrb[0].mxu0 %v173
    %v295 = vpop.f32.mrb[0].mxu0
    %v296 = vadd.f32 %v130, %v295
    %v297 = vpop.f32.mrb[0].mxu0
    %v298 = vadd.f32 %v134, %v297
    %299 = vmatprep.mubr.f32.mxu0 0.0
    %300 = vmatmul.mubr.f32.gmra.mrb[0].mxu0 %v176
    %v301 = vpop.f32.mrb[0].mxu0
    %v302 = vadd.f32 %v130, %v301
    %v303 = vpop.f32.mrb[0].mxu0
    %v304 = vadd.f32 %v134, %v303
    %305 = vmatprep.mubr.f32.mxu0 0.0
    %306 = vmatmul.mubr.f32.gmra.mrb[0].mxu0 %v179
    %v307 = vpop.f32.mrb[0].mxu0
    %v308 = vadd.f32 %v130, %v307
    %v309 = vpop.f32.mrb[0].mxu0
    %v310 = vadd.f32 %v134, %v309
    %311 = vmatprep.mubr.f32.mxu0 0.0
    %312 = vmatmul.mubr.f32.gmra.mrb[0].mxu0 %v182
    %v313 = vpop.f32.mrb[0].mxu0
    %v314 = vadd.f32 %v130, %v313
    %v315 = vpop.f32.mrb[0].mxu0
    %v316 = vadd.f32 %v134, %v315
    %317 = vmatprep.mubr.f32.mxu0 0.0
    %318 = vmatmul.mubr.f32.gmra.mrb[0].mxu0 %v185
    %v319 = vpop.f32.mrb[0].mxu0
    %v320 = vadd.f32 %v130, %v319
    %v321 = vpop.f32.mrb[0].mxu0
    %v322 = vadd.f32 %v134, %v321
    %323 = vmatprep.mubr.f32.mxu0 0.0
    %324 = vmatmul.mubr.f32.gmra.mrb[0].mxu0 %v188
    %v325 = vpop.f32.mrb[0].mxu0
    %v326 = vadd.f32 %v130, %v325
    %v327 = vpop.f32.mrb[0].mxu0
    %v328 = vadd.f32 %v134, %v327
    %329 = vmatprep.mubr.f32.mxu0 0.0
    %330 = vmatmul.mubr.f32.gmra.mrb[0].mxu0 %v191
    %v331 = vpop.f32.mrb[0].mxu0
    %v332 = vadd.f32 %v130, %v331
    %v333 = vpop.f32.mrb[0].mxu0
    %v334 = vadd.f32 %v134, %v333
    %335 = vmatprep.mubr.f32.mxu0 0.0
    %336 = vmatmul.mubr.f32.gmra.mrb[0].mxu0 %v194
    %v337 = vpop.f32.mrb[0].mxu0
    %v338 = vadd.f32 %v130, %v337
    %v339 = vpop.f32.mrb[0].mxu0
    %v340 = vadd.f32 %v134, %v339
    %341 = vmatprep.mubr.f32.mxu0 0.0
    %342 = vmatmul.mubr.f32.gmra.mrb[0].mxu0 %v197
    %v343 = vpop.f32.mrb[0].mxu0
    %v344 = vadd.f32 %v130, %v343
    %v345 = vpop.f32.mrb[0].mxu0
    %v346 = vadd.f32 %v134, %v345
    %347 = vmatprep.mubr.f32.mxu0 0.0
    %348 = vmatmul.mubr.f32.gmra.mrb[0].mxu0 %v200
    %v349 = vpop.f32.mrb[0].mxu0
    %v350 = vadd.f32 %v130, %v349
    %v351 = vpop.f32.mrb[0].mxu0
    %v352 = vadd.f32 %v134, %v351
    %353 = vmatprep.mubr.f32.mxu0 0.0
    %354 = vmatmul.mubr.f32.gmra.mrb[0].mxu0 %v203
    %v355 = vpop.f32.mrb[0].mxu0
    %v356 = vadd.f32 %v130, %v355
    %v357 = vpop.f32.mrb[0].mxu0
    %v358 = vadd.f32 %v134, %v357
    %359 = vmatprep.mubr.f32.mxu0 0.0
    %360 = vmatmul.mubr.f32.gmra.mrb[0].mxu0 %v206
    %v361 = vpop.f32.mrb[0].mxu0
    %v362 = vadd.f32 %v130, %v361
    %v363 = vpop.f32.mrb[0].mxu0
    %v364 = vadd.f32 %v134, %v363
    %365 = vmatprep.mubr.f32.mxu0 0.0
    %366 = vmatmul.mubr.f32.gmra.mrb[0].mxu0 %v209
    %v367 = vpop.f32.mrb[0].mxu0
    %v368 = vadd.f32 %v130, %v367
    %v369 = vpop.f32.mrb[0].mxu0
    %v370 = vadd.f32 %v134, %v369
    %371 = vdwg.mxu0
    %372 = vmatprep.subr.mxu0 %v93
    %373 = vmatpush1.msra.mxu0 %v92
    %374 = vmatprep.subr.mxu0 %v100
    %375 = vmatpush1.msra.mxu0 %v99
    %376 = vmatprep.subr.mxu0 %v107
    %377 = vmatpush1.msra.mxu0 %v106
    %378 = vmatprep.subr.mxu0 %v114
    %379 = vmatpush1.msra.mxu0 %v113
    %380 = vmatprep.subr.mxu0 %v121
    %381 = vmatpush1.msra.mxu0 %v120
    %382 = vmatprep.subr.mxu0 0.0
    %383 = vmatpush1.msra.mxu0 0.0
    %384 = vmatprep.subr.mxu0 0.0
    %385 = vmatpush1.msra.mxu0 0.0
    %386 = vmatprep.subr.mxu0 0.0
    %387 = vmatpush1.msra.mxu0 0.0
    %388 = vmatprep.subr.mxu0 0.0
    %389 = vmatpush1.msra.mxu0 0.0
    %390 = vmatprep.subr.mxu0 0.0
    %391 = vmatpush1.msra.mxu0 0.0
    %392 = vmatprep.subr.mxu0 0.0
    %393 = vmatpush1.msra.mxu0 0.0
    %394 = vmatprep.subr.mxu0 0.0
    %395 = vmatpush1.msra.mxu0 0.0
    %396 = vmatprep.subr.mxu0 0.0
    %397 = vmatpush1.msra.mxu0 0.0
    %398 = vmatprep.subr.mxu0 0.0
    %399 = vmatpush1.msra.mxu0 0.0
    %400 = vmatprep.subr.mxu0 0.0
    %401 = vmatpush1.msra.mxu0 0.0
    %402 = vmatprep.subr.mxu0 0.0
    %403 = vmatpush1.msra.mxu0 0.0
    %404 = vmatprep.subr.mxu0 0.0
    %405 = vmatpush1.msra.mxu0 0.0
    %406 = vmatprep.subr.mxu0 0.0
    %407 = vmatpush1.msra.mxu0 0.0
    %408 = vmatprep.subr.mxu0 0.0
    %409 = vmatpush1.msra.mxu0 0.0
    %410 = vmatprep.subr.mxu0 0.0
    %411 = vmatpush1.msra.mxu0 0.0
    %412 = vmatprep.subr.mxu0 0.0
    %413 = vmatpush1.msra.mxu0 0.0
    %414 = vmatprep.subr.mxu0 0.0
    %415 = vmatpush1.msra.mxu0 0.0
    %416 = vmatprep.subr.mxu0 0.0
    %417 = vmatpush1.msra.mxu0 0.0
    %418 = vmatprep.subr.mxu0 0.0
    %419 = vmatpush1.msra.mxu0 0.0
    %420 = vmatprep.subr.mxu0 0.0
    %421 = vmatpush1.msra.mxu0 0.0
    %422 = vmatprep.subr.mxu0 0.0
    %423 = vmatpush1.msra.mxu0 0.0
    %424 = vmatprep.subr.mxu0 0.0
    %425 = vmatpush1.msra.mxu0 0.0
    %426 = vmatprep.subr.mxu0 0.0
    %427 = vmatpush1.msra.mxu0 0.0
    %428 = vmatprep.subr.mxu0 0.0
    %429 = vmatpush1.msra.mxu0 0.0
    %430 = vmatprep.subr.mxu0 0.0
    %431 = vmatpush1.msra.mxu0 0.0
    %432 = vmatprep.subr.mxu0 0.0
    %433 = vmatpush1.msra.mxu0 0.0
    %434 = vmatprep.subr.mxu0 0.0
    %435 = vmatpush1.msra.mxu0 0.0
    %436 = vmatprep.mubr.f32.mxu0 0.0
    %437 = vmatmul.mubr.f32.gmra.mrb[0].mxu0 %v164
    %v438 = vpop.f32.mrb[0].mxu0
    %v439 = vadd.f32 %v138, %v438
    %v440 = vpop.f32.mrb[0].mxu0
    %v441 = vadd.f32 %v142, %v440
    %442 = vmatprep.mubr.f32.mxu0 0.0
    %443 = vmatmul.mubr.f32.gmra.mrb[0].mxu0 %v167
    %v444 = vpop.f32.mrb[0].mxu0
    %v445 = vadd.f32 %v138, %v444
    %v446 = vpop.f32.mrb[0].mxu0
    %v447 = vadd.f32 %v142, %v446
    %448 = vmatprep.mubr.f32.mxu0 0.0
    %449 = vmatmul.mubr.f32.gmra.mrb[0].mxu0 %v170
    %v450 = vpop.f32.mrb[0].mxu0
    %v451 = vadd.f32 %v138, %v450
    %v452 = vpop.f32.mrb[0].mxu0
    %v453 = vadd.f32 %v142, %v452
    %454 = vmatprep.mubr.f32.mxu0 0.0
    %455 = vmatmul.mubr.f32.gmra.mrb[0].mxu0 %v173
    %v456 = vpop.f32.mrb[0].mxu0
    %v457 = vadd.f32 %v138, %v456
    %v458 = vpop.f32.mrb[0].mxu0
    %v459 = vadd.f32 %v142, %v458
    %460 = vmatprep.mubr.f32.mxu0 0.0
    %461 = vmatmul.mubr.f32.gmra.mrb[0].mxu0 %v176
    %v462 = vpop.f32.mrb[0].mxu0
    %v463 = vadd.f32 %v138, %v462
    %v464 = vpop.f32.mrb[0].mxu0
    %v465 = vadd.f32 %v142, %v464
    %466 = vmatprep.mubr.f32.mxu0 0.0
    %467 = vmatmul.mubr.f32.gmra.mrb[0].mxu0 %v179
    %v468 = vpop.f32.mrb[0].mxu0
    %v469 = vadd.f32 %v138, %v468
    %v470 = vpop.f32.mrb[0].mxu0
    %v471 = vadd.f32 %v142, %v470
    %472 = vmatprep.mubr.f32.mxu0 0.0
    %473 = vmatmul.mubr.f32.gmra.mrb[0].mxu0 %v182
    %v474 = vpop.f32.mrb[0].mxu0
    %v475 = vadd.f32 %v138, %v474
    %v476 = vpop.f32.mrb[0].mxu0
    %v477 = vadd.f32 %v142, %v476
    %478 = vmatprep.mubr.f32.mxu0 0.0
    %479 = vmatmul.mubr.f32.gmra.mrb[0].mxu0 %v185
    %v480 = vpop.f32.mrb[0].mxu0
    %v481 = vadd.f32 %v138, %v480
    %v482 = vpop.f32.mrb[0].mxu0
    %v483 = vadd.f32 %v142, %v482
    %484 = vmatprep.mubr.f32.mxu0 0.0
    %485 = vmatmul.mubr.f32.gmra.mrb[0].mxu0 %v188
    %v486 = vpop.f32.mrb[0].mxu0
    %v487 = vadd.f32 %v138, %v486
    %v488 = vpop.f32.mrb[0].mxu0
    %v489 = vadd.f32 %v142, %v488
    %490 = vmatprep.mubr.f32.mxu0 0.0
    %491 = vmatmul.mubr.f32.gmra.mrb[0].mxu0 %v191
    %v492 = vpop.f32.mrb[0].mxu0
    %v493 = vadd.f32 %v138, %v492
    %v494 = vpop.f32.mrb[0].mxu0
    %v495 = vadd.f32 %v142, %v494
    %496 = vmatprep.mubr.f32.mxu0 0.0
    %497 = vmatmul.mubr.f32.gmra.mrb[0].mxu0 %v194
    %v498 = vpop.f32.mrb[0].mxu0
    %v499 = vadd.f32 %v138, %v498
    %v500 = vpop.f32.mrb[0].mxu0
    %v501 = vadd.f32 %v142, %v500
    %502 = vmatprep.mubr.f32.mxu0 0.0
    %503 = vmatmul.mubr.f32.gmra.mrb[0].mxu0 %v197
    %v504 = vpop.f32.mrb[0].mxu0
    %v505 = vadd.f32 %v138, %v504
    %v506 = vpop.f32.mrb[0].mxu0
    %v507 = vadd.f32 %v142, %v506
    %508 = vmatprep.mubr.f32.mxu0 0.0
    %509 = vmatmul.mubr.f32.gmra.mrb[0].mxu0 %v200
    %v510 = vpop.f32.mrb[0].mxu0
    %v511 = vadd.f32 %v138, %v510
    %v512 = vpop.f32.mrb[0].mxu0
    %v513 = vadd.f32 %v142, %v512
    %514 = vmatprep.mubr.f32.mxu0 0.0
    %515 = vmatmul.mubr.f32.gmra.mrb[0].mxu0 %v203
    %v516 = vpop.f32.mrb[0].mxu0
    %v517 = vadd.f32 %v138, %v516
    %v518 = vpop.f32.mrb[0].mxu0
    %v519 = vadd.f32 %v142, %v518
    %520 = vmatprep.mubr.f32.mxu0 0.0
    %521 = vmatmul.mubr.f32.gmra.mrb[0].mxu0 %v206
    %v522 = vpop.f32.mrb[0].mxu0
    %v523 = vadd.f32 %v138, %v522
    %v524 = vpop.f32.mrb[0].mxu0
    %v525 = vadd.f32 %v142, %v524
    %526 = vmatprep.mubr.f32.mxu0 0.0
    %527 = vmatmul.mubr.f32.gmra.mrb[0].mxu0 %v209
    %v528 = vpop.f32.mrb[0].mxu0
    %v529 = vadd.f32 %v138, %v528
    %v530 = vpop.f32.mrb[0].mxu0
    %v531 = vadd.f32 %v142, %v530
    %532 = vdwg.mxu0
    %533 = vmatprep.subr.mxu0 %v95
    %534 = vmatpush1.msra.mxu0 %v94
    %535 = vmatprep.subr.mxu0 %v102
    %536 = vmatpush1.msra.mxu0 %v101
    %537 = vmatprep.subr.mxu0 %v109
    %538 = vmatpush1.msra.mxu0 %v108
    %539 = vmatprep.subr.mxu0 %v116
    %540 = vmatpush1.msra.mxu0 %v115
    %541 = vmatprep.subr.mxu0 %v123
    %542 = vmatpush1.msra.mxu0 %v122
    %543 = vmatprep.subr.mxu0 0.0
    %544 = vmatpush1.msra.mxu0 0.0
    %545 = vmatprep.subr.mxu0 0.0
    %546 = vmatpush1.msra.mxu0 0.0
    %547 = vmatprep.subr.mxu0 0.0
    %548 = vmatpush1.msra.mxu0 0.0
    %549 = vmatprep.subr.mxu0 0.0
    %550 = vmatpush1.msra.mxu0 0.0
    %551 = vmatprep.subr.mxu0 0.0
    %552 = vmatpush1.msra.mxu0 0.0
    %553 = vmatprep.subr.mxu0 0.0
    %554 = vmatpush1.msra.mxu0 0.0
    %555 = vmatprep.subr.mxu0 0.0
    %556 = vmatpush1.msra.mxu0 0.0
    %557 = vmatprep.subr.mxu0 0.0
    %558 = vmatpush1.msra.mxu0 0.0
    %559 = vmatprep.subr.mxu0 0.0
    %560 = vmatpush1.msra.mxu0 0.0
    %561 = vmatprep.subr.mxu0 0.0
    %562 = vmatpush1.msra.mxu0 0.0
    %563 = vmatprep.subr.mxu0 0.0
    %564 = vmatpush1.msra.mxu0 0.0
    %565 = vmatprep.subr.mxu0 0.0
    %566 = vmatpush1.msra.mxu0 0.0
    %567 = vmatprep.subr.mxu0 0.0
    %568 = vmatpush1.msra.mxu0 0.0
    %569 = vmatprep.subr.mxu0 0.0
    %570 = vmatpush1.msra.mxu0 0.0
    %571 = vmatprep.subr.mxu0 0.0
    %572 = vmatpush1.msra.mxu0 0.0
    %573 = vmatprep.subr.mxu0 0.0
    %574 = vmatpush1.msra.mxu0 0.0
    %575 = vmatprep.subr.mxu0 0.0
    %576 = vmatpush1.msra.mxu0 0.0
    %577 = vmatprep.subr.mxu0 0.0
    %578 = vmatpush1.msra.mxu0 0.0
    %579 = vmatprep.subr.mxu0 0.0
    %580 = vmatpush1.msra.mxu0 0.0
    %581 = vmatprep.subr.mxu0 0.0
    %582 = vmatpush1.msra.mxu0 0.0
    %583 = vmatprep.subr.mxu0 0.0
    %584 = vmatpush1.msra.mxu0 0.0
    %585 = vmatprep.subr.mxu0 0.0
    %586 = vmatpush1.msra.mxu0 0.0
    %587 = vmatprep.subr.mxu0 0.0
    %588 = vmatpush1.msra.mxu0 0.0
    %589 = vmatprep.subr.mxu0 0.0
    %590 = vmatpush1.msra.mxu0 0.0
    %591 = vmatprep.subr.mxu0 0.0
    %592 = vmatpush1.msra.mxu0 0.0
    %593 = vmatprep.subr.mxu0 0.0
    %594 = vmatpush1.msra.mxu0 0.0
    %595 = vmatprep.subr.mxu0 0.0
    %596 = vmatpush1.msra.mxu0 0.0
    %597 = vmatprep.mubr.f32.mxu0 0.0
    %598 = vmatmul.mubr.f32.gmra.mrb[0].mxu0 %v164
    %v599 = vpop.f32.mrb[0].mxu0
    %v600 = vadd.f32 %v146, %v599
    %v601 = vpop.f32.mrb[0].mxu0
    %v602 = vadd.f32 %v150, %v601
    %603 = vmatprep.mubr.f32.mxu0 0.0
    %604 = vmatmul.mubr.f32.gmra.mrb[0].mxu0 %v167
    %v605 = vpop.f32.mrb[0].mxu0
    %v606 = vadd.f32 %v146, %v605
    %v607 = vpop.f32.mrb[0].mxu0
    %v608 = vadd.f32 %v150, %v607
    %609 = vmatprep.mubr.f32.mxu0 0.0
    %610 = vmatmul.mubr.f32.gmra.mrb[0].mxu0 %v170
    %v611 = vpop.f32.mrb[0].mxu0
    %v612 = vadd.f32 %v146, %v611
    %v613 = vpop.f32.mrb[0].mxu0
    %v614 = vadd.f32 %v150, %v613
    %615 = vmatprep.mubr.f32.mxu0 0.0
    %616 = vmatmul.mubr.f32.gmra.mrb[0].mxu0 %v173
    %v617 = vpop.f32.mrb[0].mxu0
    %v618 = vadd.f32 %v146, %v617
    %v619 = vpop.f32.mrb[0].mxu0
    %v620 = vadd.f32 %v150, %v619
    %621 = vmatprep.mubr.f32.mxu0 0.0
    %622 = vmatmul.mubr.f32.gmra.mrb[0].mxu0 %v176
    %v623 = vpop.f32.mrb[0].mxu0
    %v624 = vadd.f32 %v146, %v623
    %v625 = vpop.f32.mrb[0].mxu0
    %v626 = vadd.f32 %v150, %v625
    %627 = vmatprep.mubr.f32.mxu0 0.0
    %628 = vmatmul.mubr.f32.gmra.mrb[0].mxu0 %v179
    %v629 = vpop.f32.mrb[0].mxu0
    %v630 = vadd.f32 %v146, %v629
    %v631 = vpop.f32.mrb[0].mxu0
    %v632 = vadd.f32 %v150, %v631
    %633 = vmatprep.mubr.f32.mxu0 0.0
    %634 = vmatmul.mubr.f32.gmra.mrb[0].mxu0 %v182
    %v635 = vpop.f32.mrb[0].mxu0
    %v636 = vadd.f32 %v146, %v635
    %v637 = vpop.f32.mrb[0].mxu0
    %v638 = vadd.f32 %v150, %v637
    %639 = vmatprep.mubr.f32.mxu0 0.0
    %640 = vmatmul.mubr.f32.gmra.mrb[0].mxu0 %v185
    %v641 = vpop.f32.mrb[0].mxu0
    %v642 = vadd.f32 %v146, %v641
    %v643 = vpop.f32.mrb[0].mxu0
    %v644 = vadd.f32 %v150, %v643
    %645 = vmatprep.mubr.f32.mxu0 0.0
    %646 = vmatmul.mubr.f32.gmra.mrb[0].mxu0 %v188
    %v647 = vpop.f32.mrb[0].mxu0
    %v648 = vadd.f32 %v146, %v647
    %v649 = vpop.f32.mrb[0].mxu0
    %v650 = vadd.f32 %v150, %v649
    %651 = vmatprep.mubr.f32.mxu0 0.0
    %652 = vmatmul.mubr.f32.gmra.mrb[0].mxu0 %v191
    %v653 = vpop.f32.mrb[0].mxu0
    %v654 = vadd.f32 %v146, %v653
    %v655 = vpop.f32.mrb[0].mxu0
    %v656 = vadd.f32 %v150, %v655
    %657 = vmatprep.mubr.f32.mxu0 0.0
    %658 = vmatmul.mubr.f32.gmra.mrb[0].mxu0 %v194
    %v659 = vpop.f32.mrb[0].mxu0
    %v660 = vadd.f32 %v146, %v659
    %v661 = vpop.f32.mrb[0].mxu0
    %v662 = vadd.f32 %v150, %v661
    %663 = vmatprep.mubr.f32.mxu0 0.0
    %664 = vmatmul.mubr.f32.gmra.mrb[0].mxu0 %v197
    %v665 = vpop.f32.mrb[0].mxu0
    %v666 = vadd.f32 %v146, %v665
    %v667 = vpop.f32.mrb[0].mxu0
    %v668 = vadd.f32 %v150, %v667
    %669 = vmatprep.mubr.f32.mxu0 0.0
    %670 = vmatmul.mubr.f32.gmra.mrb[0].mxu0 %v200
    %v671 = vpop.f32.mrb[0].mxu0
    %v672 = vadd.f32 %v146, %v671
    %v673 = vpop.f32.mrb[0].mxu0
    %v674 = vadd.f32 %v150, %v673
    %675 = vmatprep.mubr.f32.mxu0 0.0
    %676 = vmatmul.mubr.f32.gmra.mrb[0].mxu0 %v203
    %v677 = vpop.f32.mrb[0].mxu0
    %v678 = vadd.f32 %v146, %v677
    %v679 = vpop.f32.mrb[0].mxu0
    %v680 = vadd.f32 %v150, %v679
    %681 = vmatprep.mubr.f32.mxu0 0.0
    %682 = vmatmul.mubr.f32.gmra.mrb[0].mxu0 %v206
    %v683 = vpop.f32.mrb[0].mxu0
    %v684 = vadd.f32 %v146, %v683
    %v685 = vpop.f32.mrb[0].mxu0
    %v686 = vadd.f32 %v150, %v685
    %687 = vmatprep.mubr.f32.mxu0 0.0
    %688 = vmatmul.mubr.f32.gmra.mrb[0].mxu0 %v209
    %v689 = vpop.f32.mrb[0].mxu0
    %v690 = vadd.f32 %v146, %v689
    %v691 = vpop.f32.mrb[0].mxu0
    %v692 = vadd.f32 %v150, %v691
    %693 = vdwg.mxu0
    %694 = vmatprep.subr.mxu0 0.0
    %695 = vmatpush1.msra.mxu0 %v96
    %696 = vmatprep.subr.mxu0 0.0
    %697 = vmatpush1.msra.mxu0 %v103
    %698 = vmatprep.subr.mxu0 0.0
    %699 = vmatpush1.msra.mxu0 %v110
    %700 = vmatprep.subr.mxu0 0.0
    %701 = vmatpush1.msra.mxu0 %v117
    %702 = vmatprep.subr.mxu0 0.0
    %703 = vmatpush1.msra.mxu0 %v124
    %704 = vmatprep.subr.mxu0 0.0
    %705 = vmatpush1.msra.mxu0 0.0
    %706 = vmatprep.subr.mxu0 0.0
    %707 = vmatpush1.msra.mxu0 0.0
    %708 = vmatprep.subr.mxu0 0.0
    %709 = vmatpush1.msra.mxu0 0.0
    %710 = vmatprep.subr.mxu0 0.0
    %711 = vmatpush1.msra.mxu0 0.0
    %712 = vmatprep.subr.mxu0 0.0
    %713 = vmatpush1.msra.mxu0 0.0
    %714 = vmatprep.subr.mxu0 0.0
    %715 = vmatpush1.msra.mxu0 0.0
    %716 = vmatprep.subr.mxu0 0.0
    %717 = vmatpush1.msra.mxu0 0.0
    %718 = vmatprep.subr.mxu0 0.0
    %719 = vmatpush1.msra.mxu0 0.0
    %720 = vmatprep.subr.mxu0 0.0
    %721 = vmatpush1.msra.mxu0 0.0
    %722 = vmatprep.subr.mxu0 0.0
    %723 = vmatpush1.msra.mxu0 0.0
    %724 = vmatprep.subr.mxu0 0.0
    %725 = vmatpush1.msra.mxu0 0.0
    %726 = vmatprep.subr.mxu0 0.0
    %727 = vmatpush1.msra.mxu0 0.0
    %728 = vmatprep.subr.mxu0 0.0
    %729 = vmatpush1.msra.mxu0 0.0
    %730 = vmatprep.subr.mxu0 0.0
    %731 = vmatpush1.msra.mxu0 0.0
    %732 = vmatprep.subr.mxu0 0.0
    %733 = vmatpush1.msra.mxu0 0.0
    %734 = vmatprep.subr.mxu0 0.0
    %735 = vmatpush1.msra.mxu0 0.0
    %736 = vmatprep.subr.mxu0 0.0
    %737 = vmatpush1.msra.mxu0 0.0
    %738 = vmatprep.subr.mxu0 0.0
    %739 = vmatpush1.msra.mxu0 0.0
    %740 = vmatprep.subr.mxu0 0.0
    %741 = vmatpush1.msra.mxu0 0.0
    %742 = vmatprep.subr.mxu0 0.0
    %743 = vmatpush1.msra.mxu0 0.0
    %744 = vmatprep.subr.mxu0 0.0
    %745 = vmatpush1.msra.mxu0 0.0
    %746 = vmatprep.subr.mxu0 0.0
    %747 = vmatpush1.msra.mxu0 0.0
    %748 = vmatprep.subr.mxu0 0.0
    %749 = vmatpush1.msra.mxu0 0.0
    %750 = vmatprep.subr.mxu0 0.0
    %751 = vmatpush1.msra.mxu0 0.0
    %752 = vmatprep.subr.mxu0 0.0
    %753 = vmatpush1.msra.mxu0 0.0
    %754 = vmatprep.subr.mxu0 0.0
    %755 = vmatpush1.msra.mxu0 0.0
    %756 = vmatprep.subr.mxu0 0.0
    %757 = vmatpush1.msra.mxu0 0.0
    %758 = vmatprep.mubr.f32.mxu0 0.0
    %759 = vmatmul.mubr.f32.gmra.mrb[0].mxu0 %v164
    %v760 = vpop.f32.mrb[0].mxu0
    %v761 = vadd.f32 %v154, %v760
    %v762 = vpop.f32.mrb[0].mxu0
    %763 = vmatprep.mubr.f32.mxu0 0.0
    %764 = vmatmul.mubr.f32.gmra.mrb[0].mxu0 %v167
    %v765 = vpop.f32.mrb[0].mxu0
    %v766 = vadd.f32 %v154, %v765
    %v767 = vpop.f32.mrb[0].mxu0
    %768 = vmatprep.mubr.f32.mxu0 0.0
    %769 = vmatmul.mubr.f32.gmra.mrb[0].mxu0 %v170
    %v770 = vpop.f32.mrb[0].mxu0
    %v771 = vadd.f32 %v154, %v770
    %v772 = vpop.f32.mrb[0].mxu0
    %773 = vmatprep.mubr.f32.mxu0 0.0
    %774 = vmatmul.mubr.f32.gmra.mrb[0].mxu0 %v173
    %v775 = vpop.f32.mrb[0].mxu0
    %v776 = vadd.f32 %v154, %v775
    %v777 = vpop.f32.mrb[0].mxu0
    %778 = vmatprep.mubr.f32.mxu0 0.0
    %779 = vmatmul.mubr.f32.gmra.mrb[0].mxu0 %v176
    %v780 = vpop.f32.mrb[0].mxu0
    %v781 = vadd.f32 %v154, %v780
    %v782 = vpop.f32.mrb[0].mxu0
    %783 = vmatprep.mubr.f32.mxu0 0.0
    %784 = vmatmul.mubr.f32.gmra.mrb[0].mxu0 %v179
    %v785 = vpop.f32.mrb[0].mxu0
    %v786 = vadd.f32 %v154, %v785
    %v787 = vpop.f32.mrb[0].mxu0
    %788 = vmatprep.mubr.f32.mxu0 0.0
    %789 = vmatmul.mubr.f32.gmra.mrb[0].mxu0 %v182
    %v790 = vpop.f32.mrb[0].mxu0
    %v791 = vadd.f32 %v154, %v790
    %v792 = vpop.f32.mrb[0].mxu0
    %793 = vmatprep.mubr.f32.mxu0 0.0
    %794 = vmatmul.mubr.f32.gmra.mrb[0].mxu0 %v185
    %v795 = vpop.f32.mrb[0].mxu0
    %v796 = vadd.f32 %v154, %v795
    %v797 = vpop.f32.mrb[0].mxu0
    %798 = vmatprep.mubr.f32.mxu0 0.0
    %799 = vmatmul.mubr.f32.gmra.mrb[0].mxu0 %v188
    %v800 = vpop.f32.mrb[0].mxu0
    %v801 = vadd.f32 %v154, %v800
    %v802 = vpop.f32.mrb[0].mxu0
    %803 = vmatprep.mubr.f32.mxu0 0.0
    %804 = vmatmul.mubr.f32.gmra.mrb[0].mxu0 %v191
    %v805 = vpop.f32.mrb[0].mxu0
    %v806 = vadd.f32 %v154, %v805
    %v807 = vpop.f32.mrb[0].mxu0
    %808 = vmatprep.mubr.f32.mxu0 0.0
    %809 = vmatmul.mubr.f32.gmra.mrb[0].mxu0 %v194
    %v810 = vpop.f32.mrb[0].mxu0
    %v811 = vadd.f32 %v154, %v810
    %v812 = vpop.f32.mrb[0].mxu0
    %813 = vmatprep.mubr.f32.mxu0 0.0
    %814 = vmatmul.mubr.f32.gmra.mrb[0].mxu0 %v197
    %v815 = vpop.f32.mrb[0].mxu0
    %v816 = vadd.f32 %v154, %v815
    %v817 = vpop.f32.mrb[0].mxu0
    %818 = vmatprep.mubr.f32.mxu0 0.0
    %819 = vmatmul.mubr.f32.gmra.mrb[0].mxu0 %v200
    %v820 = vpop.f32.mrb[0].mxu0
    %v821 = vadd.f32 %v154, %v820
    %v822 = vpop.f32.mrb[0].mxu0
    %823 = vmatprep.mubr.f32.mxu0 0.0
    %824 = vmatmul.mubr.f32.gmra.mrb[0].mxu0 %v203
    %v825 = vpop.f32.mrb[0].mxu0
    %v826 = vadd.f32 %v154, %v825
    %v827 = vpop.f32.mrb[0].mxu0
    %828 = vmatprep.mubr.f32.mxu0 0.0
    %829 = vmatmul.mubr.f32.gmra.mrb[0].mxu0 %v206
    %v830 = vpop.f32.mrb[0].mxu0
    %v831 = vadd.f32 %v154, %v830
    %v832 = vpop.f32.mrb[0].mxu0
    %833 = vmatprep.mubr.f32.mxu0 0.0
    %834 = vmatmul.mubr.f32.gmra.mrb[0].mxu0 %v209
    %v835 = vpop.f32.mrb[0].mxu0
    %v836 = vadd.f32 %v154, %v835
    %v837 = vpop.f32.mrb[0].mxu0
    %838 = vdwg.mxu0
    %839 = vst [vmem:[#allocation2] sm:$0xff] %v278
    %840 = vst [vmem:[#allocation2 + $0x8] sm:$0xff] %v280
    %841 = vst [vmem:[#allocation2 + $0x10] sm:$0xff] %v439
    %842 = vst [vmem:[#allocation2 + $0x18] sm:$0xff] %v441
    %843 = vst [vmem:[#allocation2 + $0x20] sm:$0xff] %v600
    %844 = vst [vmem:[#allocation2 + $0x28] sm:$0xff] %v602
    %845 = vst [vmem:[#allocation2 + $0x30] sm:$0xff] %v761
    %846 = vst [vmem:[#allocation2 + $0x38] sm:$0xff] %v284
    %847 = vst [vmem:[#allocation2 + $0x40] sm:$0xff] %v286
    %848 = vst [vmem:[#allocation2 + $0x48] sm:$0xff] %v445
    %849 = vst [vmem:[#allocation2 + $0x50] sm:$0xff] %v447
    %850 = vst [vmem:[#allocation2 + $0x58] sm:$0xff] %v606
    %851 = vst [vmem:[#allocation2 + $0x60] sm:$0xff] %v608
    %852 = vst [vmem:[#allocation2 + $0x68] sm:$0xff] %v766
    %853 = vst [vmem:[#allocation2 + $0x70] sm:$0xff] %v290
    %854 = vst [vmem:[#allocation2 + $0x78] sm:$0xff] %v292
    %855 = vst [vmem:[#allocation2 + $0x80] sm:$0xff] %v451
    %856 = vst [vmem:[#allocation2 + $0x88] sm:$0xff] %v453
    %857 = vst [vmem:[#allocation2 + $0x90] sm:$0xff] %v612
    %858 = vst [vmem:[#allocation2 + $0x98] sm:$0xff] %v614
    %859 = vst [vmem:[#allocation2 + $0xa0] sm:$0xff] %v771
    %860 = vst [vmem:[#allocation2 + $0xa8] sm:$0xff] %v296
    %861 = vst [vmem:[#allocation2 + $0xb0] sm:$0xff] %v298
    %862 = vst [vmem:[#allocation2 + $0xb8] sm:$0xff] %v457
    %863 = vst [vmem:[#allocation2 + $0xc0] sm:$0xff] %v459
    %864 = vst [vmem:[#allocation2 + $0xc8] sm:$0xff] %v618
    %865 = vst [vmem:[#allocation2 + $0xd0] sm:$0xff] %v620
    %866 = vst [vmem:[#allocation2 + $0xd8] sm:$0xff] %v776
    %867 = vst [vmem:[#allocation2 + $0xe0] sm:$0xff] %v302
    %868 = vst [vmem:[#allocation2 + $0xe8] sm:$0xff] %v304
    %869 = vst [vmem:[#allocation2 + $0xf0] sm:$0xff] %v463
    %870 = vst [vmem:[#allocation2 + $0xf8] sm:$0xff] %v465
    %871 = vst [vmem:[#allocation2 + $0x100] sm:$0xff] %v624
    %872 = vst [vmem:[#allocation2 + $0x108] sm:$0xff] %v626
    %873 = vst [vmem:[#allocation2 + $0x110] sm:$0xff] %v781
    %874 = vst [vmem:[#allocation2 + $0x118] sm:$0xff] %v308
    %875 = vst [vmem:[#allocation2 + $0x120] sm:$0xff] %v310
    %876 = vst [vmem:[#allocation2 + $0x128] sm:$0xff] %v469
    %877 = vst [vmem:[#allocation2 + $0x130] sm:$0xff] %v471
    %878 = vst [vmem:[#allocation2 + $0x138] sm:$0xff] %v630
    %879 = vst [vmem:[#allocation2 + $0x140] sm:$0xff] %v632
    %880 = vst [vmem:[#allocation2 + $0x148] sm:$0xff] %v786
    %881 = vst [vmem:[#allocation2 + $0x150] sm:$0xff] %v314
    %882 = vst [vmem:[#allocation2 + $0x158] sm:$0xff] %v316
    %883 = vst [vmem:[#allocation2 + $0x160] sm:$0xff] %v475
    %884 = vst [vmem:[#allocation2 + $0x168] sm:$0xff] %v477
    %885 = vst [vmem:[#allocation2 + $0x170] sm:$0xff] %v636
    %886 = vst [vmem:[#allocation2 + $0x178] sm:$0xff] %v638
    %887 = vst [vmem:[#allocation2 + $0x180] sm:$0xff] %v791
    %888 = vst [vmem:[#allocation2 + $0x188] sm:$0xff] %v320
    %889 = vst [vmem:[#allocation2 + $0x190] sm:$0xff] %v322
    %890 = vst [vmem:[#allocation2 + $0x198] sm:$0xff] %v481
    %891 = vst [vmem:[#allocation2 + $0x1a0] sm:$0xff] %v483
    %892 = vst [vmem:[#allocation2 + $0x1a8] sm:$0xff] %v642
    %893 = vst [vmem:[#allocation2 + $0x1b0] sm:$0xff] %v644
    %894 = vst [vmem:[#allocation2 + $0x1b8] sm:$0xff] %v796
    %895 = vst [vmem:[#allocation2 + $0x1c0] sm:$0xff] %v326
    %896 = vst [vmem:[#allocation2 + $0x1c8] sm:$0xff] %v328
    %897 = vst [vmem:[#allocation2 + $0x1d0] sm:$0xff] %v487
    %898 = vst [vmem:[#allocation2 + $0x1d8] sm:$0xff] %v489
    %899 = vst [vmem:[#allocation2 + $0x1e0] sm:$0xff] %v648
    %900 = vst [vmem:[#allocation2 + $0x1e8] sm:$0xff] %v650
    %901 = vst [vmem:[#allocation2 + $0x1f0] sm:$0xff] %v801
    %902 = vst [vmem:[#allocation2 + $0x1f8] sm:$0xff] %v332
    %903 = vst [vmem:[#allocation2 + $0x200] sm:$0xff] %v334
    %904 = vst [vmem:[#allocation2 + $0x208] sm:$0xff] %v493
    %905 = vst [vmem:[#allocation2 + $0x210] sm:$0xff] %v495
    %906 = vst [vmem:[#allocation2 + $0x218] sm:$0xff] %v654
    %907 = vst [vmem:[#allocation2 + $0x220] sm:$0xff] %v656
    %908 = vst [vmem:[#allocation2 + $0x228] sm:$0xff] %v806
    %909 = vst [vmem:[#allocation2 + $0x230] sm:$0xff] %v338
    %910 = vst [vmem:[#allocation2 + $0x238] sm:$0xff] %v340
    %911 = vst [vmem:[#allocation2 + $0x240] sm:$0xff] %v499
    %912 = vst [vmem:[#allocation2 + $0x248] sm:$0xff] %v501
    %913 = vst [vmem:[#allocation2 + $0x250] sm:$0xff] %v660
    %914 = vst [vmem:[#allocation2 + $0x258] sm:$0xff] %v662
    %915 = vst [vmem:[#allocation2 + $0x260] sm:$0xff] %v811
    %916 = vst [vmem:[#allocation2 + $0x268] sm:$0xff] %v344
    %917 = vst [vmem:[#allocation2 + $0x270] sm:$0xff] %v346
    %918 = vst [vmem:[#allocation2 + $0x278] sm:$0xff] %v505
    %919 = vst [vmem:[#allocation2 + $0x280] sm:$0xff] %v507
    %920 = vst [vmem:[#allocation2 + $0x288] sm:$0xff] %v666
    %921 = vst [vmem:[#allocation2 + $0x290] sm:$0xff] %v668
    %922 = vst [vmem:[#allocation2 + $0x298] sm:$0xff] %v816
    %923 = vst [vmem:[#allocation2 + $0x2a0] sm:$0xff] %v350
    %924 = vst [vmem:[#allocation2 + $0x2a8] sm:$0xff] %v352
    %925 = vst [vmem:[#allocation2 + $0x2b0] sm:$0xff] %v511
    %926 = vst [vmem:[#allocation2 + $0x2b8] sm:$0xff] %v513
    %927 = vst [vmem:[#allocation2 + $0x2c0] sm:$0xff] %v672
    %928 = vst [vmem:[#allocation2 + $0x2c8] sm:$0xff] %v674
    %929 = vst [vmem:[#allocation2 + $0x2d0] sm:$0xff] %v821
    %930 = vst [vmem:[#allocation2 + $0x2d8] sm:$0xff] %v356
    %931 = vst [vmem:[#allocation2 + $0x2e0] sm:$0xff] %v358
    %932 = vst [vmem:[#allocation2 + $0x2e8] sm:$0xff] %v517
    %933 = vst [vmem:[#allocation2 + $0x2f0] sm:$0xff] %v519
    %934 = vst [vmem:[#allocation2 + $0x2f8] sm:$0xff] %v678
    %935 = vst [vmem:[#allocation2 + $0x300] sm:$0xff] %v680
    %936 = vst [vmem:[#allocation2 + $0x308] sm:$0xff] %v826
    %937 = vst [vmem:[#allocation2 + $0x310] sm:$0xff] %v362
    %938 = vst [vmem:[#allocation2 + $0x318] sm:$0xff] %v364
    %939 = vst [vmem:[#allocation2 + $0x320] sm:$0xff] %v523
    %940 = vst [vmem:[#allocation2 + $0x328] sm:$0xff] %v525
    %941 = vst [vmem:[#allocation2 + $0x330] sm:$0xff] %v684
    %942 = vst [vmem:[#allocation2 + $0x338] sm:$0xff] %v686
    %943 = vst [vmem:[#allocation2 + $0x340] sm:$0xff] %v831
    %944 = vst [vmem:[#allocation2 + $0x348] sm:$0xff] %v368
    %945 = vst [vmem:[#allocation2 + $0x350] sm:$0xff] %v370
    %946 = vst [vmem:[#allocation2 + $0x358] sm:$0xff] %v529
    %947 = vst [vmem:[#allocation2 + $0x360] sm:$0xff] %v531
    %948 = vst [vmem:[#allocation2 + $0x368] sm:$0xff] %v690
    %949 = vst [vmem:[#allocation2 + $0x370] sm:$0xff] %v692
    %950 = vst [vmem:[#allocation2 + $0x378] sm:$0xff] %v836
    %v951 = vld [vmem:[#allocation2] sm:$0xff]
    %v952 = vld [vmem:[#allocation2 + $0x10] sm:$0xff]
    %v953 = vld [vmem:[#allocation2 + $0x18] sm:$0xff]
    %v954 = vld [vmem:[#allocation2 + $0x38] sm:$0xff]
    %v955 = vld [vmem:[#allocation2 + $0x48] sm:$0xff]
    %v956 = vld [vmem:[#allocation2 + $0x50] sm:$0xff]
    %v957 = vxor.u32 %v951, 2147483648
    %v958 = vxor.u32 %v952, 2147483648
    %v959 = vxor.u32 %v954, 2147483648
    %v960 = vxor.u32 %v955, 2147483648
    %v961 = vmul.f32 %v957, 1.442695
    %v962 = vpow.pop %v961
    %v963 = vmul.f32 %v958, 1.442695
    %v964 = vpow.pop %v963
    %v965 = vmul.f32 %v959, 1.442695
    %v966 = vpow.pop %v965
    %v967 = vmul.f32 %v960, 1.442695
    %v968 = vpow.pop %v967
    %v969 = vadd.f32 %v962, 1.0
    %v970 = vadd.f32 %v964, 1.0
    %v971 = vadd.f32 %v966, 1.0
    %v972 = vadd.f32 %v968, 1.0
    %v973 = vrcp.pop %v969
    %v974 = vmul.f32 1.0, %v973
    %v975 = vrcp.pop %v970
    %v976 = vmul.f32 1.0, %v975
    %v977 = vrcp.pop %v971
    %v978 = vmul.f32 1.0, %v977
    %v979 = vrcp.pop %v972
    %v980 = vmul.f32 1.0, %v979
    %v981 = vtanh.pop %v953
    %v982 = vtanh.pop %v956
    %v983 = vmul.f32 %v974, %v981
    %v984 = vmul.f32 %v978, %v982
    %v985 = vtanh.pop %v983
    %v986 = vtanh.pop %v984
    %v987 = vmul.f32 %v976, %v985
    %v988 = vmul.f32 %v980, %v986
    %s989 = scalar_lea.vmem [#allocation2], 112
    %v990 = vld [vmem:[%s989] sm:$0xff]
    %v991 = vld [vmem:[%s989 + $0x8] sm:$0xff]
    %v992 = vld [vmem:[%s989 + $0x10] sm:$0xff]
    %v993 = vld [vmem:[%s989 + $0x18] sm:$0xff]
    %v994 = vld [vmem:[%s989 + $0x38] sm:$0xff]
    %v995 = vld [vmem:[%s989 + $0x40] sm:$0xff]
    %v996 = vld [vmem:[%s989 + $0x48] sm:$0xff]
    %v997 = vld [vmem:[%s989 + $0x50] sm:$0xff]
    %v998 = vld [vmem:[#allocation6] sm:$0xff]
    %v999 = vld [vmem:[#allocation6 + $0x8] sm:$0xff]
    %v1000 = vld [vmem:[#allocation6 + $0x10] sm:$0xff]
    %v1001 = vld [vmem:[#allocation6 + $0x18] sm:$0xff]
    %v1002 = vld [vmem:[#allocation6 + $0x20] sm:$0xff]
    %v1003 = vld [vmem:[#allocation6 + $0x28] sm:$0xff]
    %v1004 = vld [vmem:[#allocation6 + $0x30] sm:$0xff]
    %v1005 = vld [vmem:[#allocation6 + $0x38] sm:$0xff]
    %v1006 = vld [vmem:[#allocation6 + $0x40] sm:$0xff]
    %v1007 = vld [vmem:[#allocation6 + $0x48] sm:$0xff]
    %v1008 = vld [vmem:[#allocation6 + $0x50] sm:$0xff]
    %v1009 = vld [vmem:[#allocation6 + $0x58] sm:$0xff]
    %v1010 = vld [vmem:[#allocation6 + $0x60] sm:$0xff]
    %v1011 = vld [vmem:[#allocation6 + $0x68] sm:$0xff]
    %v1012 = vld [vmem:[#allocation6 + $0x70] sm:$0xff]
    %v1013 = vld [vmem:[#allocation6 + $0x78] sm:$0xff]
    %v1014 = vld [vmem:[#allocation6 + $0x80] sm:$0xff]
    %v1015 = vld [vmem:[#allocation6 + $0x88] sm:$0xff]
    %v1016 = vld [vmem:[#allocation6 + $0x90] sm:$0xff]
    %v1017 = vld [vmem:[#allocation6 + $0x98] sm:$0xff]
    %v1018 = vld [vmem:[#allocation6 + $0xa0] sm:$0xff]
    %v1019 = vld [vmem:[#allocation6 + $0xa8] sm:$0xff]
    %v1020 = vld [vmem:[#allocation6 + $0xb0] sm:$0xff]
    %v1021 = vld [vmem:[#allocation6 + $0xb8] sm:$0xff]
    %v1022 = vld [vmem:[#allocation6 + $0xc0] sm:$0xff]
    %v1023 = vld [vmem:[#allocation6 + $0xc8] sm:$0xff]
    %v1024 = vld [vmem:[#allocation6 + $0xd0] sm:$0xff]
    %v1025 = vld [vmem:[#allocation6 + $0xd8] sm:$0xff]
    %v1026 = vld [vmem:[#allocation6 + $0xe0] sm:$0xff]
    %v1027 = vld [vmem:[#allocation6 + $0xe8] sm:$0xff]
    %v1028 = vld [vmem:[#allocation6 + $0xf0] sm:$0xff]
    %v1029 = vld [vmem:[#allocation6 + $0xf8] sm:$0xff]
    %v1030 = vld [vmem:[#allocation6 + $0x100] sm:$0xff]
    %v1031 = vld [vmem:[#allocation6 + $0x108] sm:$0xff]
    %v1032 = vld [vmem:[#allocation6 + $0x110] sm:$0xff]
    %v1033 = vld [vmem:[#allocation6 + $0x118] sm:$0xff]
    %v1034 = vld [vmem:[#allocation6 + $0x120] sm:$0xff]
    %v1035 = vld [vmem:[#allocation6 + $0x128] sm:$0xff]
    %v1036 = vld [vmem:[#allocation6 + $0x130] sm:$0xff]
    %v1037 = vld [vmem:[#allocation6 + $0x138] sm:$0xff]
    %v1038 = vld [vmem:[#allocation6 + $0x140] sm:$0xff]
    %v1039 = vld [vmem:[#allocation6 + $0x148] sm:$0xff]
    %v1040 = vld [vmem:[#allocation6 + $0x150] sm:$0xff]
    %v1041 = vld [vmem:[#allocation6 + $0x158] sm:$0xff]
    %v1042 = vld [vmem:[#allocation6 + $0x160] sm:$0xff]
    %v1043 = vld [vmem:[#allocation6 + $0x168] sm:$0xff]
    %v1044 = vld [vmem:[#allocation6 + $0x170] sm:$0xff]
    %v1045 = vld [vmem:[#allocation6 + $0x178] sm:$0xff]
    %v1046 = vld [vmem:[#allocation6 + $0x180] sm:$0xff]
    %v1047 = vld [vmem:[#allocation6 + $0x188] sm:$0xff]
    %v1048 = vld [vmem:[#allocation6 + $0x190] sm:$0xff]
    %v1049 = vld [vmem:[#allocation6 + $0x198] sm:$0xff]
    %v1050 = vld [vmem:[#allocation6 + $0x1a0] sm:$0xff]
    %v1051 = vld [vmem:[#allocation6 + $0x1a8] sm:$0xff]
    %v1052 = vld [vmem:[#allocation6 + $0x1b0] sm:$0xff]
    %v1053 = vld [vmem:[#allocation6 + $0x1b8] sm:$0xff]
    %v1054 = vld [vmem:[#allocation6 + $0x1c0] sm:$0xff]
    %v1055 = vld [vmem:[#allocation6 + $0x1c8] sm:$0xff]
    %v1056 = vld [vmem:[#allocation6 + $0x1d0] sm:$0xff]
    %v1057 = vld [vmem:[#allocation6 + $0x1d8] sm:$0xff]
    %v1058 = vld [vmem:[#allocation6 + $0x1e0] sm:$0xff]
    %v1059 = vld [vmem:[#allocation6 + $0x1e8] sm:$0xff]
    %v1060 = vld [vmem:[#allocation6 + $0x1f0] sm:$0xff]
    %v1061 = vld [vmem:[#allocation6 + $0x1f8] sm:$0xff]
    %1062 = vmatprep.subr.mxu0 %v999
    %1063 = vmatpush1.msra.mxu0 %v998
    %1064 = vmatprep.subr.mxu0 %v1003
    %1065 = vmatpush1.msra.mxu0 %v1002
    %1066 = vmatprep.subr.mxu0 %v1007
    %1067 = vmatpush1.msra.mxu0 %v1006
    %1068 = vmatprep.subr.mxu0 %v1011
    %1069 = vmatpush1.msra.mxu0 %v1010
    %1070 = vmatprep.subr.mxu0 %v1015
    %1071 = vmatpush1.msra.mxu0 %v1014
    %1072 = vmatprep.subr.mxu0 %v1019
    %1073 = vmatpush1.msra.mxu0 %v1018
    %1074 = vmatprep.subr.mxu0 %v1023
    %1075 = vmatpush1.msra.mxu0 %v1022
    %1076 = vmatprep.subr.mxu0 %v1027
    %1077 = vmatpush1.msra.mxu0 %v1026
    %1078 = vmatprep.subr.mxu0 %v1031
    %1079 = vmatpush1.msra.mxu0 %v1030
    %1080 = vmatprep.subr.mxu0 %v1035
    %1081 = vmatpush1.msra.mxu0 %v1034
    %1082 = vmatprep.subr.mxu0 %v1039
    %1083 = vmatpush1.msra.mxu0 %v1038
    %1084 = vmatprep.subr.mxu0 %v1043
    %1085 = vmatpush1.msra.mxu0 %v1042
    %1086 = vmatprep.subr.mxu0 %v1047
    %1087 = vmatpush1.msra.mxu0 %v1046
    %1088 = vmatprep.subr.mxu0 %v1051
    %1089 = vmatpush1.msra.mxu0 %v1050
    %1090 = vmatprep.subr.mxu0 %v1055
    %1091 = vmatpush1.msra.mxu0 %v1054
    %1092 = vmatprep.subr.mxu0 %v1059
    %1093 = vmatpush1.msra.mxu0 %v1058
    %1094 = vmatprep.subr.mxu0 0.0
    %1095 = vmatpush1.msra.mxu0 0.0
    %1096 = vmatprep.subr.mxu0 0.0
    %1097 = vmatpush1.msra.mxu0 0.0
    %1098 = vmatprep.subr.mxu0 0.0
    %1099 = vmatpush1.msra.mxu0 0.0
    %1100 = vmatprep.subr.mxu0 0.0
    %1101 = vmatpush1.msra.mxu0 0.0
    %1102 = vmatprep.subr.mxu0 0.0
    %1103 = vmatpush1.msra.mxu0 0.0
    %1104 = vmatprep.subr.mxu0 0.0
    %1105 = vmatpush1.msra.mxu0 0.0
    %1106 = vmatprep.subr.mxu0 0.0
    %1107 = vmatpush1.msra.mxu0 0.0
    %1108 = vmatprep.subr.mxu0 0.0
    %1109 = vmatpush1.msra.mxu0 0.0
    %1110 = vmatprep.subr.mxu0 0.0
    %1111 = vmatpush1.msra.mxu0 0.0
    %1112 = vmatprep.subr.mxu0 0.0
    %1113 = vmatpush1.msra.mxu0 0.0
    %1114 = vmatprep.subr.mxu0 0.0
    %1115 = vmatpush1.msra.mxu0 0.0
    %1116 = vmatprep.subr.mxu0 0.0
    %1117 = vmatpush1.msra.mxu0 0.0
    %1118 = vmatprep.subr.mxu0 0.0
    %1119 = vmatpush1.msra.mxu0 0.0
    %1120 = vmatprep.subr.mxu0 0.0
    %1121 = vmatpush1.msra.mxu0 0.0
    %1122 = vmatprep.subr.mxu0 0.0
    %1123 = vmatpush1.msra.mxu0 0.0
    %1124 = vmatprep.subr.mxu0 0.0
    %1125 = vmatpush1.msra.mxu0 0.0
    %1126 = vmatprep.mubr.f32.mxu0 0.0
    %1127 = vmatmul.mubr.f32.gmra.mrb[0].mxu0 %v987
    %v1128 = vpop.f32.mrb[0].mxu0
    %v1129 = vadd.f32 0.0, %v1128
    %v1130 = vpop.f32.mrb[0].mxu0
    %v1131 = vadd.f32 0.0, %v1130
    %1132 = vmatprep.mubr.f32.mxu0 0.0
    %1133 = vmatmul.mubr.f32.gmra.mrb[0].mxu0 %v988
    %v1134 = vpop.f32.mrb[0].mxu0
    %v1135 = vadd.f32 0.0, %v1134
    %v1136 = vpop.f32.mrb[0].mxu0
    %v1137 = vadd.f32 0.0, %v1136
    %1138 = vdwg.mxu0
    %1139 = vmatprep.subr.mxu0 %v1001
    %1140 = vmatpush1.msra.mxu0 %v1000
    %1141 = vmatprep.subr.mxu0 %v1005
    %1142 = vmatpush1.msra.mxu0 %v1004
    %1143 = vmatprep.subr.mxu0 %v1009
    %1144 = vmatpush1.msra.mxu0 %v1008
    %1145 = vmatprep.subr.mxu0 %v1013
    %1146 = vmatpush1.msra.mxu0 %v1012
    %1147 = vmatprep.subr.mxu0 %v1017
    %1148 = vmatpush1.msra.mxu0 %v1016
    %1149 = vmatprep.subr.mxu0 %v1021
    %1150 = vmatpush1.msra.mxu0 %v1020
    %1151 = vmatprep.subr.mxu0 %v1025
    %1152 = vmatpush1.msra.mxu0 %v1024
    %1153 = vmatprep.subr.mxu0 %v1029
    %1154 = vmatpush1.msra.mxu0 %v1028
    %1155 = vmatprep.subr.mxu0 %v1033
    %1156 = vmatpush1.msra.mxu0 %v1032
    %1157 = vmatprep.subr.mxu0 %v1037
    %1158 = vmatpush1.msra.mxu0 %v1036
    %1159 = vmatprep.subr.mxu0 %v1041
    %1160 = vmatpush1.msra.mxu0 %v1040
    %1161 = vmatprep.subr.mxu0 %v1045
    %1162 = vmatpush1.msra.mxu0 %v1044
    %1163 = vmatprep.subr.mxu0 %v1049
    %1164 = vmatpush1.msra.mxu0 %v1048
    %1165 = vmatprep.subr.mxu0 %v1053
    %1166 = vmatpush1.msra.mxu0 %v1052
    %1167 = vmatprep.subr.mxu0 %v1057
    %1168 = vmatpush1.msra.mxu0 %v1056
    %1169 = vmatprep.subr.mxu0 %v1061
    %1170 = vmatpush1.msra.mxu0 %v1060
    %1171 = vmatprep.subr.mxu0 0.0
    %1172 = vmatpush1.msra.mxu0 0.0
    %1173 = vmatprep.subr.mxu0 0.0
    %1174 = vmatpush1.msra.mxu0 0.0
    %1175 = vmatprep.subr.mxu0 0.0
    %1176 = vmatpush1.msra.mxu0 0.0
    %1177 = vmatprep.subr.mxu0 0.0
    %1178 = vmatpush1.msra.mxu0 0.0
    %1179 = vmatprep.subr.mxu0 0.0
    %1180 = vmatpush1.msra.mxu0 0.0
    %1181 = vmatprep.subr.mxu0 0.0
    %1182 = vmatpush1.msra.mxu0 0.0
    %1183 = vmatprep.subr.mxu0 0.0
    %1184 = vmatpush1.msra.mxu0 0.0
    %1185 = vmatprep.subr.mxu0 0.0
    %1186 = vmatpush1.msra.mxu0 0.0
    %1187 = vmatprep.subr.mxu0 0.0
    %1188 = vmatpush1.msra.mxu0 0.0
    %1189 = vmatprep.subr.mxu0 0.0
    %1190 = vmatpush1.msra.mxu0 0.0
    %1191 = vmatprep.subr.mxu0 0.0
    %1192 = vmatpush1.msra.mxu0 0.0
    %1193 = vmatprep.subr.mxu0 0.0
    %1194 = vmatpush1.msra.mxu0 0.0
    %1195 = vmatprep.subr.mxu0 0.0
    %1196 = vmatpush1.msra.mxu0 0.0
    %1197 = vmatprep.subr.mxu0 0.0
    %1198 = vmatpush1.msra.mxu0 0.0
    %1199 = vmatprep.subr.mxu0 0.0
    %1200 = vmatpush1.msra.mxu0 0.0
    %1201 = vmatprep.subr.mxu0 0.0
    %1202 = vmatpush1.msra.mxu0 0.0
    %1203 = vmatprep.mubr.f32.mxu0 0.0
    %1204 = vmatmul.mubr.f32.gmra.mrb[0].mxu0 %v987
    %v1205 = vpop.f32.mrb[0].mxu0
    %v1206 = vadd.f32 0.0, %v1205
    %v1207 = vpop.f32.mrb[0].mxu0
    %v1208 = vadd.f32 0.0, %v1207
    %1209 = vmatprep.mubr.f32.mxu0 0.0
    %1210 = vmatmul.mubr.f32.gmra.mrb[0].mxu0 %v988
    %v1211 = vpop.f32.mrb[0].mxu0
    %v1212 = vadd.f32 0.0, %v1211
    %v1213 = vpop.f32.mrb[0].mxu0
    %v1214 = vadd.f32 0.0, %v1213
    %1215 = vdwg.mxu0
    %v1216 = vadd.f32 %v990, %v1129
    %v1217 = vadd.f32 %v991, %v1131
    %v1218 = vadd.f32 %v992, %v1206
    %v1219 = vadd.f32 %v993, %v1208
    %v1220 = vadd.f32 %v994, %v1135
    %v1221 = vadd.f32 %v995, %v1137
    %v1222 = vadd.f32 %v996, %v1212
    %v1223 = vadd.f32 %v997, %v1214
    %v1224 = vxor.u32 %v1216, 2147483648
    %v1225 = vxor.u32 %v1217, 2147483648
    %v1226 = vxor.u32 %v1218, 2147483648
    %v1227 = vxor.u32 %v1220, 2147483648
    %v1228 = vxor.u32 %v1221, 2147483648
    %v1229 = vxor.u32 %v1222, 2147483648
    %v1230 = vmul.f32 %v1224, 1.442695
    %v1231 = vpow.pop %v1230
    %v1232 = vmul.f32 %v1225, 1.442695
    %v1233 = vpow.pop %v1232
    %v1234 = vmul.f32 %v1226, 1.442695
    %v1235 = vpow.pop %v1234
    %v1236 = vmul.f32 %v1227, 1.442695
    %v1237 = vpow.pop %v1236
    %v1238 = vmul.f32 %v1228, 1.442695
    %v1239 = vpow.pop %v1238
    %v1240 = vmul.f32 %v1229, 1.442695
    %v1241 = vpow.pop %v1240
    %v1242 = vadd.f32 %v1231, 1.0
    %v1243 = vadd.f32 %v1233, 1.0
    %v1244 = vadd.f32 %v1235, 1.0
    %v1245 = vadd.f32 %v1237, 1.0
    %v1246 = vadd.f32 %v1239, 1.0
    %v1247 = vadd.f32 %v1241, 1.0
    %v1248 = vrcp.pop %v1242
    %v1249 = vmul.f32 1.0, %v1248
    %v1250 = vrcp.pop %v1243
    %v1251 = vmul.f32 1.0, %v1250
    %v1252 = vrcp.pop %v1244
    %v1253 = vmul.f32 1.0, %v1252
    %v1254 = vrcp.pop %v1245
    %v1255 = vmul.f32 1.0, %v1254
    %v1256 = vrcp.pop %v1246
    %v1257 = vmul.f32 1.0, %v1256
    %v1258 = vrcp.pop %v1247
    %v1259 = vmul.f32 1.0, %v1258
    %v1260 = vtanh.pop %v1219
    %v1261 = vtanh.pop %v1223
    %v1262 = vmul.f32 %v1251, %v983
    %v1263 = vmul.f32 %v1257, %v984
    %v1264 = vmul.f32 %v1249, %v1260
    %v1265 = vmul.f32 %v1255, %v1261
    %v1266 = vadd.f32 %v1262, %v1264
    %v1267 = vadd.f32 %v1263, %v1265
    %v1268 = vtanh.pop %v1266
    %v1269 = vtanh.pop %v1267
    %v1270 = vmul.f32 %v1253, %v1268
    %v1271 = vmul.f32 %v1259, %v1269
    %s1272 = scalar_lea.vmem [#allocation2], 224
    %v1273 = vld [vmem:[%s1272] sm:$0xff]
    %v1274 = vld [vmem:[%s1272 + $0x8] sm:$0xff]
    %v1275 = vld [vmem:[%s1272 + $0x10] sm:$0xff]
    %v1276 = vld [vmem:[%s1272 + $0x18] sm:$0xff]
    %v1277 = vld [vmem:[%s1272 + $0x38] sm:$0xff]
    %v1278 = vld [vmem:[%s1272 + $0x40] sm:$0xff]
    %v1279 = vld [vmem:[%s1272 + $0x48] sm:$0xff]
    %v1280 = vld [vmem:[%s1272 + $0x50] sm:$0xff]
    %1281 = vmatprep.subr.mxu0 %v999
    %1282 = vmatpush1.msra.mxu0 %v998
    %1283 = vmatprep.subr.mxu0 %v1003
    %1284 = vmatpush1.msra.mxu0 %v1002
    %1285 = vmatprep.subr.mxu0 %v1007
    %1286 = vmatpush1.msra.mxu0 %v1006
    %1287 = vmatprep.subr.mxu0 %v1011
    %1288 = vmatpush1.msra.mxu0 %v1010
    %1289 = vmatprep.subr.mxu0 %v1015
    %1290 = vmatpush1.msra.mxu0 %v1014
    %1291 = vmatprep.subr.mxu0 %v1019
    %1292 = vmatpush1.msra.mxu0 %v1018
    %1293 = vmatprep.subr.mxu0 %v1023
    %1294 = vmatpush1.msra.mxu0 %v1022
    %1295 = vmatprep.subr.mxu0 %v1027
    %1296 = vmatpush1.msra.mxu0 %v1026
    %1297 = vmatprep.subr.mxu0 %v1031
    %1298 = vmatpush1.msra.mxu0 %v1030
    %1299 = vmatprep.subr.mxu0 %v1035
    %1300 = vmatpush1.msra.mxu0 %v1034
    %1301 = vmatprep.subr.mxu0 %v1039
    %1302 = vmatpush1.msra.mxu0 %v1038
    %1303 = vmatprep.subr.mxu0 %v1043
    %1304 = vmatpush1.msra.mxu0 %v1042
    %1305 = vmatprep.subr.mxu0 %v1047
    %1306 = vmatpush1.msra.mxu0 %v1046
    %1307 = vmatprep.subr.mxu0 %v1051
    %1308 = vmatpush1.msra.mxu0 %v1050
    %1309 = vmatprep.subr.mxu0 %v1055
    %1310 = vmatpush1.msra.mxu0 %v1054
    %1311 = vmatprep.subr.mxu0 %v1059
    %1312 = vmatpush1.msra.mxu0 %v1058
    %1313 = vmatprep.subr.mxu0 0.0
    %1314 = vmatpush1.msra.mxu0 0.0
    %1315 = vmatprep.subr.mxu0 0.0
    %1316 = vmatpush1.msra.mxu0 0.0
    %1317 = vmatprep.subr.mxu0 0.0
    %1318 = vmatpush1.msra.mxu0 0.0
    %1319 = vmatprep.subr.mxu0 0.0
    %1320 = vmatpush1.msra.mxu0 0.0
    %1321 = vmatprep.subr.mxu0 0.0
    %1322 = vmatpush1.msra.mxu0 0.0
    %1323 = vmatprep.subr.mxu0 0.0
    %1324 = vmatpush1.msra.mxu0 0.0
    %1325 = vmatprep.subr.mxu0 0.0
    %1326 = vmatpush1.msra.mxu0 0.0
    %1327 = vmatprep.subr.mxu0 0.0
    %1328 = vmatpush1.msra.mxu0 0.0
    %1329 = vmatprep.subr.mxu0 0.0
    %1330 = vmatpush1.msra.mxu0 0.0
    %1331 = vmatprep.subr.mxu0 0.0
    %1332 = vmatpush1.msra.mxu0 0.0
    %1333 = vmatprep.subr.mxu0 0.0
    %1334 = vmatpush1.msra.mxu0 0.0
    %1335 = vmatprep.subr.mxu0 0.0
    %1336 = vmatpush1.msra.mxu0 0.0
    %1337 = vmatprep.subr.mxu0 0.0
    %1338 = vmatpush1.msra.mxu0 0.0
    %1339 = vmatprep.subr.mxu0 0.0
    %1340 = vmatpush1.msra.mxu0 0.0
    %1341 = vmatprep.subr.mxu0 0.0
    %1342 = vmatpush1.msra.mxu0 0.0
    %1343 = vmatprep.subr.mxu0 0.0
    %1344 = vmatpush1.msra.mxu0 0.0
    %1345 = vmatprep.mubr.f32.mxu0 0.0
    %1346 = vmatmul.mubr.f32.gmra.mrb[0].mxu0 %v1270
    %v1347 = vpop.f32.mrb[0].mxu0
    %v1348 = vadd.f32 0.0, %v1347
    %v1349 = vpop.f32.mrb[0].mxu0
    %v1350 = vadd.f32 0.0, %v1349
    %1351 = vmatprep.mubr.f32.mxu0 0.0
    %1352 = vmatmul.mubr.f32.gmra.mrb[0].mxu0 %v1271
    %v1353 = vpop.f32.mrb[0].mxu0
    %v1354 = vadd.f32 0.0, %v1353
    %v1355 = vpop.f32.mrb[0].mxu0
    %v1356 = vadd.f32 0.0, %v1355
    %1357 = vdwg.mxu0
    %1358 = vmatprep.subr.mxu0 %v1001
    %1359 = vmatpush1.msra.mxu0 %v1000
    %1360 = vmatprep.subr.mxu0 %v1005
    %1361 = vmatpush1.msra.mxu0 %v1004
    %1362 = vmatprep.subr.mxu0 %v1009
    %1363 = vmatpush1.msra.mxu0 %v1008
    %1364 = vmatprep.subr.mxu0 %v1013
    %1365 = vmatpush1.msra.mxu0 %v1012
    %1366 = vmatprep.subr.mxu0 %v1017
    %1367 = vmatpush1.msra.mxu0 %v1016
    %1368 = vmatprep.subr.mxu0 %v1021
    %1369 = vmatpush1.msra.mxu0 %v1020
    %1370 = vmatprep.subr.mxu0 %v1025
    %1371 = vmatpush1.msra.mxu0 %v1024
    %1372 = vmatprep.subr.mxu0 %v1029
    %1373 = vmatpush1.msra.mxu0 %v1028
    %1374 = vmatprep.subr.mxu0 %v1033
    %1375 = vmatpush1.msra.mxu0 %v1032
    %1376 = vmatprep.subr.mxu0 %v1037
    %1377 = vmatpush1.msra.mxu0 %v1036
    %1378 = vmatprep.subr.mxu0 %v1041
    %1379 = vmatpush1.msra.mxu0 %v1040
    %1380 = vmatprep.subr.mxu0 %v1045
    %1381 = vmatpush1.msra.mxu0 %v1044
    %1382 = vmatprep.subr.mxu0 %v1049
    %1383 = vmatpush1.msra.mxu0 %v1048
    %1384 = vmatprep.subr.mxu0 %v1053
    %1385 = vmatpush1.msra.mxu0 %v1052
    %1386 = vmatprep.subr.mxu0 %v1057
    %1387 = vmatpush1.msra.mxu0 %v1056
    %1388 = vmatprep.subr.mxu0 %v1061
    %1389 = vmatpush1.msra.mxu0 %v1060
    %1390 = vmatprep.subr.mxu0 0.0
    %1391 = vmatpush1.msra.mxu0 0.0
    %1392 = vmatprep.subr.mxu0 0.0
    %1393 = vmatpush1.msra.mxu0 0.0
    %1394 = vmatprep.subr.mxu0 0.0
    %1395 = vmatpush1.msra.mxu0 0.0
    %1396 = vmatprep.subr.mxu0 0.0
    %1397 = vmatpush1.msra.mxu0 0.0
    %1398 = vmatprep.subr.mxu0 0.0
    %1399 = vmatpush1.msra.mxu0 0.0
    %1400 = vmatprep.subr.mxu0 0.0
    %1401 = vmatpush1.msra.mxu0 0.0
    %1402 = vmatprep.subr.mxu0 0.0
    %1403 = vmatpush1.msra.mxu0 0.0
    %1404 = vmatprep.subr.mxu0 0.0
    %1405 = vmatpush1.msra.mxu0 0.0
    %1406 = vmatprep.subr.mxu0 0.0
    %1407 = vmatpush1.msra.mxu0 0.0
    %1408 = vmatprep.subr.mxu0 0.0
    %1409 = vmatpush1.msra.mxu0 0.0
    %1410 = vmatprep.subr.mxu0 0.0
    %1411 = vmatpush1.msra.mxu0 0.0
    %1412 = vmatprep.subr.mxu0 0.0
    %1413 = vmatpush1.msra.mxu0 0.0
    %1414 = vmatprep.subr.mxu0 0.0
    %1415 = vmatpush1.msra.mxu0 0.0
    %1416 = vmatprep.subr.mxu0 0.0
    %1417 = vmatpush1.msra.mxu0 0.0
    %1418 = vmatprep.subr.mxu0 0.0
    %1419 = vmatpush1.msra.mxu0 0.0
    %1420 = vmatprep.subr.mxu0 0.0
    %1421 = vmatpush1.msra.mxu0 0.0
    %1422 = vmatprep.mubr.f32.mxu0 0.0
    %1423 = vmatmul.mubr.f32.gmra.mrb[0].mxu0 %v1270
    %v1424 = vpop.f32.mrb[0].mxu0
    %v1425 = vadd.f32 0.0, %v1424
    %v1426 = vpop.f32.mrb[0].mxu0
    %v1427 = vadd.f32 0.0, %v1426
    %1428 = vmatprep.mubr.f32.mxu0 0.0
    %1429 = vmatmul.mubr.f32.gmra.mrb[0].mxu0 %v1271
    %v1430 = vpop.f32.mrb[0].mxu0
    %v1431 = vadd.f32 0.0, %v1430
    %v1432 = vpop.f32.mrb[0].mxu0
    %v1433 = vadd.f32 0.0, %v1432
    %1434 = vdwg.mxu0
    %v1435 = vadd.f32 %v1273, %v1348
    %v1436 = vadd.f32 %v1274, %v1350
    %v1437 = vadd.f32 %v1275, %v1425
    %v1438 = vadd.f32 %v1276, %v1427
    %v1439 = vadd.f32 %v1277, %v1354
    %v1440 = vadd.f32 %v1278, %v1356
    %v1441 = vadd.f32 %v1279, %v1431
    %v1442 = vadd.f32 %v1280, %v1433
    %v1443 = vxor.u32 %v1435, 2147483648
    %v1444 = vxor.u32 %v1436, 2147483648
    %v1445 = vxor.u32 %v1437, 2147483648
    %v1446 = vxor.u32 %v1439, 2147483648
    %v1447 = vxor.u32 %v1440, 2147483648
    %v1448 = vxor.u32 %v1441, 2147483648
    %v1449 = vmul.f32 %v1443, 1.442695
    %v1450 = vpow.pop %v1449
    %v1451 = vmul.f32 %v1444, 1.442695
    %v1452 = vpow.pop %v1451
    %v1453 = vmul.f32 %v1445, 1.442695
    %v1454 = vpow.pop %v1453
    %v1455 = vmul.f32 %v1446, 1.442695
    %v1456 = vpow.pop %v1455
    %v1457 = vmul.f32 %v1447, 1.442695
    %v1458 = vpow.pop %v1457
    %v1459 = vmul.f32 %v1448, 1.442695
    %v1460 = vpow.pop %v1459
    %v1461 = vadd.f32 %v1450, 1.0
    %v1462 = vadd.f32 %v1452, 1.0
    %v1463 = vadd.f32 %v1454, 1.0
    %v1464 = vadd.f32 %v1456, 1.0
    %v1465 = vadd.f32 %v1458, 1.0
    %v1466 = vadd.f32 %v1460, 1.0
    %v1467 = vrcp.pop %v1461
    %v1468 = vmul.f32 1.0, %v1467
    %v1469 = vrcp.pop %v1462
    %v1470 = vmul.f32 1.0, %v1469
    %v1471 = vrcp.pop %v1463
    %v1472 = vmul.f32 1.0, %v1471
    %v1473 = vrcp.pop %v1464
    %v1474 = vmul.f32 1.0, %v1473
    %v1475 = vrcp.pop %v1465
    %v1476 = vmul.f32 1.0, %v1475
    %v1477 = vrcp.pop %v1466
    %v1478 = vmul.f32 1.0, %v1477
    %v1479 = vtanh.pop %v1438
    %v1480 = vtanh.pop %v1442
    %v1481 = vmul.f32 %v1470, %v1266
    %v1482 = vmul.f32 %v1476, %v1267
    %v1483 = vmul.f32 %v1468, %v1479
    %v1484 = vmul.f32 %v1474, %v1480
    %v1485 = vadd.f32 %v1481, %v1483
    %v1486 = vadd.f32 %v1482, %v1484
    %v1487 = vtanh.pop %v1485
    %v1488 = vtanh.pop %v1486
    %v1489 = vmul.f32 %v1472, %v1487
    %v1490 = vmul.f32 %v1478, %v1488
    %s1491 = scalar_lea.vmem [#allocation2], 336
    %v1492 = vld [vmem:[%s1491] sm:$0xff]
    %v1493 = vld [vmem:[%s1491 + $0x8] sm:$0xff]
    %v1494 = vld [vmem:[%s1491 + $0x10] sm:$0xff]
    %v1495 = vld [vmem:[%s1491 + $0x18] sm:$0xff]
    %v1496 = vld [vmem:[%s1491 + $0x38] sm:$0xff]
    %v1497 = vld [vmem:[%s1491 + $0x40] sm:$0xff]
    %v1498 = vld [vmem:[%s1491 + $0x48] sm:$0xff]
    %v1499 = vld [vmem:[%s1491 + $0x50] sm:$0xff]
    %1500 = vmatprep.subr.mxu0 %v999
    %1501 = vmatpush1.msra.mxu0 %v998
    %1502 = vmatprep.subr.mxu0 %v1003
    %1503 = vmatpush1.msra.mxu0 %v1002
    %1504 = vmatprep.subr.mxu0 %v1007
    %1505 = vmatpush1.msra.mxu0 %v1006
    %1506 = vmatprep.subr.mxu0 %v1011
    %1507 = vmatpush1.msra.mxu0 %v1010
    %1508 = vmatprep.subr.mxu0 %v1015
    %1509 = vmatpush1.msra.mxu0 %v1014
    %1510 = vmatprep.subr.mxu0 %v1019
    %1511 = vmatpush1.msra.mxu0 %v1018
    %1512 = vmatprep.subr.mxu0 %v1023
    %1513 = vmatpush1.msra.mxu0 %v1022
    %1514 = vmatprep.subr.mxu0 %v1027
    %1515 = vmatpush1.msra.mxu0 %v1026
    %1516 = vmatprep.subr.mxu0 %v1031
    %1517 = vmatpush1.msra.mxu0 %v1030
    %1518 = vmatprep.subr.mxu0 %v1035
    %1519 = vmatpush1.msra.mxu0 %v1034
    %1520 = vmatprep.subr.mxu0 %v1039
    %1521 = vmatpush1.msra.mxu0 %v1038
    %1522 = vmatprep.subr.mxu0 %v1043
    %1523 = vmatpush1.msra.mxu0 %v1042
    %1524 = vmatprep.subr.mxu0 %v1047
    %1525 = vmatpush1.msra.mxu0 %v1046
    %1526 = vmatprep.subr.mxu0 %v1051
    %1527 = vmatpush1.msra.mxu0 %v1050
    %1528 = vmatprep.subr.mxu0 %v1055
    %1529 = vmatpush1.msra.mxu0 %v1054
    %1530 = vmatprep.subr.mxu0 %v1059
    %1531 = vmatpush1.msra.mxu0 %v1058
    %1532 = vmatprep.subr.mxu0 0.0
    %1533 = vmatpush1.msra.mxu0 0.0
    %1534 = vmatprep.subr.mxu0 0.0
    %1535 = vmatpush1.msra.mxu0 0.0
    %1536 = vmatprep.subr.mxu0 0.0
    %1537 = vmatpush1.msra.mxu0 0.0
    %1538 = vmatprep.subr.mxu0 0.0
    %1539 = vmatpush1.msra.mxu0 0.0
    %1540 = vmatprep.subr.mxu0 0.0
    %1541 = vmatpush1.msra.mxu0 0.0
    %1542 = vmatprep.subr.mxu0 0.0
    %1543 = vmatpush1.msra.mxu0 0.0
    %1544 = vmatprep.subr.mxu0 0.0
    %1545 = vmatpush1.msra.mxu0 0.0
    %1546 = vmatprep.subr.mxu0 0.0
    %1547 = vmatpush1.msra.mxu0 0.0
    %1548 = vmatprep.subr.mxu0 0.0
    %1549 = vmatpush1.msra.mxu0 0.0
    %1550 = vmatprep.subr.mxu0 0.0
    %1551 = vmatpush1.msra.mxu0 0.0
    %1552 = vmatprep.subr.mxu0 0.0
    %1553 = vmatpush1.msra.mxu0 0.0
    %1554 = vmatprep.subr.mxu0 0.0
    %1555 = vmatpush1.msra.mxu0 0.0
    %1556 = vmatprep.subr.mxu0 0.0
    %1557 = vmatpush1.msra.mxu0 0.0
    %1558 = vmatprep.subr.mxu0 0.0
    %1559 = vmatpush1.msra.mxu0 0.0
    %1560 = vmatprep.subr.mxu0 0.0
    %1561 = vmatpush1.msra.mxu0 0.0
    %1562 = vmatprep.subr.mxu0 0.0
    %1563 = vmatpush1.msra.mxu0 0.0
    %1564 = vmatprep.mubr.f32.mxu0 0.0
    %1565 = vmatmul.mubr.f32.gmra.mrb[0].mxu0 %v1489
    %v1566 = vpop.f32.mrb[0].mxu0
    %v1567 = vadd.f32 0.0, %v1566
    %v1568 = vpop.f32.mrb[0].mxu0
    %v1569 = vadd.f32 0.0, %v1568
    %1570 = vmatprep.mubr.f32.mxu0 0.0
    %1571 = vmatmul.mubr.f32.gmra.mrb[0].mxu0 %v1490
    %v1572 = vpop.f32.mrb[0].mxu0
    %v1573 = vadd.f32 0.0, %v1572
    %v1574 = vpop.f32.mrb[0].mxu0
    %v1575 = vadd.f32 0.0, %v1574
    %1576 = vdwg.mxu0
    %1577 = vmatprep.subr.mxu0 %v1001
    %1578 = vmatpush1.msra.mxu0 %v1000
    %1579 = vmatprep.subr.mxu0 %v1005
    %1580 = vmatpush1.msra.mxu0 %v1004
    %1581 = vmatprep.subr.mxu0 %v1009
    %1582 = vmatpush1.msra.mxu0 %v1008
    %1583 = vmatprep.subr.mxu0 %v1013
    %1584 = vmatpush1.msra.mxu0 %v1012
    %1585 = vmatprep.subr.mxu0 %v1017
    %1586 = vmatpush1.msra.mxu0 %v1016
    %1587 = vmatprep.subr.mxu0 %v1021
    %1588 = vmatpush1.msra.mxu0 %v1020
    %1589 = vmatprep.subr.mxu0 %v1025
    %1590 = vmatpush1.msra.mxu0 %v1024
    %1591 = vmatprep.subr.mxu0 %v1029
    %1592 = vmatpush1.msra.mxu0 %v1028
    %1593 = vmatprep.subr.mxu0 %v1033
    %1594 = vmatpush1.msra.mxu0 %v1032
    %1595 = vmatprep.subr.mxu0 %v1037
    %1596 = vmatpush1.msra.mxu0 %v1036
    %1597 = vmatprep.subr.mxu0 %v1041
    %1598 = vmatpush1.msra.mxu0 %v1040
    %1599 = vmatprep.subr.mxu0 %v1045
    %1600 = vmatpush1.msra.mxu0 %v1044
    %1601 = vmatprep.subr.mxu0 %v1049
    %1602 = vmatpush1.msra.mxu0 %v1048
    %1603 = vmatprep.subr.mxu0 %v1053
    %1604 = vmatpush1.msra.mxu0 %v1052
    %1605 = vmatprep.subr.mxu0 %v1057
    %1606 = vmatpush1.msra.mxu0 %v1056
    %1607 = vmatprep.subr.mxu0 %v1061
    %1608 = vmatpush1.msra.mxu0 %v1060
    %1609 = vmatprep.subr.mxu0 0.0
    %1610 = vmatpush1.msra.mxu0 0.0
    %1611 = vmatprep.subr.mxu0 0.0
    %1612 = vmatpush1.msra.mxu0 0.0
    %1613 = vmatprep.subr.mxu0 0.0
    %1614 = vmatpush1.msra.mxu0 0.0
    %1615 = vmatprep.subr.mxu0 0.0
    %1616 = vmatpush1.msra.mxu0 0.0
    %1617 = vmatprep.subr.mxu0 0.0
    %1618 = vmatpush1.msra.mxu0 0.0
    %1619 = vmatprep.subr.mxu0 0.0
    %1620 = vmatpush1.msra.mxu0 0.0
    %1621 = vmatprep.subr.mxu0 0.0
    %1622 = vmatpush1.msra.mxu0 0.0
    %1623 = vmatprep.subr.mxu0 0.0
    %1624 = vmatpush1.msra.mxu0 0.0
    %1625 = vmatprep.subr.mxu0 0.0
    %1626 = vmatpush1.msra.mxu0 0.0
    %1627 = vmatprep.subr.mxu0 0.0
    %1628 = vmatpush1.msra.mxu0 0.0
    %1629 = vmatprep.subr.mxu0 0.0
    %1630 = vmatpush1.msra.mxu0 0.0
    %1631 = vmatprep.subr.mxu0 0.0
    %1632 = vmatpush1.msra.mxu0 0.0
    %1633 = vmatprep.subr.mxu0 0.0
    %1634 = vmatpush1.msra.mxu0 0.0
    %1635 = vmatprep.subr.mxu0 0.0
    %1636 = vmatpush1.msra.mxu0 0.0
    %1637 = vmatprep.subr.mxu0 0.0
    %1638 = vmatpush1.msra.mxu0 0.0
    %1639 = vmatprep.subr.mxu0 0.0
    %1640 = vmatpush1.msra.mxu0 0.0
    %1641 = vmatprep.mubr.f32.mxu0 0.0
    %1642 = vmatmul.mubr.f32.gmra.mrb[0].mxu0 %v1489
    %v1643 = vpop.f32.mrb[0].mxu0
    %v1644 = vadd.f32 0.0, %v1643
    %v1645 = vpop.f32.mrb[0].mxu0
    %v1646 = vadd.f32 0.0, %v1645
    %1647 = vmatprep.mubr.f32.mxu0 0.0
    %1648 = vmatmul.mubr.f32.gmra.mrb[0].mxu0 %v1490
    %v1649 = vpop.f32.mrb[0].mxu0
    %v1650 = vadd.f32 0.0, %v1649
    %v1651 = vpop.f32.mrb[0].mxu0
    %v1652 = vadd.f32 0.0, %v1651
    %1653 = vdwg.mxu0
    %v1654 = vadd.f32 %v1492, %v1567
    %v1655 = vadd.f32 %v1493, %v1569
    %v1656 = vadd.f32 %v1494, %v1644
    %v1657 = vadd.f32 %v1495, %v1646
    %v1658 = vadd.f32 %v1496, %v1573
    %v1659 = vadd.f32 %v1497, %v1575
    %v1660 = vadd.f32 %v1498, %v1650
    %v1661 = vadd.f32 %v1499, %v1652
    %v1662 = vxor.u32 %v1654, 2147483648
    %v1663 = vxor.u32 %v1655, 2147483648
    %v1664 = vxor.u32 %v1656, 2147483648
    %v1665 = vxor.u32 %v1658, 2147483648
    %v1666 = vxor.u32 %v1659, 2147483648
    %v1667 = vxor.u32 %v1660, 2147483648
    %v1668 = vmul.f32 %v1662, 1.442695
    %v1669 = vpow.pop %v1668
    %v1670 = vmul.f32 %v1663, 1.442695
    %v1671 = vpow.pop %v1670
    %v1672 = vmul.f32 %v1664, 1.442695
    %v1673 = vpow.pop %v1672
    %v1674 = vmul.f32 %v1665, 1.442695
    %v1675 = vpow.pop %v1674
    %v1676 = vmul.f32 %v1666, 1.442695
    %v1677 = vpow.pop %v1676
    %v1678 = vmul.f32 %v1667, 1.442695
    %v1679 = vpow.pop %v1678
    %v1680 = vadd.f32 %v1669, 1.0
    %v1681 = vadd.f32 %v1671, 1.0
    %v1682 = vadd.f32 %v1673, 1.0
    %v1683 = vadd.f32 %v1675, 1.0
    %v1684 = vadd.f32 %v1677, 1.0
    %v1685 = vadd.f32 %v1679, 1.0
    %v1686 = vrcp.pop %v1680
    %v1687 = vmul.f32 1.0, %v1686
    %v1688 = vrcp.pop %v1681
    %v1689 = vmul.f32 1.0, %v1688
    %v1690 = vrcp.pop %v1682
    %v1691 = vmul.f32 1.0, %v1690
    %v1692 = vrcp.pop %v1683
    %v1693 = vmul.f32 1.0, %v1692
    %v1694 = vrcp.pop %v1684
    %v1695 = vmul.f32 1.0, %v1694
    %v1696 = vrcp.pop %v1685
    %v1697 = vmul.f32 1.0, %v1696
    %v1698 = vtanh.pop %v1657
    %v1699 = vtanh.pop %v1661
    %v1700 = vmul.f32 %v1689, %v1485
    %v1701 = vmul.f32 %v1695, %v1486
    %v1702 = vmul.f32 %v1687, %v1698
    %v1703 = vmul.f32 %v1693, %v1699
    %v1704 = vadd.f32 %v1700, %v1702
    %v1705 = vadd.f32 %v1701, %v1703
    %v1706 = vtanh.pop %v1704
    %v1707 = vtanh.pop %v1705
    %v1708 = vmul.f32 %v1691, %v1706
    %v1709 = vmul.f32 %v1697, %v1707
    %s1710 = scalar_lea.vmem [#allocation2], 448
    %v1711 = vld [vmem:[%s1710] sm:$0xff]
    %v1712 = vld [vmem:[%s1710 + $0x8] sm:$0xff]
    %v1713 = vld [vmem:[%s1710 + $0x10] sm:$0xff]
    %v1714 = vld [vmem:[%s1710 + $0x18] sm:$0xff]
    %v1715 = vld [vmem:[%s1710 + $0x38] sm:$0xff]
    %v1716 = vld [vmem:[%s1710 + $0x40] sm:$0xff]
    %v1717 = vld [vmem:[%s1710 + $0x48] sm:$0xff]
    %v1718 = vld [vmem:[%s1710 + $0x50] sm:$0xff]
    %1719 = vmatprep.subr.mxu0 %v999
    %1720 = vmatpush1.msra.mxu0 %v998
    %1721 = vmatprep.subr.mxu0 %v1003
    %1722 = vmatpush1.msra.mxu0 %v1002
    %1723 = vmatprep.subr.mxu0 %v1007
    %1724 = vmatpush1.msra.mxu0 %v1006
    %1725 = vmatprep.subr.mxu0 %v1011
    %1726 = vmatpush1.msra.mxu0 %v1010
    %1727 = vmatprep.subr.mxu0 %v1015
    %1728 = vmatpush1.msra.mxu0 %v1014
    %1729 = vmatprep.subr.mxu0 %v1019
    %1730 = vmatpush1.msra.mxu0 %v1018
    %1731 = vmatprep.subr.mxu0 %v1023
    %1732 = vmatpush1.msra.mxu0 %v1022
    %1733 = vmatprep.subr.mxu0 %v1027
    %1734 = vmatpush1.msra.mxu0 %v1026
    %1735 = vmatprep.subr.mxu0 %v1031
    %1736 = vmatpush1.msra.mxu0 %v1030
    %1737 = vmatprep.subr.mxu0 %v1035
    %1738 = vmatpush1.msra.mxu0 %v1034
    %1739 = vmatprep.subr.mxu0 %v1039
    %1740 = vmatpush1.msra.mxu0 %v1038
    %1741 = vmatprep.subr.mxu0 %v1043
    %1742 = vmatpush1.msra.mxu0 %v1042
    %1743 = vmatprep.subr.mxu0 %v1047
    %1744 = vmatpush1.msra.mxu0 %v1046
    %1745 = vmatprep.subr.mxu0 %v1051
    %1746 = vmatpush1.msra.mxu0 %v1050
    %1747 = vmatprep.subr.mxu0 %v1055
    %1748 = vmatpush1.msra.mxu0 %v1054
    %1749 = vmatprep.subr.mxu0 %v1059
    %1750 = vmatpush1.msra.mxu0 %v1058
    %1751 = vmatprep.subr.mxu0 0.0
    %1752 = vmatpush1.msra.mxu0 0.0
    %1753 = vmatprep.subr.mxu0 0.0
    %1754 = vmatpush1.msra.mxu0 0.0
    %1755 = vmatprep.subr.mxu0 0.0
    %1756 = vmatpush1.msra.mxu0 0.0
    %1757 = vmatprep.subr.mxu0 0.0
    %1758 = vmatpush1.msra.mxu0 0.0
    %1759 = vmatprep.subr.mxu0 0.0
    %1760 = vmatpush1.msra.mxu0 0.0
    %1761 = vmatprep.subr.mxu0 0.0
    %1762 = vmatpush1.msra.mxu0 0.0
    %1763 = vmatprep.subr.mxu0 0.0
    %1764 = vmatpush1.msra.mxu0 0.0
    %1765 = vmatprep.subr.mxu0 0.0
    %1766 = vmatpush1.msra.mxu0 0.0
    %1767 = vmatprep.subr.mxu0 0.0
    %1768 = vmatpush1.msra.mxu0 0.0
    %1769 = vmatprep.subr.mxu0 0.0
    %1770 = vmatpush1.msra.mxu0 0.0
    %1771 = vmatprep.subr.mxu0 0.0
    %1772 = vmatpush1.msra.mxu0 0.0
    %1773 = vmatprep.subr.mxu0 0.0
    %1774 = vmatpush1.msra.mxu0 0.0
    %1775 = vmatprep.subr.mxu0 0.0
    %1776 = vmatpush1.msra.mxu0 0.0
    %1777 = vmatprep.subr.mxu0 0.0
    %1778 = vmatpush1.msra.mxu0 0.0
    %1779 = vmatprep.subr.mxu0 0.0
    %1780 = vmatpush1.msra.mxu0 0.0
    %1781 = vmatprep.subr.mxu0 0.0
    %1782 = vmatpush1.msra.mxu0 0.0
    %1783 = vmatprep.mubr.f32.mxu0 0.0
    %1784 = vmatmul.mubr.f32.gmra.mrb[0].mxu0 %v1708
    %v1785 = vpop.f32.mrb[0].mxu0
    %v1786 = vadd.f32 0.0, %v1785
    %v1787 = vpop.f32.mrb[0].mxu0
    %v1788 = vadd.f32 0.0, %v1787
    %1789 = vmatprep.mubr.f32.mxu0 0.0
    %1790 = vmatmul.mubr.f32.gmra.mrb[0].mxu0 %v1709
    %v1791 = vpop.f32.mrb[0].mxu0
    %v1792 = vadd.f32 0.0, %v1791
    %v1793 = vpop.f32.mrb[0].mxu0
    %v1794 = vadd.f32 0.0, %v1793
    %1795 = vdwg.mxu0
    %1796 = vmatprep.subr.mxu0 %v1001
    %1797 = vmatpush1.msra.mxu0 %v1000
    %1798 = vmatprep.subr.mxu0 %v1005
    %1799 = vmatpush1.msra.mxu0 %v1004
    %1800 = vmatprep.subr.mxu0 %v1009
    %1801 = vmatpush1.msra.mxu0 %v1008
    %1802 = vmatprep.subr.mxu0 %v1013
    %1803 = vmatpush1.msra.mxu0 %v1012
    %1804 = vmatprep.subr.mxu0 %v1017
    %1805 = vmatpush1.msra.mxu0 %v1016
    %1806 = vmatprep.subr.mxu0 %v1021
    %1807 = vmatpush1.msra.mxu0 %v1020
    %1808 = vmatprep.subr.mxu0 %v1025
    %1809 = vmatpush1.msra.mxu0 %v1024
    %1810 = vmatprep.subr.mxu0 %v1029
    %1811 = vmatpush1.msra.mxu0 %v1028
    %1812 = vmatprep.subr.mxu0 %v1033
    %1813 = vmatpush1.msra.mxu0 %v1032
    %1814 = vmatprep.subr.mxu0 %v1037
    %1815 = vmatpush1.msra.mxu0 %v1036
    %1816 = vmatprep.subr.mxu0 %v1041
    %1817 = vmatpush1.msra.mxu0 %v1040
    %1818 = vmatprep.subr.mxu0 %v1045
    %1819 = vmatpush1.msra.mxu0 %v1044
    %1820 = vmatprep.subr.mxu0 %v1049
    %1821 = vmatpush1.msra.mxu0 %v1048
    %1822 = vmatprep.subr.mxu0 %v1053
    %1823 = vmatpush1.msra.mxu0 %v1052
    %1824 = vmatprep.subr.mxu0 %v1057
    %1825 = vmatpush1.msra.mxu0 %v1056
    %1826 = vmatprep.subr.mxu0 %v1061
    %1827 = vmatpush1.msra.mxu0 %v1060
    %1828 = vmatprep.subr.mxu0 0.0
    %1829 = vmatpush1.msra.mxu0 0.0
    %1830 = vmatprep.subr.mxu0 0.0
    %1831 = vmatpush1.msra.mxu0 0.0
    %1832 = vmatprep.subr.mxu0 0.0
    %1833 = vmatpush1.msra.mxu0 0.0
    %1834 = vmatprep.subr.mxu0 0.0
    %1835 = vmatpush1.msra.mxu0 0.0
    %1836 = vmatprep.subr.mxu0 0.0
    %1837 = vmatpush1.msra.mxu0 0.0
    %1838 = vmatprep.subr.mxu0 0.0
    %1839 = vmatpush1.msra.mxu0 0.0
    %1840 = vmatprep.subr.mxu0 0.0
    %1841 = vmatpush1.msra.mxu0 0.0
    %1842 = vmatprep.subr.mxu0 0.0
    %1843 = vmatpush1.msra.mxu0 0.0
    %1844 = vmatprep.subr.mxu0 0.0
    %1845 = vmatpush1.msra.mxu0 0.0
    %1846 = vmatprep.subr.mxu0 0.0
    %1847 = vmatpush1.msra.mxu0 0.0
    %1848 = vmatprep.subr.mxu0 0.0
    %1849 = vmatpush1.msra.mxu0 0.0
    %1850 = vmatprep.subr.mxu0 0.0
    %1851 = vmatpush1.msra.mxu0 0.0
    %1852 = vmatprep.subr.mxu0 0.0
    %1853 = vmatpush1.msra.mxu0 0.0
    %1854 = vmatprep.subr.mxu0 0.0
    %1855 = vmatpush1.msra.mxu0 0.0
    %1856 = vmatprep.subr.mxu0 0.0
    %1857 = vmatpush1.msra.mxu0 0.0
    %1858 = vmatprep.subr.mxu0 0.0
    %1859 = vmatpush1.msra.mxu0 0.0
    %1860 = vmatprep.mubr.f32.mxu0 0.0
    %1861 = vmatmul.mubr.f32.gmra.mrb[0].mxu0 %v1708
    %v1862 = vpop.f32.mrb[0].mxu0
    %v1863 = vadd.f32 0.0, %v1862
    %v1864 = vpop.f32.mrb[0].mxu0
    %v1865 = vadd.f32 0.0, %v1864
    %1866 = vmatprep.mubr.f32.mxu0 0.0
    %1867 = vmatmul.mubr.f32.gmra.mrb[0].mxu0 %v1709
    %v1868 = vpop.f32.mrb[0].mxu0
    %v1869 = vadd.f32 0.0, %v1868
    %v1870 = vpop.f32.mrb[0].mxu0
    %v1871 = vadd.f32 0.0, %v1870
    %1872 = vdwg.mxu0
    %v1873 = vadd.f32 %v1711, %v1786
    %v1874 = vadd.f32 %v1712, %v1788
    %v1875 = vadd.f32 %v1713, %v1863
    %v1876 = vadd.f32 %v1714, %v1865
    %v1877 = vadd.f32 %v1715, %v1792
    %v1878 = vadd.f32 %v1716, %v1794
    %v1879 = vadd.f32 %v1717, %v1869
    %v1880 = vadd.f32 %v1718, %v1871
    %v1881 = vxor.u32 %v1873, 2147483648
    %v1882 = vxor.u32 %v1874, 2147483648
    %v1883 = vxor.u32 %v1875, 2147483648
    %v1884 = vxor.u32 %v1877, 2147483648
    %v1885 = vxor.u32 %v1878, 2147483648
    %v1886 = vxor.u32 %v1879, 2147483648
    %v1887 = vmul.f32 %v1881, 1.442695
    %v1888 = vpow.pop %v1887
    %v1889 = vmul.f32 %v1882, 1.442695
    %v1890 = vpow.pop %v1889
    %v1891 = vmul.f32 %v1883, 1.442695
    %v1892 = vpow.pop %v1891
    %v1893 = vmul.f32 %v1884, 1.442695
    %v1894 = vpow.pop %v1893
    %v1895 = vmul.f32 %v1885, 1.442695
    %v1896 = vpow.pop %v1895
    %v1897 = vmul.f32 %v1886, 1.442695
    %v1898 = vpow.pop %v1897
    %v1899 = vadd.f32 %v1888, 1.0
    %v1900 = vadd.f32 %v1890, 1.0
    %v1901 = vadd.f32 %v1892, 1.0
    %v1902 = vadd.f32 %v1894, 1.0
    %v1903 = vadd.f32 %v1896, 1.0
    %v1904 = vadd.f32 %v1898, 1.0
    %v1905 = vrcp.pop %v1899
    %v1906 = vmul.f32 1.0, %v1905
    %v1907 = vrcp.pop %v1900
    %v1908 = vmul.f32 1.0, %v1907
    %v1909 = vrcp.pop %v1901
    %v1910 = vmul.f32 1.0, %v1909
    %v1911 = vrcp.pop %v1902
    %v1912 = vmul.f32 1.0, %v1911
    %v1913 = vrcp.pop %v1903
    %v1914 = vmul.f32 1.0, %v1913
    %v1915 = vrcp.pop %v1904
    %v1916 = vmul.f32 1.0, %v1915
    %v1917 = vtanh.pop %v1876
    %v1918 = vtanh.pop %v1880
    %v1919 = vmul.f32 %v1908, %v1704
    %v1920 = vmul.f32 %v1914, %v1705
    %v1921 = vmul.f32 %v1906, %v1917
    %v1922 = vmul.f32 %v1912, %v1918
    %v1923 = vadd.f32 %v1919, %v1921
    %v1924 = vadd.f32 %v1920, %v1922
    %v1925 = vtanh.pop %v1923
    %v1926 = vtanh.pop %v1924
    %v1927 = vmul.f32 %v1910, %v1925
    %v1928 = vmul.f32 %v1916, %v1926
    %s1929 = scalar_lea.vmem [#allocation2], 560
    %v1930 = vld [vmem:[%s1929] sm:$0xff]
    %v1931 = vld [vmem:[%s1929 + $0x8] sm:$0xff]
    %v1932 = vld [vmem:[%s1929 + $0x10] sm:$0xff]
    %v1933 = vld [vmem:[%s1929 + $0x18] sm:$0xff]
    %v1934 = vld [vmem:[%s1929 + $0x38] sm:$0xff]
    %v1935 = vld [vmem:[%s1929 + $0x40] sm:$0xff]
    %v1936 = vld [vmem:[%s1929 + $0x48] sm:$0xff]
    %v1937 = vld [vmem:[%s1929 + $0x50] sm:$0xff]
    %1938 = vmatprep.subr.mxu0 %v999
    %1939 = vmatpush1.msra.mxu0 %v998
    %1940 = vmatprep.subr.mxu0 %v1003
    %1941 = vmatpush1.msra.mxu0 %v1002
    %1942 = vmatprep.subr.mxu0 %v1007
    %1943 = vmatpush1.msra.mxu0 %v1006
    %1944 = vmatprep.subr.mxu0 %v1011
    %1945 = vmatpush1.msra.mxu0 %v1010
    %1946 = vmatprep.subr.mxu0 %v1015
    %1947 = vmatpush1.msra.mxu0 %v1014
    %1948 = vmatprep.subr.mxu0 %v1019
    %1949 = vmatpush1.msra.mxu0 %v1018
    %1950 = vmatprep.subr.mxu0 %v1023
    %1951 = vmatpush1.msra.mxu0 %v1022
    %1952 = vmatprep.subr.mxu0 %v1027
    %1953 = vmatpush1.msra.mxu0 %v1026
    %1954 = vmatprep.subr.mxu0 %v1031
    %1955 = vmatpush1.msra.mxu0 %v1030
    %1956 = vmatprep.subr.mxu0 %v1035
    %1957 = vmatpush1.msra.mxu0 %v1034
    %1958 = vmatprep.subr.mxu0 %v1039
    %1959 = vmatpush1.msra.mxu0 %v1038
    %1960 = vmatprep.subr.mxu0 %v1043
    %1961 = vmatpush1.msra.mxu0 %v1042
    %1962 = vmatprep.subr.mxu0 %v1047
    %1963 = vmatpush1.msra.mxu0 %v1046
    %1964 = vmatprep.subr.mxu0 %v1051
    %1965 = vmatpush1.msra.mxu0 %v1050
    %1966 = vmatprep.subr.mxu0 %v1055
    %1967 = vmatpush1.msra.mxu0 %v1054
    %1968 = vmatprep.subr.mxu0 %v1059
    %1969 = vmatpush1.msra.mxu0 %v1058
    %1970 = vmatprep.subr.mxu0 0.0
    %1971 = vmatpush1.msra.mxu0 0.0
    %1972 = vmatprep.subr.mxu0 0.0
    %1973 = vmatpush1.msra.mxu0 0.0
    %1974 = vmatprep.subr.mxu0 0.0
    %1975 = vmatpush1.msra.mxu0 0.0
    %1976 = vmatprep.subr.mxu0 0.0
    %1977 = vmatpush1.msra.mxu0 0.0
    %1978 = vmatprep.subr.mxu0 0.0
    %1979 = vmatpush1.msra.mxu0 0.0
    %1980 = vmatprep.subr.mxu0 0.0
    %1981 = vmatpush1.msra.mxu0 0.0
    %1982 = vmatprep.subr.mxu0 0.0
    %1983 = vmatpush1.msra.mxu0 0.0
    %1984 = vmatprep.subr.mxu0 0.0
    %1985 = vmatpush1.msra.mxu0 0.0
    %1986 = vmatprep.subr.mxu0 0.0
    %1987 = vmatpush1.msra.mxu0 0.0
    %1988 = vmatprep.subr.mxu0 0.0
    %1989 = vmatpush1.msra.mxu0 0.0
    %1990 = vmatprep.subr.mxu0 0.0
    %1991 = vmatpush1.msra.mxu0 0.0
    %1992 = vmatprep.subr.mxu0 0.0
    %1993 = vmatpush1.msra.mxu0 0.0
    %1994 = vmatprep.subr.mxu0 0.0
    %1995 = vmatpush1.msra.mxu0 0.0
    %1996 = vmatprep.subr.mxu0 0.0
    %1997 = vmatpush1.msra.mxu0 0.0
    %1998 = vmatprep.subr.mxu0 0.0
    %1999 = vmatpush1.msra.mxu0 0.0
    %2000 = vmatprep.subr.mxu0 0.0
    %2001 = vmatpush1.msra.mxu0 0.0
    %2002 = vmatprep.mubr.f32.mxu0 0.0
    %2003 = vmatmul.mubr.f32.gmra.mrb[0].mxu0 %v1927
    %v2004 = vpop.f32.mrb[0].mxu0
    %v2005 = vadd.f32 0.0, %v2004
    %v2006 = vpop.f32.mrb[0].mxu0
    %v2007 = vadd.f32 0.0, %v2006
    %2008 = vmatprep.mubr.f32.mxu0 0.0
    %2009 = vmatmul.mubr.f32.gmra.mrb[0].mxu0 %v1928
    %v2010 = vpop.f32.mrb[0].mxu0
    %v2011 = vadd.f32 0.0, %v2010
    %v2012 = vpop.f32.mrb[0].mxu0
    %v2013 = vadd.f32 0.0, %v2012
    %2014 = vdwg.mxu0
    %2015 = vmatprep.subr.mxu0 %v1001
    %2016 = vmatpush1.msra.mxu0 %v1000
    %2017 = vmatprep.subr.mxu0 %v1005
    %2018 = vmatpush1.msra.mxu0 %v1004
    %2019 = vmatprep.subr.mxu0 %v1009
    %2020 = vmatpush1.msra.mxu0 %v1008
    %2021 = vmatprep.subr.mxu0 %v1013
    %2022 = vmatpush1.msra.mxu0 %v1012
    %2023 = vmatprep.subr.mxu0 %v1017
    %2024 = vmatpush1.msra.mxu0 %v1016
    %2025 = vmatprep.subr.mxu0 %v1021
    %2026 = vmatpush1.msra.mxu0 %v1020
    %2027 = vmatprep.subr.mxu0 %v1025
    %2028 = vmatpush1.msra.mxu0 %v1024
    %2029 = vmatprep.subr.mxu0 %v1029
    %2030 = vmatpush1.msra.mxu0 %v1028
    %2031 = vmatprep.subr.mxu0 %v1033
    %2032 = vmatpush1.msra.mxu0 %v1032
    %2033 = vmatprep.subr.mxu0 %v1037
    %2034 = vmatpush1.msra.mxu0 %v1036
    %2035 = vmatprep.subr.mxu0 %v1041
    %2036 = vmatpush1.msra.mxu0 %v1040
    %2037 = vmatprep.subr.mxu0 %v1045
    %2038 = vmatpush1.msra.mxu0 %v1044
    %2039 = vmatprep.subr.mxu0 %v1049
    %2040 = vmatpush1.msra.mxu0 %v1048
    %2041 = vmatprep.subr.mxu0 %v1053
    %2042 = vmatpush1.msra.mxu0 %v1052
    %2043 = vmatprep.subr.mxu0 %v1057
    %2044 = vmatpush1.msra.mxu0 %v1056
    %2045 = vmatprep.subr.mxu0 %v1061
    %2046 = vmatpush1.msra.mxu0 %v1060
    %2047 = vmatprep.subr.mxu0 0.0
    %2048 = vmatpush1.msra.mxu0 0.0
    %2049 = vmatprep.subr.mxu0 0.0
    %2050 = vmatpush1.msra.mxu0 0.0
    %2051 = vmatprep.subr.mxu0 0.0
    %2052 = vmatpush1.msra.mxu0 0.0
    %2053 = vmatprep.subr.mxu0 0.0
    %2054 = vmatpush1.msra.mxu0 0.0
    %2055 = vmatprep.subr.mxu0 0.0
    %2056 = vmatpush1.msra.mxu0 0.0
    %2057 = vmatprep.subr.mxu0 0.0
    %2058 = vmatpush1.msra.mxu0 0.0
    %2059 = vmatprep.subr.mxu0 0.0
    %2060 = vmatpush1.msra.mxu0 0.0
    %2061 = vmatprep.subr.mxu0 0.0
    %2062 = vmatpush1.msra.mxu0 0.0
    %2063 = vmatprep.subr.mxu0 0.0
    %2064 = vmatpush1.msra.mxu0 0.0
    %2065 = vmatprep.subr.mxu0 0.0
    %2066 = vmatpush1.msra.mxu0 0.0
    %2067 = vmatprep.subr.mxu0 0.0
    %2068 = vmatpush1.msra.mxu0 0.0
    %2069 = vmatprep.subr.mxu0 0.0
    %2070 = vmatpush1.msra.mxu0 0.0
    %2071 = vmatprep.subr.mxu0 0.0
    %2072 = vmatpush1.msra.mxu0 0.0
    %2073 = vmatprep.subr.mxu0 0.0
    %2074 = vmatpush1.msra.mxu0 0.0
    %2075 = vmatprep.subr.mxu0 0.0
    %2076 = vmatpush1.msra.mxu0 0.0
    %2077 = vmatprep.subr.mxu0 0.0
    %2078 = vmatpush1.msra.mxu0 0.0
    %2079 = vmatprep.mubr.f32.mxu0 0.0
    %2080 = vmatmul.mubr.f32.gmra.mrb[0].mxu0 %v1927
    %v2081 = vpop.f32.mrb[0].mxu0
    %v2082 = vadd.f32 0.0, %v2081
    %v2083 = vpop.f32.mrb[0].mxu0
    %v2084 = vadd.f32 0.0, %v2083
    %2085 = vmatprep.mubr.f32.mxu0 0.0
    %2086 = vmatmul.mubr.f32.gmra.mrb[0].mxu0 %v1928
    %v2087 = vpop.f32.mrb[0].mxu0
    %v2088 = vadd.f32 0.0, %v2087
    %v2089 = vpop.f32.mrb[0].mxu0
    %v2090 = vadd.f32 0.0, %v2089
    %2091 = vdwg.mxu0
    %v2092 = vadd.f32 %v1930, %v2005
    %v2093 = vadd.f32 %v1931, %v2007
    %v2094 = vadd.f32 %v1932, %v2082
    %v2095 = vadd.f32 %v1933, %v2084
    %v2096 = vadd.f32 %v1934, %v2011
    %v2097 = vadd.f32 %v1935, %v2013
    %v2098 = vadd.f32 %v1936, %v2088
    %v2099 = vadd.f32 %v1937, %v2090
    %v2100 = vxor.u32 %v2092, 2147483648
    %v2101 = vxor.u32 %v2093, 2147483648
    %v2102 = vxor.u32 %v2094, 2147483648
    %v2103 = vxor.u32 %v2096, 2147483648
    %v2104 = vxor.u32 %v2097, 2147483648
    %v2105 = vxor.u32 %v2098, 2147483648
    %v2106 = vmul.f32 %v2100, 1.442695
    %v2107 = vpow.pop %v2106
    %v2108 = vmul.f32 %v2101, 1.442695
    %v2109 = vpow.pop %v2108
    %v2110 = vmul.f32 %v2102, 1.442695
    %v2111 = vpow.pop %v2110
    %v2112 = vmul.f32 %v2103, 1.442695
    %v2113 = vpow.pop %v2112
    %v2114 = vmul.f32 %v2104, 1.442695
    %v2115 = vpow.pop %v2114
    %v2116 = vmul.f32 %v2105, 1.442695
    %v2117 = vpow.pop %v2116
    %v2118 = vadd.f32 %v2107, 1.0
    %v2119 = vadd.f32 %v2109, 1.0
    %v2120 = vadd.f32 %v2111, 1.0
    %v2121 = vadd.f32 %v2113, 1.0
    %v2122 = vadd.f32 %v2115, 1.0
    %v2123 = vadd.f32 %v2117, 1.0
    %v2124 = vrcp.pop %v2118
    %v2125 = vmul.f32 1.0, %v2124
    %v2126 = vrcp.pop %v2119
    %v2127 = vmul.f32 1.0, %v2126
    %v2128 = vrcp.pop %v2120
    %v2129 = vmul.f32 1.0, %v2128
    %v2130 = vrcp.pop %v2121
    %v2131 = vmul.f32 1.0, %v2130
    %v2132 = vrcp.pop %v2122
    %v2133 = vmul.f32 1.0, %v2132
    %v2134 = vrcp.pop %v2123
    %v2135 = vmul.f32 1.0, %v2134
    %v2136 = vtanh.pop %v2095
    %v2137 = vtanh.pop %v2099
    %v2138 = vmul.f32 %v2127, %v1923
    %v2139 = vmul.f32 %v2133, %v1924
    %v2140 = vmul.f32 %v2125, %v2136
    %v2141 = vmul.f32 %v2131, %v2137
    %v2142 = vadd.f32 %v2138, %v2140
    %v2143 = vadd.f32 %v2139, %v2141
    %v2144 = vtanh.pop %v2142
    %v2145 = vtanh.pop %v2143
    %v2146 = vmul.f32 %v2129, %v2144
    %v2147 = vmul.f32 %v2135, %v2145
    %s2148 = scalar_lea.vmem [#allocation2], 672
    %v2149 = vld [vmem:[%s2148] sm:$0xff]
    %v2150 = vld [vmem:[%s2148 + $0x8] sm:$0xff]
    %v2151 = vld [vmem:[%s2148 + $0x10] sm:$0xff]
    %v2152 = vld [vmem:[%s2148 + $0x18] sm:$0xff]
    %v2153 = vld [vmem:[%s2148 + $0x38] sm:$0xff]
    %v2154 = vld [vmem:[%s2148 + $0x40] sm:$0xff]
    %v2155 = vld [vmem:[%s2148 + $0x48] sm:$0xff]
    %v2156 = vld [vmem:[%s2148 + $0x50] sm:$0xff]
    %2157 = vmatprep.subr.mxu0 %v999
    %2158 = vmatpush1.msra.mxu0 %v998
    %2159 = vmatprep.subr.mxu0 %v1003
    %2160 = vmatpush1.msra.mxu0 %v1002
    %2161 = vmatprep.subr.mxu0 %v1007
    %2162 = vmatpush1.msra.mxu0 %v1006
    %2163 = vmatprep.subr.mxu0 %v1011
    %2164 = vmatpush1.msra.mxu0 %v1010
    %2165 = vmatprep.subr.mxu0 %v1015
    %2166 = vmatpush1.msra.mxu0 %v1014
    %2167 = vmatprep.subr.mxu0 %v1019
    %2168 = vmatpush1.msra.mxu0 %v1018
    %2169 = vmatprep.subr.mxu0 %v1023
    %2170 = vmatpush1.msra.mxu0 %v1022
    %2171 = vmatprep.subr.mxu0 %v1027
    %2172 = vmatpush1.msra.mxu0 %v1026
    %2173 = vmatprep.subr.mxu0 %v1031
    %2174 = vmatpush1.msra.mxu0 %v1030
    %2175 = vmatprep.subr.mxu0 %v1035
    %2176 = vmatpush1.msra.mxu0 %v1034
    %2177 = vmatprep.subr.mxu0 %v1039
    %2178 = vmatpush1.msra.mxu0 %v1038
    %2179 = vmatprep.subr.mxu0 %v1043
    %2180 = vmatpush1.msra.mxu0 %v1042
    %2181 = vmatprep.subr.mxu0 %v1047
    %2182 = vmatpush1.msra.mxu0 %v1046
    %2183 = vmatprep.subr.mxu0 %v1051
    %2184 = vmatpush1.msra.mxu0 %v1050
    %2185 = vmatprep.subr.mxu0 %v1055
    %2186 = vmatpush1.msra.mxu0 %v1054
    %2187 = vmatprep.subr.mxu0 %v1059
    %2188 = vmatpush1.msra.mxu0 %v1058
    %2189 = vmatprep.subr.mxu0 0.0
    %2190 = vmatpush1.msra.mxu0 0.0
    %2191 = vmatprep.subr.mxu0 0.0
    %2192 = vmatpush1.msra.mxu0 0.0
    %2193 = vmatprep.subr.mxu0 0.0
    %2194 = vmatpush1.msra.mxu0 0.0
    %2195 = vmatprep.subr.mxu0 0.0
    %2196 = vmatpush1.msra.mxu0 0.0
    %2197 = vmatprep.subr.mxu0 0.0
    %2198 = vmatpush1.msra.mxu0 0.0
    %2199 = vmatprep.subr.mxu0 0.0
    %2200 = vmatpush1.msra.mxu0 0.0
    %2201 = vmatprep.subr.mxu0 0.0
    %2202 = vmatpush1.msra.mxu0 0.0
    %2203 = vmatprep.subr.mxu0 0.0
    %2204 = vmatpush1.msra.mxu0 0.0
    %2205 = vmatprep.subr.mxu0 0.0
    %2206 = vmatpush1.msra.mxu0 0.0
    %2207 = vmatprep.subr.mxu0 0.0
    %2208 = vmatpush1.msra.mxu0 0.0
    %2209 = vmatprep.subr.mxu0 0.0
    %2210 = vmatpush1.msra.mxu0 0.0
    %2211 = vmatprep.subr.mxu0 0.0
    %2212 = vmatpush1.msra.mxu0 0.0
    %2213 = vmatprep.subr.mxu0 0.0
    %2214 = vmatpush1.msra.mxu0 0.0
    %2215 = vmatprep.subr.mxu0 0.0
    %2216 = vmatpush1.msra.mxu0 0.0
    %2217 = vmatprep.subr.mxu0 0.0
    %2218 = vmatpush1.msra.mxu0 0.0
    %2219 = vmatprep.subr.mxu0 0.0
    %2220 = vmatpush1.msra.mxu0 0.0
    %2221 = vmatprep.mubr.f32.mxu0 0.0
    %2222 = vmatmul.mubr.f32.gmra.mrb[0].mxu0 %v2146
    %v2223 = vpop.f32.mrb[0].mxu0
    %v2224 = vadd.f32 0.0, %v2223
    %v2225 = vpop.f32.mrb[0].mxu0
    %v2226 = vadd.f32 0.0, %v2225
    %2227 = vmatprep.mubr.f32.mxu0 0.0
    %2228 = vmatmul.mubr.f32.gmra.mrb[0].mxu0 %v2147
    %v2229 = vpop.f32.mrb[0].mxu0
    %v2230 = vadd.f32 0.0, %v2229
    %v2231 = vpop.f32.mrb[0].mxu0
    %v2232 = vadd.f32 0.0, %v2231
    %2233 = vdwg.mxu0
    %2234 = vmatprep.subr.mxu0 %v1001
    %2235 = vmatpush1.msra.mxu0 %v1000
    %2236 = vmatprep.subr.mxu0 %v1005
    %2237 = vmatpush1.msra.mxu0 %v1004
    %2238 = vmatprep.subr.mxu0 %v1009
    %2239 = vmatpush1.msra.mxu0 %v1008
    %2240 = vmatprep.subr.mxu0 %v1013
    %2241 = vmatpush1.msra.mxu0 %v1012
    %2242 = vmatprep.subr.mxu0 %v1017
    %2243 = vmatpush1.msra.mxu0 %v1016
    %2244 = vmatprep.subr.mxu0 %v1021
    %2245 = vmatpush1.msra.mxu0 %v1020
    %2246 = vmatprep.subr.mxu0 %v1025
    %2247 = vmatpush1.msra.mxu0 %v1024
    %2248 = vmatprep.subr.mxu0 %v1029
    %2249 = vmatpush1.msra.mxu0 %v1028
    %2250 = vmatprep.subr.mxu0 %v1033
    %2251 = vmatpush1.msra.mxu0 %v1032
    %2252 = vmatprep.subr.mxu0 %v1037
    %2253 = vmatpush1.msra.mxu0 %v1036
    %2254 = vmatprep.subr.mxu0 %v1041
    %2255 = vmatpush1.msra.mxu0 %v1040
    %2256 = vmatprep.subr.mxu0 %v1045
    %2257 = vmatpush1.msra.mxu0 %v1044
    %2258 = vmatprep.subr.mxu0 %v1049
    %2259 = vmatpush1.msra.mxu0 %v1048
    %2260 = vmatprep.subr.mxu0 %v1053
    %2261 = vmatpush1.msra.mxu0 %v1052
    %2262 = vmatprep.subr.mxu0 %v1057
    %2263 = vmatpush1.msra.mxu0 %v1056
    %2264 = vmatprep.subr.mxu0 %v1061
    %2265 = vmatpush1.msra.mxu0 %v1060
    %2266 = vmatprep.subr.mxu0 0.0
    %2267 = vmatpush1.msra.mxu0 0.0
    %2268 = vmatprep.subr.mxu0 0.0
    %2269 = vmatpush1.msra.mxu0 0.0
    %2270 = vmatprep.subr.mxu0 0.0
    %2271 = vmatpush1.msra.mxu0 0.0
    %2272 = vmatprep.subr.mxu0 0.0
    %2273 = vmatpush1.msra.mxu0 0.0
    %2274 = vmatprep.subr.mxu0 0.0
    %2275 = vmatpush1.msra.mxu0 0.0
    %2276 = vmatprep.subr.mxu0 0.0
    %2277 = vmatpush1.msra.mxu0 0.0
    %2278 = vmatprep.subr.mxu0 0.0
    %2279 = vmatpush1.msra.mxu0 0.0
    %2280 = vmatprep.subr.mxu0 0.0
    %2281 = vmatpush1.msra.mxu0 0.0
    %2282 = vmatprep.subr.mxu0 0.0
    %2283 = vmatpush1.msra.mxu0 0.0
    %2284 = vmatprep.subr.mxu0 0.0
    %2285 = vmatpush1.msra.mxu0 0.0
    %2286 = vmatprep.subr.mxu0 0.0
    %2287 = vmatpush1.msra.mxu0 0.0
    %2288 = vmatprep.subr.mxu0 0.0
    %2289 = vmatpush1.msra.mxu0 0.0
    %2290 = vmatprep.subr.mxu0 0.0
    %2291 = vmatpush1.msra.mxu0 0.0
    %2292 = vmatprep.subr.mxu0 0.0
    %2293 = vmatpush1.msra.mxu0 0.0
    %2294 = vmatprep.subr.mxu0 0.0
    %2295 = vmatpush1.msra.mxu0 0.0
    %2296 = vmatprep.subr.mxu0 0.0
    %2297 = vmatpush1.msra.mxu0 0.0
    %2298 = vmatprep.mubr.f32.mxu0 0.0
    %2299 = vmatmul.mubr.f32.gmra.mrb[0].mxu0 %v2146
    %v2300 = vpop.f32.mrb[0].mxu0
    %v2301 = vadd.f32 0.0, %v2300
    %v2302 = vpop.f32.mrb[0].mxu0
    %v2303 = vadd.f32 0.0, %v2302
    %2304 = vmatprep.mubr.f32.mxu0 0.0
    %2305 = vmatmul.mubr.f32.gmra.mrb[0].mxu0 %v2147
    %v2306 = vpop.f32.mrb[0].mxu0
    %v2307 = vadd.f32 0.0, %v2306
    %v2308 = vpop.f32.mrb[0].mxu0
    %v2309 = vadd.f32 0.0, %v2308
    %2310 = vdwg.mxu0
    %v2311 = vadd.f32 %v2149, %v2224
    %v2312 = vadd.f32 %v2150, %v2226
    %v2313 = vadd.f32 %v2151, %v2301
    %v2314 = vadd.f32 %v2152, %v2303
    %v2315 = vadd.f32 %v2153, %v2230
    %v2316 = vadd.f32 %v2154, %v2232
    %v2317 = vadd.f32 %v2155, %v2307
    %v2318 = vadd.f32 %v2156, %v2309
    %v2319 = vxor.u32 %v2311, 2147483648
    %v2320 = vxor.u32 %v2312, 2147483648
    %v2321 = vxor.u32 %v2313, 2147483648
    %v2322 = vxor.u32 %v2315, 2147483648
    %v2323 = vxor.u32 %v2316, 2147483648
    %v2324 = vxor.u32 %v2317, 2147483648
    %v2325 = vmul.f32 %v2319, 1.442695
    %v2326 = vpow.pop %v2325
    %v2327 = vmul.f32 %v2320, 1.442695
    %v2328 = vpow.pop %v2327
    %v2329 = vmul.f32 %v2321, 1.442695
    %v2330 = vpow.pop %v2329
    %v2331 = vmul.f32 %v2322, 1.442695
    %v2332 = vpow.pop %v2331
    %v2333 = vmul.f32 %v2323, 1.442695
    %v2334 = vpow.pop %v2333
    %v2335 = vmul.f32 %v2324, 1.442695
    %v2336 = vpow.pop %v2335
    %v2337 = vadd.f32 %v2326, 1.0
    %v2338 = vadd.f32 %v2328, 1.0
    %v2339 = vadd.f32 %v2330, 1.0
    %v2340 = vadd.f32 %v2332, 1.0
    %v2341 = vadd.f32 %v2334, 1.0
    %v2342 = vadd.f32 %v2336, 1.0
    %v2343 = vrcp.pop %v2337
    %v2344 = vmul.f32 1.0, %v2343
    %v2345 = vrcp.pop %v2338
    %v2346 = vmul.f32 1.0, %v2345
    %v2347 = vrcp.pop %v2339
    %v2348 = vmul.f32 1.0, %v2347
    %v2349 = vrcp.pop %v2340
    %v2350 = vmul.f32 1.0, %v2349
    %v2351 = vrcp.pop %v2341
    %v2352 = vmul.f32 1.0, %v2351
    %v2353 = vrcp.pop %v2342
    %v2354 = vmul.f32 1.0, %v2353
    %v2355 = vtanh.pop %v2314
    %v2356 = vtanh.pop %v2318
    %v2357 = vmul.f32 %v2346, %v2142
    %v2358 = vmul.f32 %v2352, %v2143
    %v2359 = vmul.f32 %v2344, %v2355
    %v2360 = vmul.f32 %v2350, %v2356
    %v2361 = vadd.f32 %v2357, %v2359
    %v2362 = vadd.f32 %v2358, %v2360
    %v2363 = vtanh.pop %v2361
    %v2364 = vtanh.pop %v2362
    %v2365 = vmul.f32 %v2348, %v2363
    %v2366 = vmul.f32 %v2354, %v2364
    %s2367 = scalar_lea.vmem [#allocation2], 784
    %v2368 = vld [vmem:[%s2367] sm:$0xff]
    %v2369 = vld [vmem:[%s2367 + $0x8] sm:$0xff]
    %v2370 = vld [vmem:[%s2367 + $0x10] sm:$0xff]
    %v2371 = vld [vmem:[%s2367 + $0x18] sm:$0xff]
    %v2372 = vld [vmem:[%s2367 + $0x38] sm:$0xff]
    %v2373 = vld [vmem:[%s2367 + $0x40] sm:$0xff]
    %v2374 = vld [vmem:[%s2367 + $0x48] sm:$0xff]
    %v2375 = vld [vmem:[%s2367 + $0x50] sm:$0xff]
    %2376 = vmatprep.subr.mxu0 %v999
    %2377 = vmatpush1.msra.mxu0 %v998
    %2378 = vmatprep.subr.mxu0 %v1003
    %2379 = vmatpush1.msra.mxu0 %v1002
    %2380 = vmatprep.subr.mxu0 %v1007
    %2381 = vmatpush1.msra.mxu0 %v1006
    %2382 = vmatprep.subr.mxu0 %v1011
    %2383 = vmatpush1.msra.mxu0 %v1010
    %2384 = vmatprep.subr.mxu0 %v1015
    %2385 = vmatpush1.msra.mxu0 %v1014
    %2386 = vmatprep.subr.mxu0 %v1019
    %2387 = vmatpush1.msra.mxu0 %v1018
    %2388 = vmatprep.subr.mxu0 %v1023
    %2389 = vmatpush1.msra.mxu0 %v1022
    %2390 = vmatprep.subr.mxu0 %v1027
    %2391 = vmatpush1.msra.mxu0 %v1026
    %2392 = vmatprep.subr.mxu0 %v1031
    %2393 = vmatpush1.msra.mxu0 %v1030
    %2394 = vmatprep.subr.mxu0 %v1035
    %2395 = vmatpush1.msra.mxu0 %v1034
    %2396 = vmatprep.subr.mxu0 %v1039
    %2397 = vmatpush1.msra.mxu0 %v1038
    %2398 = vmatprep.subr.mxu0 %v1043
    %2399 = vmatpush1.msra.mxu0 %v1042
    %2400 = vmatprep.subr.mxu0 %v1047
    %2401 = vmatpush1.msra.mxu0 %v1046
    %2402 = vmatprep.subr.mxu0 %v1051
    %2403 = vmatpush1.msra.mxu0 %v1050
    %2404 = vmatprep.subr.mxu0 %v1055
    %2405 = vmatpush1.msra.mxu0 %v1054
    %2406 = vmatprep.subr.mxu0 %v1059
    %2407 = vmatpush1.msra.mxu0 %v1058
    %2408 = vmatprep.subr.mxu0 0.0
    %2409 = vmatpush1.msra.mxu0 0.0
    %2410 = vmatprep.subr.mxu0 0.0
    %2411 = vmatpush1.msra.mxu0 0.0
    %2412 = vmatprep.subr.mxu0 0.0
    %2413 = vmatpush1.msra.mxu0 0.0
    %2414 = vmatprep.subr.mxu0 0.0
    %2415 = vmatpush1.msra.mxu0 0.0
    %2416 = vmatprep.subr.mxu0 0.0
    %2417 = vmatpush1.msra.mxu0 0.0
    %2418 = vmatprep.subr.mxu0 0.0
    %2419 = vmatpush1.msra.mxu0 0.0
    %2420 = vmatprep.subr.mxu0 0.0
    %2421 = vmatpush1.msra.mxu0 0.0
    %2422 = vmatprep.subr.mxu0 0.0
    %2423 = vmatpush1.msra.mxu0 0.0
    %2424 = vmatprep.subr.mxu0 0.0
    %2425 = vmatpush1.msra.mxu0 0.0
    %2426 = vmatprep.subr.mxu0 0.0
    %2427 = vmatpush1.msra.mxu0 0.0
    %2428 = vmatprep.subr.mxu0 0.0
    %2429 = vmatpush1.msra.mxu0 0.0
    %2430 = vmatprep.subr.mxu0 0.0
    %2431 = vmatpush1.msra.mxu0 0.0
    %2432 = vmatprep.subr.mxu0 0.0
    %2433 = vmatpush1.msra.mxu0 0.0
    %2434 = vmatprep.subr.mxu0 0.0
    %2435 = vmatpush1.msra.mxu0 0.0
    %2436 = vmatprep.subr.mxu0 0.0
    %2437 = vmatpush1.msra.mxu0 0.0
    %2438 = vmatprep.subr.mxu0 0.0
    %2439 = vmatpush1.msra.mxu0 0.0
    %2440 = vmatprep.mubr.f32.mxu0 0.0
    %2441 = vmatmul.mubr.f32.gmra.mrb[0].mxu0 %v2365
    %v2442 = vpop.f32.mrb[0].mxu0
    %v2443 = vadd.f32 0.0, %v2442
    %v2444 = vpop.f32.mrb[0].mxu0
    %v2445 = vadd.f32 0.0, %v2444
    %2446 = vmatprep.mubr.f32.mxu0 0.0
    %2447 = vmatmul.mubr.f32.gmra.mrb[0].mxu0 %v2366
    %v2448 = vpop.f32.mrb[0].mxu0
    %v2449 = vadd.f32 0.0, %v2448
    %v2450 = vpop.f32.mrb[0].mxu0
    %v2451 = vadd.f32 0.0, %v2450
    %2452 = vdwg.mxu0
    %2453 = vmatprep.subr.mxu0 %v1001
    %2454 = vmatpush1.msra.mxu0 %v1000
    %2455 = vmatprep.subr.mxu0 %v1005
    %2456 = vmatpush1.msra.mxu0 %v1004
    %2457 = vmatprep.subr.mxu0 %v1009
    %2458 = vmatpush1.msra.mxu0 %v1008
    %2459 = vmatprep.subr.mxu0 %v1013
    %2460 = vmatpush1.msra.mxu0 %v1012
    %2461 = vmatprep.subr.mxu0 %v1017
    %2462 = vmatpush1.msra.mxu0 %v1016
    %2463 = vmatprep.subr.mxu0 %v1021
    %2464 = vmatpush1.msra.mxu0 %v1020
    %2465 = vmatprep.subr.mxu0 %v1025
    %2466 = vmatpush1.msra.mxu0 %v1024
    %2467 = vmatprep.subr.mxu0 %v1029
    %2468 = vmatpush1.msra.mxu0 %v1028
    %2469 = vmatprep.subr.mxu0 %v1033
    %2470 = vmatpush1.msra.mxu0 %v1032
    %2471 = vmatprep.subr.mxu0 %v1037
    %2472 = vmatpush1.msra.mxu0 %v1036
    %2473 = vmatprep.subr.mxu0 %v1041
    %2474 = vmatpush1.msra.mxu0 %v1040
    %2475 = vmatprep.subr.mxu0 %v1045
    %2476 = vmatpush1.msra.mxu0 %v1044
    %2477 = vmatprep.subr.mxu0 %v1049
    %2478 = vmatpush1.msra.mxu0 %v1048
    %2479 = vmatprep.subr.mxu0 %v1053
    %2480 = vmatpush1.msra.mxu0 %v1052
    %2481 = vmatprep.subr.mxu0 %v1057
    %2482 = vmatpush1.msra.mxu0 %v1056
    %2483 = vmatprep.subr.mxu0 %v1061
    %2484 = vmatpush1.msra.mxu0 %v1060
    %2485 = vmatprep.subr.mxu0 0.0
    %2486 = vmatpush1.msra.mxu0 0.0
    %2487 = vmatprep.subr.mxu0 0.0
    %2488 = vmatpush1.msra.mxu0 0.0
    %2489 = vmatprep.subr.mxu0 0.0
    %2490 = vmatpush1.msra.mxu0 0.0
    %2491 = vmatprep.subr.mxu0 0.0
    %2492 = vmatpush1.msra.mxu0 0.0
    %2493 = vmatprep.subr.mxu0 0.0
    %2494 = vmatpush1.msra.mxu0 0.0
    %2495 = vmatprep.subr.mxu0 0.0
    %2496 = vmatpush1.msra.mxu0 0.0
    %2497 = vmatprep.subr.mxu0 0.0
    %2498 = vmatpush1.msra.mxu0 0.0
    %2499 = vmatprep.subr.mxu0 0.0
    %2500 = vmatpush1.msra.mxu0 0.0
    %2501 = vmatprep.subr.mxu0 0.0
    %2502 = vmatpush1.msra.mxu0 0.0
    %2503 = vmatprep.subr.mxu0 0.0
    %2504 = vmatpush1.msra.mxu0 0.0
    %2505 = vmatprep.subr.mxu0 0.0
    %2506 = vmatpush1.msra.mxu0 0.0
    %2507 = vmatprep.subr.mxu0 0.0
    %2508 = vmatpush1.msra.mxu0 0.0
    %2509 = vmatprep.subr.mxu0 0.0
    %2510 = vmatpush1.msra.mxu0 0.0
    %2511 = vmatprep.subr.mxu0 0.0
    %2512 = vmatpush1.msra.mxu0 0.0
    %2513 = vmatprep.subr.mxu0 0.0
    %2514 = vmatpush1.msra.mxu0 0.0
    %2515 = vmatprep.subr.mxu0 0.0
    %2516 = vmatpush1.msra.mxu0 0.0
    %2517 = vmatprep.mubr.f32.mxu0 0.0
    %2518 = vmatmul.mubr.f32.gmra.mrb[0].mxu0 %v2365
    %v2519 = vpop.f32.mrb[0].mxu0
    %v2520 = vadd.f32 0.0, %v2519
    %v2521 = vpop.f32.mrb[0].mxu0
    %v2522 = vadd.f32 0.0, %v2521
    %2523 = vmatprep.mubr.f32.mxu0 0.0
    %2524 = vmatmul.mubr.f32.gmra.mrb[0].mxu0 %v2366
    %v2525 = vpop.f32.mrb[0].mxu0
    %v2526 = vadd.f32 0.0, %v2525
    %v2527 = vpop.f32.mrb[0].mxu0
    %v2528 = vadd.f32 0.0, %v2527
    %2529 = vdwg.mxu0
    %v2530 = vadd.f32 %v2368, %v2443
    %v2531 = vadd.f32 %v2369, %v2445
    %v2532 = vadd.f32 %v2370, %v2520
    %v2533 = vadd.f32 %v2371, %v2522
    %v2534 = vadd.f32 %v2372, %v2449
    %v2535 = vadd.f32 %v2373, %v2451
    %v2536 = vadd.f32 %v2374, %v2526
    %v2537 = vadd.f32 %v2375, %v2528
    %v2538 = vxor.u32 %v2530, 2147483648
    %v2539 = vxor.u32 %v2531, 2147483648
    %v2540 = vxor.u32 %v2532, 2147483648
    %v2541 = vxor.u32 %v2534, 2147483648
    %v2542 = vxor.u32 %v2535, 2147483648
    %v2543 = vxor.u32 %v2536, 2147483648
    %v2544 = vmul.f32 %v2538, 1.442695
    %v2545 = vpow.pop %v2544
    %v2546 = vmul.f32 %v2539, 1.442695
    %v2547 = vpow.pop %v2546
    %v2548 = vmul.f32 %v2540, 1.442695
    %v2549 = vpow.pop %v2548
    %v2550 = vmul.f32 %v2541, 1.442695
    %v2551 = vpow.pop %v2550
    %v2552 = vmul.f32 %v2542, 1.442695
    %v2553 = vpow.pop %v2552
    %v2554 = vmul.f32 %v2543, 1.442695
    %v2555 = vpow.pop %v2554
    %v2556 = vadd.f32 %v2545, 1.0
    %v2557 = vadd.f32 %v2547, 1.0
    %v2558 = vadd.f32 %v2549, 1.0
    %v2559 = vadd.f32 %v2551, 1.0
    %v2560 = vadd.f32 %v2553, 1.0
    %v2561 = vadd.f32 %v2555, 1.0
    %v2562 = vrcp.pop %v2556
    %v2563 = vmul.f32 1.0, %v2562
    %v2564 = vrcp.pop %v2557
    %v2565 = vmul.f32 1.0, %v2564
    %v2566 = vrcp.pop %v2558
    %v2567 = vmul.f32 1.0, %v2566
    %v2568 = vrcp.pop %v2559
    %v2569 = vmul.f32 1.0, %v2568
    %v2570 = vrcp.pop %v2560
    %v2571 = vmul.f32 1.0, %v2570
    %v2572 = vrcp.pop %v2561
    %v2573 = vmul.f32 1.0, %v2572
    %v2574 = vtanh.pop %v2533
    %v2575 = vtanh.pop %v2537
    %v2576 = vmul.f32 %v2565, %v2361
    %v2577 = vmul.f32 %v2571, %v2362
    %v2578 = vmul.f32 %v2563, %v2574
    %v2579 = vmul.f32 %v2569, %v2575
    %v2580 = vadd.f32 %v2576, %v2578
    %v2581 = vadd.f32 %v2577, %v2579
    %v2582 = vtanh.pop %v2580
    %v2583 = vtanh.pop %v2581
    %v2584 = vmul.f32 %v2567, %v2582
    %v2585 = vmul.f32 %v2573, %v2583
    %v2586 = vld [vmem:[%s2367 + $0x20] sm:$0xff]
    %v2587 = vld [vmem:[%s2367 + $0x28] sm:$0xff]
    %v2588 = vld [vmem:[%s2367 + $0x30] sm:$0xff]
    %v2589 = vld [vmem:[%s2367 + $0x58] sm:$0xff]
    %v2590 = vld [vmem:[%s2367 + $0x60] sm:$0xff]
    %v2591 = vld [vmem:[%s2367 + $0x68] sm:$0xff]
    %v2592 = vxor.u32 %v2586, 2147483648
    %v2593 = vxor.u32 %v2587, 2147483648
    %v2594 = vxor.u32 %v2589, 2147483648
    %v2595 = vxor.u32 %v2590, 2147483648
    %v2596 = vmul.f32 %v2592, 1.442695
    %v2597 = vpow.pop %v2596
    %v2598 = vmul.f32 %v2593, 1.442695
    %v2599 = vpow.pop %v2598
    %v2600 = vmul.f32 %v2594, 1.442695
    %v2601 = vpow.pop %v2600
    %v2602 = vmul.f32 %v2595, 1.442695
    %v2603 = vpow.pop %v2602
    %v2604 = vadd.f32 %v2597, 1.0
    %v2605 = vadd.f32 %v2599, 1.0
    %v2606 = vadd.f32 %v2601, 1.0
    %v2607 = vadd.f32 %v2603, 1.0
    %v2608 = vrcp.pop %v2604
    %v2609 = vmul.f32 1.0, %v2608
    %v2610 = vrcp.pop %v2605
    %v2611 = vmul.f32 1.0, %v2610
    %v2612 = vrcp.pop %v2606
    %v2613 = vmul.f32 1.0, %v2612
    %v2614 = vrcp.pop %v2607
    %v2615 = vmul.f32 1.0, %v2614
    %v2616 = vtanh.pop %v2588
    %v2617 = vtanh.pop %v2591
    %v2618 = vmul.f32 %v2609, %v2616
    %v2619 = vmul.f32 %v2613, %v2617
    %v2620 = vtanh.pop %v2618
    %v2621 = vtanh.pop %v2619
    %v2622 = vmul.f32 %v2611, %v2620
    %v2623 = vmul.f32 %v2615, %v2621
    %v2624 = vld [vmem:[%s4] sm:$0xff]
    %v2625 = vld [vmem:[%s4 + $0x8] sm:$0xff]
    %v2626 = vld [vmem:[%s4 + $0x10] sm:$0xff]
    %v2627 = vld [vmem:[%s4 + $0x18] sm:$0xff]
    %v2628 = vld [vmem:[%s4 + $0x20] sm:$0xff]
    %v2629 = vld [vmem:[%s4 + $0x28] sm:$0xff]
    %v2630 = vld [vmem:[%s4 + $0x30] sm:$0xff]
    %v2631 = vld [vmem:[%s4 + $0x38] sm:$0xff]
    %v2632 = vld [vmem:[%s4 + $0x40] sm:$0xff]
    %v2633 = vld [vmem:[%s4 + $0x48] sm:$0xff]
    %v2634 = vld [vmem:[%s4 + $0x50] sm:$0xff]
    %v2635 = vld [vmem:[%s4 + $0x58] sm:$0xff]
    %v2636 = vld [vmem:[%s4 + $0x60] sm:$0xff]
    %v2637 = vld [vmem:[%s4 + $0x68] sm:$0xff]
    %v2638 = vld [vmem:[%s4 + $0x70] sm:$0xff]
    %v2639 = vld [vmem:[%s4 + $0x78] sm:$0xff]
    %v2640 = vld [vmem:[%s5] sm:$0xff]
    %v2641 = vld [vmem:[%s5 + $0x8] sm:$0xff]
    %v2642 = vld [vmem:[%s5 + $0x10] sm:$0xff]
    %v2643 = vld [vmem:[%s5 + $0x18] sm:$0xff]
    %v2644 = vld [vmem:[%s5 + $0x20] sm:$0xff]
    %v2645 = vld [vmem:[%s5 + $0x28] sm:$0xff]
    %v2646 = vld [vmem:[%s5 + $0x30] sm:$0xff]
    %v2647 = vld [vmem:[%s5 + $0x38] sm:$0xff]
    %v2648 = vld [vmem:[%s5 + $0x40] sm:$0xff]
    %v2649 = vld [vmem:[%s5 + $0x48] sm:$0xff]
    %v2650 = vld [vmem:[%s5 + $0x50] sm:$0xff]
    %v2651 = vld [vmem:[%s5 + $0x58] sm:$0xff]
    %v2652 = vld [vmem:[%s5 + $0x60] sm:$0xff]
    %v2653 = vld [vmem:[%s5 + $0x68] sm:$0xff]
    %v2654 = vld [vmem:[%s5 + $0x70] sm:$0xff]
    %v2655 = vld [vmem:[%s5 + $0x78] sm:$0xff]
    %2656 = vmatprep.subr.mxu0 0.0
    %2657 = vmatpush1.msra.mxu0 %v2640
    %2658 = vmatprep.subr.mxu0 0.0
    %2659 = vmatpush1.msra.mxu0 %v2641
    %2660 = vmatprep.subr.mxu0 0.0
    %2661 = vmatpush1.msra.mxu0 %v2642
    %2662 = vmatprep.subr.mxu0 0.0
    %2663 = vmatpush1.msra.mxu0 %v2643
    %2664 = vmatprep.subr.mxu0 0.0
    %2665 = vmatpush1.msra.mxu0 %v2644
    %2666 = vmatprep.subr.mxu0 0.0
    %2667 = vmatpush1.msra.mxu0 %v2645
    %2668 = vmatprep.subr.mxu0 0.0
    %2669 = vmatpush1.msra.mxu0 %v2646
    %2670 = vmatprep.subr.mxu0 0.0
    %2671 = vmatpush1.msra.mxu0 %v2647
    %2672 = vmatprep.subr.mxu0 0.0
    %2673 = vmatpush1.msra.mxu0 %v2648
    %2674 = vmatprep.subr.mxu0 0.0
    %2675 = vmatpush1.msra.mxu0 %v2649
    %2676 = vmatprep.subr.mxu0 0.0
    %2677 = vmatpush1.msra.mxu0 %v2650
    %2678 = vmatprep.subr.mxu0 0.0
    %2679 = vmatpush1.msra.mxu0 %v2651
    %2680 = vmatprep.subr.mxu0 0.0
    %2681 = vmatpush1.msra.mxu0 %v2652
    %2682 = vmatprep.subr.mxu0 0.0
    %2683 = vmatpush1.msra.mxu0 %v2653
    %2684 = vmatprep.subr.mxu0 0.0
    %2685 = vmatpush1.msra.mxu0 %v2654
    %2686 = vmatprep.subr.mxu0 0.0
    %2687 = vmatpush1.msra.mxu0 %v2655
    %2688 = vmatprep.subr.mxu0 0.0
    %2689 = vmatpush1.msra.mxu0 0.0
    %2690 = vmatprep.subr.mxu0 0.0
    %2691 = vmatpush1.msra.mxu0 0.0
    %2692 = vmatprep.subr.mxu0 0.0
    %2693 = vmatpush1.msra.mxu0 0.0
    %2694 = vmatprep.subr.mxu0 0.0
    %2695 = vmatpush1.msra.mxu0 0.0
    %2696 = vmatprep.subr.mxu0 0.0
    %2697 = vmatpush1.msra.mxu0 0.0
    %2698 = vmatprep.subr.mxu0 0.0
    %2699 = vmatpush1.msra.mxu0 0.0
    %2700 = vmatprep.subr.mxu0 0.0
    %2701 = vmatpush1.msra.mxu0 0.0
    %2702 = vmatprep.subr.mxu0 0.0
    %2703 = vmatpush1.msra.mxu0 0.0
    %2704 = vmatprep.subr.mxu0 0.0
    %2705 = vmatpush1.msra.mxu0 0.0
    %2706 = vmatprep.subr.mxu0 0.0
    %2707 = vmatpush1.msra.mxu0 0.0
    %2708 = vmatprep.subr.mxu0 0.0
    %2709 = vmatpush1.msra.mxu0 0.0
    %2710 = vmatprep.subr.mxu0 0.0
    %2711 = vmatpush1.msra.mxu0 0.0
    %2712 = vmatprep.subr.mxu0 0.0
    %2713 = vmatpush1.msra.mxu0 0.0
    %2714 = vmatprep.subr.mxu0 0.0
    %2715 = vmatpush1.msra.mxu0 0.0
    %2716 = vmatprep.subr.mxu0 0.0
    %2717 = vmatpush1.msra.mxu0 0.0
    %2718 = vmatprep.subr.mxu0 0.0
    %2719 = vmatpush1.msra.mxu0 0.0
    %2720 = vmatprep.mubr.f32.mxu0 0.0
    %2721 = vmatmul.mubr.f32.gmra.mrb[0].mxu0 %v2622
    %v2722 = vpop.f32.mrb[0].mxu0
    %v2723 = vadd.f32 0.0, %v2722
    %v2724 = vpop.f32.mrb[0].mxu0
    %2725 = vmatprep.mubr.f32.mxu0 0.0
    %2726 = vmatmul.mubr.f32.gmra.mrb[0].mxu0 %v2623
    %v2727 = vpop.f32.mrb[0].mxu0
    %v2728 = vadd.f32 0.0, %v2727
    %v2729 = vpop.f32.mrb[0].mxu0
    %2730 = vdwg.mxu0
    %2731 = vmatprep.subr.mxu0 0.0
    %2732 = vmatpush1.msra.mxu0 %v2624
    %2733 = vmatprep.subr.mxu0 0.0
    %2734 = vmatpush1.msra.mxu0 %v2625
    %2735 = vmatprep.subr.mxu0 0.0
    %2736 = vmatpush1.msra.mxu0 %v2626
    %2737 = vmatprep.subr.mxu0 0.0
    %2738 = vmatpush1.msra.mxu0 %v2627
    %2739 = vmatprep.subr.mxu0 0.0
    %2740 = vmatpush1.msra.mxu0 %v2628
    %2741 = vmatprep.subr.mxu0 0.0
    %2742 = vmatpush1.msra.mxu0 %v2629
    %2743 = vmatprep.subr.mxu0 0.0
    %2744 = vmatpush1.msra.mxu0 %v2630
    %2745 = vmatprep.subr.mxu0 0.0
    %2746 = vmatpush1.msra.mxu0 %v2631
    %2747 = vmatprep.subr.mxu0 0.0
    %2748 = vmatpush1.msra.mxu0 %v2632
    %2749 = vmatprep.subr.mxu0 0.0
    %2750 = vmatpush1.msra.mxu0 %v2633
    %2751 = vmatprep.subr.mxu0 0.0
    %2752 = vmatpush1.msra.mxu0 %v2634
    %2753 = vmatprep.subr.mxu0 0.0
    %2754 = vmatpush1.msra.mxu0 %v2635
    %2755 = vmatprep.subr.mxu0 0.0
    %2756 = vmatpush1.msra.mxu0 %v2636
    %2757 = vmatprep.subr.mxu0 0.0
    %2758 = vmatpush1.msra.mxu0 %v2637
    %2759 = vmatprep.subr.mxu0 0.0
    %2760 = vmatpush1.msra.mxu0 %v2638
    %2761 = vmatprep.subr.mxu0 0.0
    %2762 = vmatpush1.msra.mxu0 %v2639
    %2763 = vmatprep.subr.mxu0 0.0
    %2764 = vmatpush1.msra.mxu0 0.0
    %2765 = vmatprep.subr.mxu0 0.0
    %2766 = vmatpush1.msra.mxu0 0.0
    %2767 = vmatprep.subr.mxu0 0.0
    %2768 = vmatpush1.msra.mxu0 0.0
    %2769 = vmatprep.subr.mxu0 0.0
    %2770 = vmatpush1.msra.mxu0 0.0
    %2771 = vmatprep.subr.mxu0 0.0
    %2772 = vmatpush1.msra.mxu0 0.0
    %2773 = vmatprep.subr.mxu0 0.0
    %2774 = vmatpush1.msra.mxu0 0.0
    %2775 = vmatprep.subr.mxu0 0.0
    %2776 = vmatpush1.msra.mxu0 0.0
    %2777 = vmatprep.subr.mxu0 0.0
    %2778 = vmatpush1.msra.mxu0 0.0
    %2779 = vmatprep.subr.mxu0 0.0
    %2780 = vmatpush1.msra.mxu0 0.0
    %2781 = vmatprep.subr.mxu0 0.0
    %2782 = vmatpush1.msra.mxu0 0.0
    %2783 = vmatprep.subr.mxu0 0.0
    %2784 = vmatpush1.msra.mxu0 0.0
    %2785 = vmatprep.subr.mxu0 0.0
    %2786 = vmatpush1.msra.mxu0 0.0
    %2787 = vmatprep.subr.mxu0 0.0
    %2788 = vmatpush1.msra.mxu0 0.0
    %2789 = vmatprep.subr.mxu0 0.0
    %2790 = vmatpush1.msra.mxu0 0.0
    %2791 = vmatprep.subr.mxu0 0.0
    %2792 = vmatpush1.msra.mxu0 0.0
    %2793 = vmatprep.subr.mxu0 0.0
    %2794 = vmatpush1.msra.mxu0 0.0
    %2795 = vmatprep.mubr.f32.mxu0 0.0
    %2796 = vmatmul.mubr.f32.gmra.mrb[0].mxu0 %v2584
    %v2797 = vpop.f32.mrb[0].mxu0
    %v2798 = vadd.f32 %v2723, %v2797
    %v2799 = vpop.f32.mrb[0].mxu0
    %2800 = vmatprep.mubr.f32.mxu0 0.0
    %2801 = vmatmul.mubr.f32.gmra.mrb[0].mxu0 %v2585
    %v2802 = vpop.f32.mrb[0].mxu0
    %v2803 = vadd.f32 %v2728, %v2802
    %v2804 = vpop.f32.mrb[0].mxu0
    %2805 = vdwg.mxu0
    %v2806 = vld [vmem:[%s6] sm:$0x1]
    %v2808 = vlaneseq
    %v2809 = vshrl.u32 %v2808, 7
    %v2810 = vsub.s32 0, %v2809
    %v2811 = vrot.slane %v2806, %v2810
    %v2813 = vadd.f32 %v2798, %v2811
    %v2814 = vadd.f32 %v2803, %v2811
    %v2815 = vmax.f32 %v2813, 0.0
    %v2816 = vmax.f32 %v2814, 0.0
    %v2817 = vld [vmem:[#allocation8] sm:$0xff]
    %v2818 = vld [vmem:[#allocation8 + $0x8] sm:$0xff]
    %v2819 = vld [vmem:[#allocation8 + $0x10] sm:$0xff]
    %v2820 = vld [vmem:[#allocation8 + $0x18] sm:$0xff]
    %v2821 = vld [vmem:[#allocation8 + $0x20] sm:$0xff]
    %v2822 = vld [vmem:[#allocation8 + $0x28] sm:$0xff]
    %v2823 = vld [vmem:[#allocation8 + $0x30] sm:$0xff]
    %v2824 = vld [vmem:[#allocation8 + $0x38] sm:$0xff]
    %v2825 = vld [vmem:[%s8] sm:$0x1]
    %v2827 = vlaneseq
    %v2828 = vshrl.u32 %v2827, 7
    %v2829 = vsub.s32 0, %v2828
    %v2830 = vrot.slane %v2825, %v2829
    %vm2832 = vcmask 523264
    %v2834 = vsel %vm2832, %v2815, 0
    %v2837 = vsel %vm2832, %v2816, 0
    %2839 = vmatprep.subr.mxu0 0.0
    %2840 = vmatpush1.msra.mxu0 %v2817
    %2841 = vmatprep.subr.mxu0 0.0
    %2842 = vmatpush1.msra.mxu0 %v2818
    %2843 = vmatprep.subr.mxu0 0.0
    %2844 = vmatpush1.msra.mxu0 %v2819
    %2845 = vmatprep.subr.mxu0 0.0
    %2846 = vmatpush1.msra.mxu0 %v2820
    %2847 = vmatprep.subr.mxu0 0.0
    %2848 = vmatpush1.msra.mxu0 %v2821
    %2849 = vmatprep.subr.mxu0 0.0
    %2850 = vmatpush1.msra.mxu0 %v2822
    %2851 = vmatprep.subr.mxu0 0.0
    %2852 = vmatpush1.msra.mxu0 %v2823
    %2853 = vmatprep.subr.mxu0 0.0
    %2854 = vmatpush1.msra.mxu0 %v2824
    %2855 = vmatprep.subr.mxu0 0.0
    %2856 = vmatpush1.msra.mxu0 0.0
    %2857 = vmatprep.subr.mxu0 0.0
    %2858 = vmatpush1.msra.mxu0 0.0
    %2859 = vmatprep.subr.mxu0 0.0
    %2860 = vmatpush1.msra.mxu0 0.0
    %2861 = vmatprep.subr.mxu0 0.0
    %2862 = vmatpush1.msra.mxu0 0.0
    %2863 = vmatprep.subr.mxu0 0.0
    %2864 = vmatpush1.msra.mxu0 0.0
    %2865 = vmatprep.subr.mxu0 0.0
    %2866 = vmatpush1.msra.mxu0 0.0
    %2867 = vmatprep.subr.mxu0 0.0
    %2868 = vmatpush1.msra.mxu0 0.0
    %2869 = vmatprep.subr.mxu0 0.0
    %2870 = vmatpush1.msra.mxu0 0.0
    %2871 = vmatprep.subr.mxu0 0.0
    %2872 = vmatpush1.msra.mxu0 0.0
    %2873 = vmatprep.subr.mxu0 0.0
    %2874 = vmatpush1.msra.mxu0 0.0
    %2875 = vmatprep.subr.mxu0 0.0
    %2876 = vmatpush1.msra.mxu0 0.0
    %2877 = vmatprep.subr.mxu0 0.0
    %2878 = vmatpush1.msra.mxu0 0.0
    %2879 = vmatprep.subr.mxu0 0.0
    %2880 = vmatpush1.msra.mxu0 0.0
    %2881 = vmatprep.subr.mxu0 0.0
    %2882 = vmatpush1.msra.mxu0 0.0
    %2883 = vmatprep.subr.mxu0 0.0
    %2884 = vmatpush1.msra.mxu0 0.0
    %2885 = vmatprep.subr.mxu0 0.0
    %2886 = vmatpush1.msra.mxu0 0.0
    %2887 = vmatprep.subr.mxu0 0.0
    %2888 = vmatpush1.msra.mxu0 0.0
    %2889 = vmatprep.subr.mxu0 0.0
    %2890 = vmatpush1.msra.mxu0 0.0
    %2891 = vmatprep.subr.mxu0 0.0
    %2892 = vmatpush1.msra.mxu0 0.0
    %2893 = vmatprep.subr.mxu0 0.0
    %2894 = vmatpush1.msra.mxu0 0.0
    %2895 = vmatprep.subr.mxu0 0.0
    %2896 = vmatpush1.msra.mxu0 0.0
    %2897 = vmatprep.subr.mxu0 0.0
    %2898 = vmatpush1.msra.mxu0 0.0
    %2899 = vmatprep.subr.mxu0 0.0
    %2900 = vmatpush1.msra.mxu0 0.0
    %2901 = vmatprep.subr.mxu0 0.0
    %2902 = vmatpush1.msra.mxu0 0.0
    %2903 = vmatprep.mubr.f32.mxu0 0.0
    %2904 = vmatmul.mubr.f32.gmra.mrb[0].mxu0 %v2834
    %v2905 = vpop.f32.mrb[0].mxu0
    %v2906 = vadd.f32 %v2830, %v2905
    %v2907 = vpop.f32.mrb[0].mxu0
    %2908 = vmatprep.mubr.f32.mxu0 0.0
    %2909 = vmatmul.mubr.f32.gmra.mrb[0].mxu0 %v2837
    %v2910 = vpop.f32.mrb[0].mxu0
    %v2911 = vadd.f32 %v2830, %v2910
    %v2912 = vpop.f32.mrb[0].mxu0
    %2913 = vdwg.mxu0
    %2914 = vst [vmem:[#allocation9] sm:$0xff] %v2906
    %2915 = vst [vmem:[#allocation9 + $0x8] sm:$0xff] %v2911
    // Predicated region
    $region50: #{tpu_custom_call.1} parent=1 // pred_check
      _
    $region51: #{tpu_custom_call.1} parent=1 // pred_check_branch
      %2917 = sbr.rel (0) target = $region53
    $region52: #{tpu_custom_call.1} parent=1 // pred_region
      %s2919 = ssub.s32 256, 256
      %2920 = vsyncadd [#allocation5], %s2919
      %s2921 = sshll.u32 [#allocation9], 4
      %s2922 = int_to_ptr.vmem [resolvable:$true] %s2921
      %2927 = dma.vmem_to_hbm [thread:$0]  %s2922, 256, %s9, [#allocation5], 128, 128, 8
    $region53: #{tpu_custom_call.1} parent=1 // pred_fallthru
      _
    // Predicated region
    $region54: #{tpu_custom_call.1} parent=1 // pred_check
      _
    $region55: #{tpu_custom_call.1} parent=1 // pred_check_branch
      %2929 = sbr.rel (0) target = $region57
    $region56: #{tpu_custom_call.1} parent=1 // pred_region
      %2930 = dma.done [#allocation5], 256
    $region57: #{tpu_custom_call.1} parent=1 // pred_fallthru
      _
    %2931 = vsyncpa [#allocation4], 1
    %2932 = vsyncpa [#allocation7], 1
    %2933 = vsyncpa [#allocation5], 1

</llo_original>
